<compile_context>
chip_gen: v7x
topology: tpu7x:2x2x1
jax: 0.10.0
libtpu: 0.0.40
codegen_flags: <defaults>
</compile_context>

<pallas_src>
import functools
import math

import jax
import jax.numpy as jnp
from jax.experimental import pallas as pl
from jax.experimental.pallas import tpu as pltpu

NEG = -1e25                    # mask_token from the PyTorch module
MATMUL_DTYPE = jnp.float32     # flip to jnp.bfloat16 on v6e/v7x for perf


# ---------------------------- small in-kernel helpers ----------------------------

def _dot(a, b):
    return jnp.dot(a.astype(MATMUL_DTYPE), b.astype(MATMUL_DTYPE),
                   preferred_element_type=jnp.float32)


def _dot_nt(a, b):  # a @ b.T without materializing a transpose
    return jax.lax.dot_general(
        a.astype(MATMUL_DTYPE), b.astype(MATMUL_DTYPE),
        dimension_numbers=(((1,), (1,)), ((), ())),
        preferred_element_type=jnp.float32)


def _layernorm(x, g, b):
    # torch defaults: eps=1e-5, biased variance; stats kept in f32 (v5e-friendly)
    m = jnp.mean(x, axis=-1, keepdims=True)
    v = jnp.mean((x - m) ** 2, axis=-1, keepdims=True)
    return (x - m) * jax.lax.rsqrt(v + 1e-5) * g + b


# ---------------------------- Pallas kernels ----------------------------

def embed_kernel(emb_ref, pos_ref, o_ref, *, scale):
    # embeddings * sqrt(d_model) + pos_embeddings[:S]
    o_ref[...] = emb_ref[...] * scale + pos_ref[...]


def layer_kernel(x_ref, padr_ref, padc_ref,
                 wq_ref, bq_ref, wk_ref, bk_ref, wv_ref, bv_ref,
                 wo_ref, bo_ref, g1_ref, be1_ref,
                 w1_ref, b1_ref, w2_ref, b2_ref, g2_ref, be2_ref,
                 o_ref, *, n_heads):
    S, E = x_ref.shape[1], x_ref.shape[2]
    dh = E // n_heads
    scale = 1.0 / float(dh) ** 0.5

    x = x_ref[0]                                           # (S, E)

    # additive attention mask built on-chip: causal + key-side pad + query-side pad
    rows = jax.lax.broadcasted_iota(jnp.int32, (S, S), 0)
    cols = jax.lax.broadcasted_iota(jnp.int32, (S, S), 1)
    mask = jnp.where(cols > rows, NEG, 0.0)
    mask = mask + padr_ref[0] + padc_ref[0]                # (S,S) + (1,S) + (S,1)

    # multi-head attention; head merge + out-projection fused as per-head partial matmuls
    attn = jnp.zeros((S, E), jnp.float32) + bo_ref[...]
    for h in range(n_heads):
        qh = (_dot(x, wq_ref[h]) + bq_ref[h]) * scale      # (S, dh)   scale folded into q
        kh = _dot(x, wk_ref[h]) + bk_ref[h]                # (S, dh)
        vh = _dot(x, wv_ref[h]) + bv_ref[h]                # (S, dh)
        s = _dot_nt(qh, kh) + mask                         # (S, S)
        mx = jnp.max(s, axis=-1, keepdims=True)
        e = jnp.exp(s - mx)
        den = jnp.sum(e, axis=-1, keepdims=True)
        p = e * pl.reciprocal(den, approx=True)            # den >= 1 -> no NaN possible
        oh = _dot(p, vh)                                   # (S, dh)
        attn = attn + _dot(oh, wo_ref[h])                  # += oh @ Wo[h*dh:(h+1)*dh, :]

    # residual + LayerNorm -> FFN -> residual + LayerNorm (dropout = identity / eval)
    h1 = _layernorm(attn + x, g1_ref[...], be1_ref[...])
    f = jnp.maximum(_dot(h1, w1_ref[...]) + b1_ref[...], 0.0)
    f = _dot(f, w2_ref[...]) + b2_ref[...]
    o_ref[0] = _layernorm(f + h1, g2_ref[...], be2_ref[...])


def lm_head_kernel(x_ref, w_ref, b_ref, o_ref):
    o_ref[...] = _dot(x_ref[...], w_ref[...]) + b_ref[...]


# ---------------------------- pallas_call wrappers ----------------------------

def embed_forward(emb, pos_s, scale):
    B, S, E = emb.shape
    return pl.pallas_call(
        functools.partial(embed_kernel, scale=scale),
        out_shape=jax.ShapeDtypeStruct((B, S, E), jnp.float32),
        grid=(B,),
        in_specs=[pl.BlockSpec((1, S, E), lambda b: (b, 0, 0)),
                  pl.BlockSpec((1, S, E), lambda b: (0, 0, 0))],
        out_specs=pl.BlockSpec((1, S, E), lambda b: (b, 0, 0)),
        compiler_params=pltpu.CompilerParams(dimension_semantics=("parallel",)),
    )(emb, pos_s)


def layer_forward(x, padr, padc, L, n_heads):
    B, S, E = x.shape
    F = L["W1"].shape[1]
    dh = E // n_heads

    def full(shape):
        n = len(shape)
        return pl.BlockSpec(shape, lambda b: (0,) * n)     # weights stay resident across grid

    return pl.pallas_call(
        functools.partial(layer_kernel, n_heads=n_heads),
        out_shape=jax.ShapeDtypeStruct((B, S, E), jnp.float32),
        grid=(B,),
        in_specs=[
            pl.BlockSpec((1, S, E), lambda b: (b, 0, 0)),   # x (per batch element)
            pl.BlockSpec((1, 1, S), lambda b: (b, 0, 0)),   # key-side pad mask
            pl.BlockSpec((1, S, 1), lambda b: (b, 0, 0)),   # query-side pad mask
            full((n_heads, E, dh)), full((n_heads, 1, dh)), # Wq, bq
            full((n_heads, E, dh)), full((n_heads, 1, dh)), # Wk, bk
            full((n_heads, E, dh)), full((n_heads, 1, dh)), # Wv, bv
            full((n_heads, dh, E)), full((1, E)),           # Wo, bo
            full((1, E)), full((1, E)),                     # g1, be1
            full((E, F)), full((1, F)),                     # W1, b1
            full((F, E)), full((1, E)),                     # W2, b2
            full((1, E)), full((1, E)),                     # g2, be2
        ],
        out_specs=pl.BlockSpec((1, S, E), lambda b: (b, 0, 0)),
        compiler_params=pltpu.CompilerParams(
            dimension_semantics=("parallel",)),             # megacore-shard batch on v7x
    )(x, padr, padc,
      L["Wq"], L["bq"], L["Wk"], L["bk"], L["Wv"], L["bv"],
      L["Wo"], L["bo"], L["g1"], L["be1"],
      L["W1"], L["b1"], L["W2"], L["b2"], L["g2"], L["be2"])


def lm_head_forward(x2d, w, b):
    M, K = x2d.shape
    N = w.shape[1]
    tm = min(M, 256)
    tn = min(N, 512)   # keeps 2x double-buffered weight tiles well under v7x's 64 MiB VMEM
    assert M % tm == 0 and N % tn == 0, (M, N, tm, tn)
    return pl.pallas_call(
        lm_head_kernel,
        out_shape=jax.ShapeDtypeStruct((M, N), jnp.float32),
        grid=(M // tm, N // tn),
        in_specs=[pl.BlockSpec((tm, K), lambda i, j: (i, 0)),
                  pl.BlockSpec((K, tn), lambda i, j: (0, j)),
                  pl.BlockSpec((1, tn), lambda i, j: (0, j))],
        out_specs=pl.BlockSpec((tm, tn), lambda i, j: (i, j)),
        compiler_params=pltpu.CompilerParams(
            dimension_semantics=("parallel", "parallel")),
    )(x2d, w, b)


def language_model_forward(tokens, params, n_heads, pad_idx=0):
    B, S = tokens.shape
    d_model = params["embedding"].shape[1]
    vocab = params["embedding"].shape[0]

    # additive pad mask pieces (key- and query-side); the (S,S) causal term is built
    # inside layer_kernel, so no (B*H, S, S) mask tensor ever hits HBM.
    pad = jnp.where(tokens == pad_idx, NEG, 0.0).astype(jnp.float32)     # (B, S)
    padr = pad[:, None, :]                                               # (B, 1, S)
    padc = pad[:, :, None]                                               # (B, S, 1)

    emb = params["embedding"][tokens]                                    # gather (glue)
    x = embed_forward(emb, params["pos"][:S][None], float(d_model) ** 0.5)

    for L in params["layers"]:
        x = layer_forward(x, padr, padc, L, n_heads)

    out = lm_head_forward(x.reshape(B * S, d_model), params["Wout"], params["bout"])
    return out.reshape(B, S, vocab)


# ---------------------------- parameters ----------------------------

def _pack_heads(W, b, n_heads):
    # torch Linear (E_in, E_out) + bias -> per-head slabs (H, E, dh) / (H, 1, dh)
    E = W.shape[0]
    dh = W.shape[1] // n_heads
    return W.reshape(E, n_heads, dh).transpose(1, 0, 2), b.reshape(n_heads, 1, dh)


def _unpack_heads(Wh, bh):
    H, E, dh = Wh.shape
    return Wh.transpose(1, 0, 2).reshape(E, H * dh), bh.reshape(1, H * dh)


def init_params(key, d_model, dff, vocab, n_heads, n_layers, max_len=512):
    keys = iter(jax.random.split(key, 16 * n_layers + 8))

    def w(shape, scale=0.05):
        return jax.random.normal(next(keys), shape, dtype=jnp.float32) * scale

    emb = w((vocab, d_model)).at[0].set(0.0)  # padding_idx=0 row is zero

    # sinusoidal positional embeddings (Embedding.generate_sinusoids)
    half = d_model // 2
    lti = math.log(10000.0) / (half - 1)
    inv = jnp.exp(-lti * jnp.arange(half, dtype=jnp.float32))
    t = jnp.arange(max_len, dtype=jnp.float32)[:, None] * inv[None, :]
    pos = jnp.concatenate([jnp.sin(t), jnp.cos(t)], axis=1)              # (max_len, d)

    dh = d_model // n_heads
    layers = []
    for _ in range(n_layers):
        Wq, bq = _pack_heads(w((d_model, d_model)), w((1, d_model)), n_heads)
        Wk, bk = _pack_heads(w((d_model, d_model)), w((1, d_model)), n_heads)
        Wv, bv = _pack_heads(w((d_model, d_model)), w((1, d_model)), n_heads)
        Wo = w((d_model, d_model)).reshape(n_heads, dh, d_model)         # (H, dh, E)
        layers.append(dict(
            Wq=Wq, bq=bq, Wk=Wk, bk=bk, Wv=Wv, bv=bv,
            Wo=Wo, bo=w((1, d_model)),
            g1=jnp.ones((1, d_model), jnp.float32), be1=jnp.zeros((1, d_model), jnp.float32),
            W1=w((d_model, dff)), b1=w((1, dff)),
            W2=w((dff, d_model)), b2=w((1, d_model)),
            g2=jnp.ones((1, d_model), jnp.float32), be2=jnp.zeros((1, d_model), jnp.float32),
        ))
    return dict(embedding=emb, pos=pos, layers=layers,
                Wout=w((d_model, vocab)), bout=w((1, vocab)))


# ---------------------------- plain-JAX reference (for correctness) ----------------------------

def ref_forward(tokens, params, n_heads, pad_idx=0):
    B, S = tokens.shape
    d = params["embedding"].shape[1]
    pad = jnp.where(tokens == pad_idx, NEG, 0.0).astype(jnp.float32)
    causal = jnp.triu(jnp.full((S, S), NEG, dtype=jnp.float32), k=1)
    mask_bh = jnp.repeat(causal[None] + pad[:, None, :] + pad[:, :, None], n_heads, axis=0)
    x = params["embedding"][tokens] * d ** 0.5 + params["pos"][:S][None]

    def ln(y, g, b):
        m = y.mean(-1, keepdims=True)
        v = ((y - m) ** 2).mean(-1, keepdims=True)
        return (y - m) / jnp.sqrt(v + 1e-5) * g + b

    for L in params["layers"]:
        E = d
        dh = E // n_heads
        x2 = x.reshape(B * S, E)
        Wq, bq = _unpack_heads(L["Wq"], L["bq"])
        Wk, bk = _unpack_heads(L["Wk"], L["bk"])
        Wv, bv = _unpack_heads(L["Wv"], L["bv"])
        Wo = L["Wo"].reshape(E, E)
        q = x2 @ Wq + bq
        k = x2 @ Wk + bk
        v = x2 @ Wv + bv
        sp = lambda t: t.reshape(B, S, n_heads, dh).transpose(0, 2, 1, 3).reshape(B * n_heads, S, dh)
        q, k, v = sp(q), sp(k), sp(v)
        s = jnp.einsum("bqd,bkd->bqk", q, k) / dh ** 0.5 + mask_bh
        p = jnp.nan_to_num(jax.nn.softmax(s, axis=-1))
        o = jnp.einsum("bqk,bkd->bqd", p, v)
        o = o.reshape(B, n_heads, S, dh).transpose(0, 2, 1, 3).reshape(B * S, E)
        o = o @ Wo + L["bo"]
        x2 = ln(o + x2, L["g1"], L["be1"])
        f = jnp.maximum(x2 @ L["W1"] + L["b1"], 0.0) @ L["W2"] + L["b2"]
        x2 = ln(f + x2, L["g2"], L["be2"])
        x = x2.reshape(B, S, E)
    return (x.reshape(B * S, -1) @ params["Wout"] + params["bout"]).reshape(B, S, -1)


# ---------------------------- main ----------------------------

if __name__ == "__main__":
    d_model, n_heads, dff, vocab, n_layers = 32, 4, 64, 64, 2
    B, S = 2, 8

    key = jax.random.PRNGKey(0)
    kp, kt = jax.random.split(key)
    params = init_params(kp, d_model, dff, vocab, n_heads, n_layers, max_len=512)

    tokens = jax.random.randint(kt, (B, S), 0, vocab)
    tokens = tokens.at[:, -2:].set(0)  # force some pad tokens to exercise the pad mask

    fwd = jax.jit(functools.partial(language_model_forward, n_heads=n_heads))
    out = jax.block_until_ready(fwd(tokens, params))

    ref = ref_forward(tokens, params, n_heads)
    assert out.shape == (B, S, vocab), out.shape
    assert bool(jnp.all(jnp.isfinite(out)))
    err = float(jnp.max(jnp.abs(out - ref)))
    assert bool(jnp.allclose(out, ref, atol=2e-3, rtol=2e-3)), f"max abs err {err}"

    print("KERNEL_OK")
</pallas_src>

<mosaic_0001>
module attributes {stable_mosaic.version = 11 : i64} {
  func.func @embed_kernel(%arg0: i32, %arg1: memref<1x8x32xf32, #tpu.memory_space<vmem>>, %arg2: memref<1x8x32xf32, #tpu.memory_space<vmem>>, %arg3: memref<1x8x32xf32, #tpu.memory_space<vmem>>) attributes {dimension_semantics = [#tpu.dimension_semantics<parallel>], iteration_bounds = array<i64: 2>, scalar_prefetch = 0 : i64, scratch_operands = 0 : i64, tpu.core_type = #tpu.core_type<tc>, window_params = [{transform_indices = @transform_0, window_bounds = array<i64: 1, 8, 32>}, {pipeline_mode = #tpu.pipeline_mode<synchronous>, transform_indices = @transform_1, window_bounds = array<i64: 1, 8, 32>}, {transform_indices = @transform_2, window_bounds = array<i64: 1, 8, 32>}]} {
    %c0 = arith.constant 0 : index
    %c0_0 = arith.constant 0 : index
    %c0_1 = arith.constant 0 : index
    %0 = vector.load %arg1[%c0, %c0_0, %c0_1] : memref<1x8x32xf32, #tpu.memory_space<vmem>>, vector<1x8x32xf32>
    %cst = arith.constant 5.65685415 : f32
    %1 = vector.broadcast %cst : f32 to vector<1x8x32xf32>
    %2 = arith.mulf %0, %1 : vector<1x8x32xf32>
    %c0_2 = arith.constant 0 : index
    %c0_3 = arith.constant 0 : index
    %c0_4 = arith.constant 0 : index
    %3 = vector.load %arg2[%c0_2, %c0_3, %c0_4] : memref<1x8x32xf32, #tpu.memory_space<vmem>>, vector<1x8x32xf32>
    %4 = arith.addf %2, %3 : vector<1x8x32xf32>
    %c0_5 = arith.constant 0 : index
    %c0_6 = arith.constant 0 : index
    %c0_7 = arith.constant 0 : index
    %5 = vector.load %arg3[%c0_5, %c0_6, %c0_7] : memref<1x8x32xf32, #tpu.memory_space<vmem>>, vector<1x8x32xf32>
    tpu.vector_store %arg3[%c0_5, %c0_6, %c0_7], %4 {strides = array<i32>} : memref<1x8x32xf32, #tpu.memory_space<vmem>>, vector<1x8x32xf32>,
    return
  }
  func.func @transform_0(%arg0: i32) -> (i32, i32, i32) {
    %c0_i32 = arith.constant 0 : i32
    %c0_i32_0 = arith.constant 0 : i32
    %c0_i32_1 = arith.constant 0 : i32
    return %arg0, %c0_i32, %c0_i32_0 : i32, i32, i32
  }
  func.func @transform_1(%arg0: i32) -> (i32, i32, i32) {
    %c0_i32 = arith.constant 0 : i32
    %c0_i32_0 = arith.constant 0 : i32
    %c0_i32_1 = arith.constant 0 : i32
    %c0_i32_2 = arith.constant 0 : i32
    return %c0_i32, %c0_i32_0, %c0_i32_1 : i32, i32, i32
  }
  func.func @transform_2(%arg0: i32) -> (i32, i32, i32) {
    %c0_i32 = arith.constant 0 : i32
    %c0_i32_0 = arith.constant 0 : i32
    %c0_i32_1 = arith.constant 0 : i32
    return %arg0, %c0_i32, %c0_i32_0 : i32, i32, i32
  }
}

module attributes {stable_mosaic.version = 11 : i64} {
  func.func @lm_head_kernel(%arg0: i32, %arg1: i32, %arg2: memref<16x32xf32, #tpu.memory_space<vmem>>, %arg3: memref<32x64xf32, #tpu.memory_space<vmem>>, %arg4: memref<1x64xf32, #tpu.memory_space<vmem>>, %arg5: memref<16x64xf32, #tpu.memory_space<vmem>>) attributes {dimension_semantics = [#tpu.dimension_semantics<parallel>, #tpu.dimension_semantics<parallel>], iteration_bounds = array<i64: 1, 1>, scalar_prefetch = 0 : i64, scratch_operands = 0 : i64, tpu.core_type = #tpu.core_type<tc>, window_params = [{transform_indices = @transform_0, window_bounds = array<i64: 16, 32>}, {transform_indices = @transform_1, window_bounds = array<i64: 32, 64>}, {transform_indices = @transform_2, window_bounds = array<i64: 1, 64>}, {transform_indices = @transform_3, window_bounds = array<i64: 16, 64>}]} {
    %c0 = arith.constant 0 : index
    %c0_0 = arith.constant 0 : index
    %0 = vector.load %arg2[%c0, %c0_0] : memref<16x32xf32, #tpu.memory_space<vmem>>, vector<16x32xf32>
    %c0_1 = arith.constant 0 : index
    %c0_2 = arith.constant 0 : index
    %1 = vector.load %arg3[%c0_1, %c0_2] : memref<32x64xf32, #tpu.memory_space<vmem>>, vector<32x64xf32>
    %cst = arith.constant dense<0.000000e+00> : vector<16x64xf32>
    %2 = tpu.matmul %0, %1, %cst {dimension_numbers = #tpu.dot_dimension_numbers<[1], [0], [0], [1], [0, 0, 1, 1], [], []>} : vector<16x32xf32>, vector<32x64xf32>, vector<16x64xf32> -> vector<16x64xf32>
    %c0_3 = arith.constant 0 : index
    %c0_4 = arith.constant 0 : index
    %3 = vector.load %arg4[%c0_3, %c0_4] : memref<1x64xf32, #tpu.memory_space<vmem>>, vector<1x64xf32>
    %4 = vector.broadcast %3 : vector<1x64xf32> to vector<16x64xf32>
    %5 = arith.addf %2, %4 : vector<16x64xf32>
    %c0_5 = arith.constant 0 : index
    %c0_6 = arith.constant 0 : index
    %6 = vector.load %arg5[%c0_5, %c0_6] : memref<16x64xf32, #tpu.memory_space<vmem>>, vector<16x64xf32>
    tpu.vector_store %arg5[%c0_5, %c0_6], %5 {strides = array<i32>} : memref<16x64xf32, #tpu.memory_space<vmem>>, vector<16x64xf32>,
    return
  }
  func.func @transform_0(%arg0: i32, %arg1: i32) -> (i32, i32) {
    %c0_i32 = arith.constant 0 : i32
    %c0_i32_0 = arith.constant 0 : i32
    return %arg0, %c0_i32 : i32, i32
  }
  func.func @transform_1(%arg0: i32, %arg1: i32) -> (i32, i32) {
    %c0_i32 = arith.constant 0 : i32
    %c0_i32_0 = arith.constant 0 : i32
    return %c0_i32, %arg1 : i32, i32
  }
  func.func @transform_2(%arg0: i32, %arg1: i32) -> (i32, i32) {
    %c0_i32 = arith.constant 0 : i32
    %c0_i32_0 = arith.constant 0 : i32
    return %c0_i32, %arg1 : i32, i32
  }
  func.func @transform_3(%arg0: i32, %arg1: i32) -> (i32, i32) {
    %c0_i32 = arith.constant 0 : i32
    return %arg0, %arg1 : i32, i32
  }
}

module attributes {stable_mosaic.version = 11 : i64} {
  func.func @layer_kernel(%arg0: i32, %arg1: memref<1x8x32xf32, #tpu.memory_space<vmem>>, %arg2: memref<1x1x8xf32, #tpu.memory_space<vmem>>, %arg3: memref<1x8x1xf32, #tpu.memory_space<vmem>>, %arg4: memref<4x32x8xf32, #tpu.memory_space<vmem>>, %arg5: memref<4x1x8xf32, #tpu.memory_space<vmem>>, %arg6: memref<4x32x8xf32, #tpu.memory_space<vmem>>, %arg7: memref<4x1x8xf32, #tpu.memory_space<vmem>>, %arg8: memref<4x32x8xf32, #tpu.memory_space<vmem>>, %arg9: memref<4x1x8xf32, #tpu.memory_space<vmem>>, %arg10: memref<4x8x32xf32, #tpu.memory_space<vmem>>, %arg11: memref<1x32xf32, #tpu.memory_space<vmem>>, %arg12: memref<1x32xf32, #tpu.memory_space<vmem>>, %arg13: memref<1x32xf32, #tpu.memory_space<vmem>>, %arg14: memref<32x64xf32, #tpu.memory_space<vmem>>, %arg15: memref<1x64xf32, #tpu.memory_space<vmem>>, %arg16: memref<64x32xf32, #tpu.memory_space<vmem>>, %arg17: memref<1x32xf32, #tpu.memory_space<vmem>>, %arg18: memref<1x32xf32, #tpu.memory_space<vmem>>, %arg19: memref<1x32xf32, #tpu.memory_space<vmem>>, %arg20: memref<1x8x32xf32, #tpu.memory_space<vmem>>) attributes {dimension_semantics = [#tpu.dimension_semantics<parallel>], iteration_bounds = array<i64: 2>, scalar_prefetch = 0 : i64, scratch_operands = 0 : i64, tpu.core_type = #tpu.core_type<tc>, window_params = [{transform_indices = @transform_0, window_bounds = array<i64: 1, 8, 32>}, {transform_indices = @transform_1, window_bounds = array<i64: 1, 1, 8>}, {transform_indices = @transform_2, window_bounds = array<i64: 1, 8, 1>}, {pipeline_mode = #tpu.pipeline_mode<synchronous>, transform_indices = @transform_3, window_bounds = array<i64: 4, 32, 8>}, {pipeline_mode = #tpu.pipeline_mode<synchronous>, transform_indices = @transform_4, window_bounds = array<i64: 4, 1, 8>}, {pipeline_mode = #tpu.pipeline_mode<synchronous>, transform_indices = @transform_5, window_bounds = array<i64: 4, 32, 8>}, {pipeline_mode = #tpu.pipeline_mode<synchronous>, transform_indices = @transform_6, window_bounds = array<i64: 4, 1, 8>}, {pipeline_mode = #tpu.pipeline_mode<synchronous>, transform_indices = @transform_7, window_bounds = array<i64: 4, 32, 8>}, {pipeline_mode = #tpu.pipeline_mode<synchronous>, transform_indices = @transform_8, window_bounds = array<i64: 4, 1, 8>}, {pipeline_mode = #tpu.pipeline_mode<synchronous>, transform_indices = @transform_9, window_bounds = array<i64: 4, 8, 32>}, {pipeline_mode = #tpu.pipeline_mode<synchronous>, transform_indices = @transform_10, window_bounds = array<i64: 1, 32>}, {pipeline_mode = #tpu.pipeline_mode<synchronous>, transform_indices = @transform_11, window_bounds = array<i64: 1, 32>}, {pipeline_mode = #tpu.pipeline_mode<synchronous>, transform_indices = @transform_12, window_bounds = array<i64: 1, 32>}, {pipeline_mode = #tpu.pipeline_mode<synchronous>, transform_indices = @transform_13, window_bounds = array<i64: 32, 64>}, {pipeline_mode = #tpu.pipeline_mode<synchronous>, transform_indices = @transform_14, window_bounds = array<i64: 1, 64>}, {pipeline_mode = #tpu.pipeline_mode<synchronous>, transform_indices = @transform_15, window_bounds = array<i64: 64, 32>}, {pipeline_mode = #tpu.pipeline_mode<synchronous>, transform_indices = @transform_16, window_bounds = array<i64: 1, 32>}, {pipeline_mode = #tpu.pipeline_mode<synchronous>, transform_indices = @transform_17, window_bounds = array<i64: 1, 32>}, {pipeline_mode = #tpu.pipeline_mode<synchronous>, transform_indices = @transform_18, window_bounds = array<i64: 1, 32>}, {transform_indices = @transform_19, window_bounds = array<i64: 1, 8, 32>}]} {
    %c0 = arith.constant 0 : index
    %c0_0 = arith.constant 0 : index
    %c0_1 = arith.constant 0 : index
    %0 = vector.load %arg1[%c0, %c0_0, %c0_1] : memref<1x8x32xf32, #tpu.memory_space<vmem>>, vector<1x8x32xf32>
    %1 = vector.shape_cast %0 : vector<1x8x32xf32> to vector<8x32xf32>
    %2 = tpu.iota {dimensions = array<i32: 0>} : vector<8x8xi32>
    %3 = tpu.iota {dimensions = array<i32: 1>} : vector<8x8xi32>
    %4 = arith.cmpi sgt, %3, %2 : vector<8x8xi32>
    %cst = arith.constant -9.99999956E+24 : f32
    %cst_2 = arith.constant 0.000000e+00 : f32
    %5 = vector.broadcast %cst : f32 to vector<8x8xf32>
    %6 = vector.broadcast %cst_2 : f32 to vector<8x8xf32>
    %7 = arith.select %4, %5, %6 : vector<8x8xi1>, vector<8x8xf32>
    %c0_3 = arith.constant 0 : index
    %c0_4 = arith.constant 0 : index
    %c0_5 = arith.constant 0 : index
    %8 = vector.load %arg2[%c0_3, %c0_4, %c0_5] : memref<1x1x8xf32, #tpu.memory_space<vmem>>, vector<1x1x8xf32>
    %9 = vector.shape_cast %8 : vector<1x1x8xf32> to vector<1x8xf32>
    %10 = vector.broadcast %9 : vector<1x8xf32> to vector<8x8xf32>
    %11 = arith.addf %7, %10 : vector<8x8xf32>
    %c0_6 = arith.constant 0 : index
    %c0_7 = arith.constant 0 : index
    %c0_8 = arith.constant 0 : index
    %12 = vector.load %arg3[%c0_6, %c0_7, %c0_8] : memref<1x8x1xf32, #tpu.memory_space<vmem>>, vector<1x8x1xf32>
    %13 = vector.shape_cast %12 : vector<1x8x1xf32> to vector<8x1xf32>
    %14 = vector.broadcast %13 : vector<8x1xf32> to vector<8x8xf32>
    %15 = arith.addf %11, %14 : vector<8x8xf32>
    %cst_9 = arith.constant 0.000000e+00 : f32
    %16 = vector.broadcast %cst_9 : f32 to vector<8x32xf32>
    %c0_10 = arith.constant 0 : index
    %c0_11 = arith.constant 0 : index
    %17 = vector.load %arg11[%c0_10, %c0_11] : memref<1x32xf32, #tpu.memory_space<vmem>>, vector<1x32xf32>
    %18 = vector.broadcast %17 : vector<1x32xf32> to vector<8x32xf32>
    %19 = arith.addf %16, %18 : vector<8x32xf32>
    %c0_12 = arith.constant 0 : index
    %c0_13 = arith.constant 0 : index
    %c0_14 = arith.constant 0 : index
    %20 = vector.load %arg4[%c0_12, %c0_13, %c0_14] : memref<4x32x8xf32, #tpu.memory_space<vmem>>, vector<1x32x8xf32>
    %21 = vector.shape_cast %20 : vector<1x32x8xf32> to vector<32x8xf32>
    %cst_15 = arith.constant dense<0.000000e+00> : vector<8x8xf32>
    %22 = tpu.matmul %1, %21, %cst_15 {dimension_numbers = #tpu.dot_dimension_numbers<[1], [0], [0], [1], [0, 0, 1, 1], [], []>} : vector<8x32xf32>, vector<32x8xf32>, vector<8x8xf32> -> vector<8x8xf32>
    %c0_16 = arith.constant 0 : index
    %c0_17 = arith.constant 0 : index
    %c0_18 = arith.constant 0 : index
    %23 = vector.load %arg5[%c0_16, %c0_17, %c0_18] : memref<4x1x8xf32, #tpu.memory_space<vmem>>, vector<1x1x8xf32>
    %24 = vector.shape_cast %23 : vector<1x1x8xf32> to vector<1x8xf32>
    %25 = vector.broadcast %24 : vector<1x8xf32> to vector<8x8xf32>
    %26 = arith.addf %22, %25 : vector<8x8xf32>
    %cst_19 = arith.constant 0.353553385 : f32
    %27 = vector.broadcast %cst_19 : f32 to vector<8x8xf32>
    %28 = arith.mulf %26, %27 : vector<8x8xf32>
    %c0_20 = arith.constant 0 : index
    %c0_21 = arith.constant 0 : index
    %c0_22 = arith.constant 0 : index
    %29 = vector.load %arg6[%c0_20, %c0_21, %c0_22] : memref<4x32x8xf32, #tpu.memory_space<vmem>>, vector<1x32x8xf32>
    %30 = vector.shape_cast %29 : vector<1x32x8xf32> to vector<32x8xf32>
    %cst_23 = arith.constant dense<0.000000e+00> : vector<8x8xf32>
    %31 = tpu.matmul %1, %30, %cst_23 {dimension_numbers = #tpu.dot_dimension_numbers<[1], [0], [0], [1], [0, 0, 1, 1], [], []>} : vector<8x32xf32>, vector<32x8xf32>, vector<8x8xf32> -> vector<8x8xf32>
    %c0_24 = arith.constant 0 : index
    %c0_25 = arith.constant 0 : index
    %c0_26 = arith.constant 0 : index
    %32 = vector.load %arg7[%c0_24, %c0_25, %c0_26] : memref<4x1x8xf32, #tpu.memory_space<vmem>>, vector<1x1x8xf32>
    %33 = vector.shape_cast %32 : vector<1x1x8xf32> to vector<1x8xf32>
    %34 = vector.broadcast %33 : vector<1x8xf32> to vector<8x8xf32>
    %35 = arith.addf %31, %34 : vector<8x8xf32>
    %c0_27 = arith.constant 0 : index
    %c0_28 = arith.constant 0 : index
    %c0_29 = arith.constant 0 : index
    %36 = vector.load %arg8[%c0_27, %c0_28, %c0_29] : memref<4x32x8xf32, #tpu.memory_space<vmem>>, vector<1x32x8xf32>
    %37 = vector.shape_cast %36 : vector<1x32x8xf32> to vector<32x8xf32>
    %cst_30 = arith.constant dense<0.000000e+00> : vector<8x8xf32>
    %38 = tpu.matmul %1, %37, %cst_30 {dimension_numbers = #tpu.dot_dimension_numbers<[1], [0], [0], [1], [0, 0, 1, 1], [], []>} : vector<8x32xf32>, vector<32x8xf32>, vector<8x8xf32> -> vector<8x8xf32>
    %c0_31 = arith.constant 0 : index
    %c0_32 = arith.constant 0 : index
    %c0_33 = arith.constant 0 : index
    %39 = vector.load %arg9[%c0_31, %c0_32, %c0_33] : memref<4x1x8xf32, #tpu.memory_space<vmem>>, vector<1x1x8xf32>
    %40 = vector.shape_cast %39 : vector<1x1x8xf32> to vector<1x8xf32>
    %41 = vector.broadcast %40 : vector<1x8xf32> to vector<8x8xf32>
    %42 = arith.addf %38, %41 : vector<8x8xf32>
    %cst_34 = arith.constant dense<0.000000e+00> : vector<8x8xf32>
    %43 = tpu.matmul %28, %35, %cst_34 {dimension_numbers = #tpu.dot_dimension_numbers<[1], [1], [0], [0], [0, 0, 1, 0], [], []>} : vector<8x8xf32>, vector<8x8xf32>, vector<8x8xf32> -> vector<8x8xf32>
    %44 = arith.addf %43, %15 : vector<8x8xf32>
    %cst_35 = arith.constant dense<0xFF800000> : vector<8xf32>
    %45 = vector.multi_reduction <maximumf>, %44, %cst_35 [1] : vector<8x8xf32> to vector<8xf32>
    %46 = vector.shape_cast %45 : vector<8xf32> to vector<8x1xf32>
    %47 = vector.broadcast %46 : vector<8x1xf32> to vector<8x8xf32>
    %48 = arith.subf %44, %47 : vector<8x8xf32>
    %49 = math.exp %48 : vector<8x8xf32>
    %cst_36 = arith.constant dense<0.000000e+00> : vector<8xf32>
    %50 = vector.multi_reduction <add>, %49, %cst_36 [1] : vector<8x8xf32> to vector<8xf32>
    %51 = vector.shape_cast %50 : vector<8xf32> to vector<8x1xf32>
    %52 = tpu.reciprocal %51 {approx = true} : vector<8x1xf32> -> vector<8x1xf32>
    %53 = vector.broadcast %52 : vector<8x1xf32> to vector<8x8xf32>
    %54 = arith.mulf %49, %53 : vector<8x8xf32>
    %cst_37 = arith.constant dense<0.000000e+00> : vector<8x8xf32>
    %55 = tpu.matmul %54, %42, %cst_37 {dimension_numbers = #tpu.dot_dimension_numbers<[1], [0], [0], [1], [0, 0, 1, 1], [], []>} : vector<8x8xf32>, vector<8x8xf32>, vector<8x8xf32> -> vector<8x8xf32>
    %c0_38 = arith.constant 0 : index
    %c0_39 = arith.constant 0 : index
    %c0_40 = arith.constant 0 : index
    %56 = vector.load %arg10[%c0_38, %c0_39, %c0_40] : memref<4x8x32xf32, #tpu.memory_space<vmem>>, vector<1x8x32xf32>
    %57 = vector.shape_cast %56 : vector<1x8x32xf32> to vector<8x32xf32>
    %cst_41 = arith.constant dense<0.000000e+00> : vector<8x32xf32>
    %58 = tpu.matmul %55, %57, %cst_41 {dimension_numbers = #tpu.dot_dimension_numbers<[1], [0], [0], [1], [0, 0, 1, 1], [], []>} : vector<8x8xf32>, vector<8x32xf32>, vector<8x32xf32> -> vector<8x32xf32>
    %59 = arith.addf %19, %58 : vector<8x32xf32>
    %c1 = arith.constant 1 : index
    %c0_42 = arith.constant 0 : index
    %c0_43 = arith.constant 0 : index
    %60 = vector.load %arg4[%c1, %c0_42, %c0_43] : memref<4x32x8xf32, #tpu.memory_space<vmem>>, vector<1x32x8xf32>
    %61 = vector.shape_cast %60 : vector<1x32x8xf32> to vector<32x8xf32>
    %cst_44 = arith.constant dense<0.000000e+00> : vector<8x8xf32>
    %62 = tpu.matmul %1, %61, %cst_44 {dimension_numbers = #tpu.dot_dimension_numbers<[1], [0], [0], [1], [0, 0, 1, 1], [], []>} : vector<8x32xf32>, vector<32x8xf32>, vector<8x8xf32> -> vector<8x8xf32>
    %c1_45 = arith.constant 1 : index
    %c0_46 = arith.constant 0 : index
    %c0_47 = arith.constant 0 : index
    %63 = vector.load %arg5[%c1_45, %c0_46, %c0_47] : memref<4x1x8xf32, #tpu.memory_space<vmem>>, vector<1x1x8xf32>
    %64 = vector.shape_cast %63 : vector<1x1x8xf32> to vector<1x8xf32>
    %65 = vector.broadcast %64 : vector<1x8xf32> to vector<8x8xf32>
    %66 = arith.addf %62, %65 : vector<8x8xf32>
    %cst_48 = arith.constant 0.353553385 : f32
    %67 = vector.broadcast %cst_48 : f32 to vector<8x8xf32>
    %68 = arith.mulf %66, %67 : vector<8x8xf32>
    %c1_49 = arith.constant 1 : index
    %c0_50 = arith.constant 0 : index
    %c0_51 = arith.constant 0 : index
    %69 = vector.load %arg6[%c1_49, %c0_50, %c0_51] : memref<4x32x8xf32, #tpu.memory_space<vmem>>, vector<1x32x8xf32>
    %70 = vector.shape_cast %69 : vector<1x32x8xf32> to vector<32x8xf32>
    %cst_52 = arith.constant dense<0.000000e+00> : vector<8x8xf32>
    %71 = tpu.matmul %1, %70, %cst_52 {dimension_numbers = #tpu.dot_dimension_numbers<[1], [0], [0], [1], [0, 0, 1, 1], [], []>} : vector<8x32xf32>, vector<32x8xf32>, vector<8x8xf32> -> vector<8x8xf32>
    %c1_53 = arith.constant 1 : index
    %c0_54 = arith.constant 0 : index
    %c0_55 = arith.constant 0 : index
    %72 = vector.load %arg7[%c1_53, %c0_54, %c0_55] : memref<4x1x8xf32, #tpu.memory_space<vmem>>, vector<1x1x8xf32>
    %73 = vector.shape_cast %72 : vector<1x1x8xf32> to vector<1x8xf32>
    %74 = vector.broadcast %73 : vector<1x8xf32> to vector<8x8xf32>
    %75 = arith.addf %71, %74 : vector<8x8xf32>
    %c1_56 = arith.constant 1 : index
    %c0_57 = arith.constant 0 : index
    %c0_58 = arith.constant 0 : index
    %76 = vector.load %arg8[%c1_56, %c0_57, %c0_58] : memref<4x32x8xf32, #tpu.memory_space<vmem>>, vector<1x32x8xf32>
    %77 = vector.shape_cast %76 : vector<1x32x8xf32> to vector<32x8xf32>
    %cst_59 = arith.constant dense<0.000000e+00> : vector<8x8xf32>
    %78 = tpu.matmul %1, %77, %cst_59 {dimension_numbers = #tpu.dot_dimension_numbers<[1], [0], [0], [1], [0, 0, 1, 1], [], []>} : vector<8x32xf32>, vector<32x8xf32>, vector<8x8xf32> -> vector<8x8xf32>
    %c1_60 = arith.constant 1 : index
    %c0_61 = arith.constant 0 : index
    %c0_62 = arith.constant 0 : index
    %79 = vector.load %arg9[%c1_60, %c0_61, %c0_62] : memref<4x1x8xf32, #tpu.memory_space<vmem>>, vector<1x1x8xf32>
    %80 = vector.shape_cast %79 : vector<1x1x8xf32> to vector<1x8xf32>
    %81 = vector.broadcast %80 : vector<1x8xf32> to vector<8x8xf32>
    %82 = arith.addf %78, %81 : vector<8x8xf32>
    %cst_63 = arith.constant dense<0.000000e+00> : vector<8x8xf32>
    %83 = tpu.matmul %68, %75, %cst_63 {dimension_numbers = #tpu.dot_dimension_numbers<[1], [1], [0], [0], [0, 0, 1, 0], [], []>} : vector<8x8xf32>, vector<8x8xf32>, vector<8x8xf32> -> vector<8x8xf32>
    %84 = arith.addf %83, %15 : vector<8x8xf32>
    %cst_64 = arith.constant dense<0xFF800000> : vector<8xf32>
    %85 = vector.multi_reduction <maximumf>, %84, %cst_64 [1] : vector<8x8xf32> to vector<8xf32>
    %86 = vector.shape_cast %85 : vector<8xf32> to vector<8x1xf32>
    %87 = vector.broadcast %86 : vector<8x1xf32> to vector<8x8xf32>
    %88 = arith.subf %84, %87 : vector<8x8xf32>
    %89 = math.exp %88 : vector<8x8xf32>
    %cst_65 = arith.constant dense<0.000000e+00> : vector<8xf32>
    %90 = vector.multi_reduction <add>, %89, %cst_65 [1] : vector<8x8xf32> to vector<8xf32>
    %91 = vector.shape_cast %90 : vector<8xf32> to vector<8x1xf32>
    %92 = tpu.reciprocal %91 {approx = true} : vector<8x1xf32> -> vector<8x1xf32>
    %93 = vector.broadcast %92 : vector<8x1xf32> to vector<8x8xf32>
    %94 = arith.mulf %89, %93 : vector<8x8xf32>
    %cst_66 = arith.constant dense<0.000000e+00> : vector<8x8xf32>
    %95 = tpu.matmul %94, %82, %cst_66 {dimension_numbers = #tpu.dot_dimension_numbers<[1], [0], [0], [1], [0, 0, 1, 1], [], []>} : vector<8x8xf32>, vector<8x8xf32>, vector<8x8xf32> -> vector<8x8xf32>
    %c1_67 = arith.constant 1 : index
    %c0_68 = arith.constant 0 : index
    %c0_69 = arith.constant 0 : index
    %96 = vector.load %arg10[%c1_67, %c0_68, %c0_69] : memref<4x8x32xf32, #tpu.memory_space<vmem>>, vector<1x8x32xf32>
    %97 = vector.shape_cast %96 : vector<1x8x32xf32> to vector<8x32xf32>
    %cst_70 = arith.constant dense<0.000000e+00> : vector<8x32xf32>
    %98 = tpu.matmul %95, %97, %cst_70 {dimension_numbers = #tpu.dot_dimension_numbers<[1], [0], [0], [1], [0, 0, 1, 1], [], []>} : vector<8x8xf32>, vector<8x32xf32>, vector<8x32xf32> -> vector<8x32xf32>
    %99 = arith.addf %59, %98 : vector<8x32xf32>
    %c2 = arith.constant 2 : index
    %c0_71 = arith.constant 0 : index
    %c0_72 = arith.constant 0 : index
    %100 = vector.load %arg4[%c2, %c0_71, %c0_72] : memref<4x32x8xf32, #tpu.memory_space<vmem>>, vector<1x32x8xf32>
    %101 = vector.shape_cast %100 : vector<1x32x8xf32> to vector<32x8xf32>
    %cst_73 = arith.constant dense<0.000000e+00> : vector<8x8xf32>
    %102 = tpu.matmul %1, %101, %cst_73 {dimension_numbers = #tpu.dot_dimension_numbers<[1], [0], [0], [1], [0, 0, 1, 1], [], []>} : vector<8x32xf32>, vector<32x8xf32>, vector<8x8xf32> -> vector<8x8xf32>
    %c2_74 = arith.constant 2 : index
    %c0_75 = arith.constant 0 : index
    %c0_76 = arith.constant 0 : index
    %103 = vector.load %arg5[%c2_74, %c0_75, %c0_76] : memref<4x1x8xf32, #tpu.memory_space<vmem>>, vector<1x1x8xf32>
    %104 = vector.shape_cast %103 : vector<1x1x8xf32> to vector<1x8xf32>
    %105 = vector.broadcast %104 : vector<1x8xf32> to vector<8x8xf32>
    %106 = arith.addf %102, %105 : vector<8x8xf32>
    %cst_77 = arith.constant 0.353553385 : f32
    %107 = vector.broadcast %cst_77 : f32 to vector<8x8xf32>
    %108 = arith.mulf %106, %107 : vector<8x8xf32>
    %c2_78 = arith.constant 2 : index
    %c0_79 = arith.constant 0 : index
    %c0_80 = arith.constant 0 : index
    %109 = vector.load %arg6[%c2_78, %c0_79, %c0_80] : memref<4x32x8xf32, #tpu.memory_space<vmem>>, vector<1x32x8xf32>
    %110 = vector.shape_cast %109 : vector<1x32x8xf32> to vector<32x8xf32>
    %cst_81 = arith.constant dense<0.000000e+00> : vector<8x8xf32>
    %111 = tpu.matmul %1, %110, %cst_81 {dimension_numbers = #tpu.dot_dimension_numbers<[1], [0], [0], [1], [0, 0, 1, 1], [], []>} : vector<8x32xf32>, vector<32x8xf32>, vector<8x8xf32> -> vector<8x8xf32>
    %c2_82 = arith.constant 2 : index
    %c0_83 = arith.constant 0 : index
    %c0_84 = arith.constant 0 : index
    %112 = vector.load %arg7[%c2_82, %c0_83, %c0_84] : memref<4x1x8xf32, #tpu.memory_space<vmem>>, vector<1x1x8xf32>
    %113 = vector.shape_cast %112 : vector<1x1x8xf32> to vector<1x8xf32>
    %114 = vector.broadcast %113 : vector<1x8xf32> to vector<8x8xf32>
    %115 = arith.addf %111, %114 : vector<8x8xf32>
    %c2_85 = arith.constant 2 : index
    %c0_86 = arith.constant 0 : index
    %c0_87 = arith.constant 0 : index
    %116 = vector.load %arg8[%c2_85, %c0_86, %c0_87] : memref<4x32x8xf32, #tpu.memory_space<vmem>>, vector<1x32x8xf32>
    %117 = vector.shape_cast %116 : vector<1x32x8xf32> to vector<32x8xf32>
    %cst_88 = arith.constant dense<0.000000e+00> : vector<8x8xf32>
    %118 = tpu.matmul %1, %117, %cst_88 {dimension_numbers = #tpu.dot_dimension_numbers<[1], [0], [0], [1], [0, 0, 1, 1], [], []>} : vector<8x32xf32>, vector<32x8xf32>, vector<8x8xf32> -> vector<8x8xf32>
    %c2_89 = arith.constant 2 : index
    %c0_90 = arith.constant 0 : index
    %c0_91 = arith.constant 0 : index
    %119 = vector.load %arg9[%c2_89, %c0_90, %c0_91] : memref<4x1x8xf32, #tpu.memory_space<vmem>>, vector<1x1x8xf32>
    %120 = vector.shape_cast %119 : vector<1x1x8xf32> to vector<1x8xf32>
    %121 = vector.broadcast %120 : vector<1x8xf32> to vector<8x8xf32>
    %122 = arith.addf %118, %121 : vector<8x8xf32>
    %cst_92 = arith.constant dense<0.000000e+00> : vector<8x8xf32>
    %123 = tpu.matmul %108, %115, %cst_92 {dimension_numbers = #tpu.dot_dimension_numbers<[1], [1], [0], [0], [0, 0, 1, 0], [], []>} : vector<8x8xf32>, vector<8x8xf32>, vector<8x8xf32> -> vector<8x8xf32>
    %124 = arith.addf %123, %15 : vector<8x8xf32>
    %cst_93 = arith.constant dense<0xFF800000> : vector<8xf32>
    %125 = vector.multi_reduction <maximumf>, %124, %cst_93 [1] : vector<8x8xf32> to vector<8xf32>
    %126 = vector.shape_cast %125 : vector<8xf32> to vector<8x1xf32>
    %127 = vector.broadcast %126 : vector<8x1xf32> to vector<8x8xf32>
    %128 = arith.subf %124, %127 : vector<8x8xf32>
    %129 = math.exp %128 : vector<8x8xf32>
    %cst_94 = arith.constant dense<0.000000e+00> : vector<8xf32>
    %130 = vector.multi_reduction <add>, %129, %cst_94 [1] : vector<8x8xf32> to vector<8xf32>
    %131 = vector.shape_cast %130 : vector<8xf32> to vector<8x1xf32>
    %132 = tpu.reciprocal %131 {approx = true} : vector<8x1xf32> -> vector<8x1xf32>
    %133 = vector.broadcast %132 : vector<8x1xf32> to vector<8x8xf32>
    %134 = arith.mulf %129, %133 : vector<8x8xf32>
    %cst_95 = arith.constant dense<0.000000e+00> : vector<8x8xf32>
    %135 = tpu.matmul %134, %122, %cst_95 {dimension_numbers = #tpu.dot_dimension_numbers<[1], [0], [0], [1], [0, 0, 1, 1], [], []>} : vector<8x8xf32>, vector<8x8xf32>, vector<8x8xf32> -> vector<8x8xf32>
    %c2_96 = arith.constant 2 : index
    %c0_97 = arith.constant 0 : index
    %c0_98 = arith.constant 0 : index
    %136 = vector.load %arg10[%c2_96, %c0_97, %c0_98] : memref<4x8x32xf32, #tpu.memory_space<vmem>>, vector<1x8x32xf32>
    %137 = vector.shape_cast %136 : vector<1x8x32xf32> to vector<8x32xf32>
    %cst_99 = arith.constant dense<0.000000e+00> : vector<8x32xf32>
    %138 = tpu.matmul %135, %137, %cst_99 {dimension_numbers = #tpu.dot_dimension_numbers<[1], [0], [0], [1], [0, 0, 1, 1], [], []>} : vector<8x8xf32>, vector<8x32xf32>, vector<8x32xf32> -> vector<8x32xf32>
    %139 = arith.addf %99, %138 : vector<8x32xf32>
    %c3 = arith.constant 3 : index
    %c0_100 = arith.constant 0 : index
    %c0_101 = arith.constant 0 : index
    %140 = vector.load %arg4[%c3, %c0_100, %c0_101] : memref<4x32x8xf32, #tpu.memory_space<vmem>>, vector<1x32x8xf32>
    %141 = vector.shape_cast %140 : vector<1x32x8xf32> to vector<32x8xf32>
    %cst_102 = arith.constant dense<0.000000e+00> : vector<8x8xf32>
    %142 = tpu.matmul %1, %141, %cst_102 {dimension_numbers = #tpu.dot_dimension_numbers<[1], [0], [0], [1], [0, 0, 1, 1], [], []>} : vector<8x32xf32>, vector<32x8xf32>, vector<8x8xf32> -> vector<8x8xf32>
    %c3_103 = arith.constant 3 : index
    %c0_104 = arith.constant 0 : index
    %c0_105 = arith.constant 0 : index
    %143 = vector.load %arg5[%c3_103, %c0_104, %c0_105] : memref<4x1x8xf32, #tpu.memory_space<vmem>>, vector<1x1x8xf32>
    %144 = vector.shape_cast %143 : vector<1x1x8xf32> to vector<1x8xf32>
    %145 = vector.broadcast %144 : vector<1x8xf32> to vector<8x8xf32>
    %146 = arith.addf %142, %145 : vector<8x8xf32>
    %cst_106 = arith.constant 0.353553385 : f32
    %147 = vector.broadcast %cst_106 : f32 to vector<8x8xf32>
    %148 = arith.mulf %146, %147 : vector<8x8xf32>
    %c3_107 = arith.constant 3 : index
    %c0_108 = arith.constant 0 : index
    %c0_109 = arith.constant 0 : index
    %149 = vector.load %arg6[%c3_107, %c0_108, %c0_109] : memref<4x32x8xf32, #tpu.memory_space<vmem>>, vector<1x32x8xf32>
    %150 = vector.shape_cast %149 : vector<1x32x8xf32> to vector<32x8xf32>
    %cst_110 = arith.constant dense<0.000000e+00> : vector<8x8xf32>
    %151 = tpu.matmul %1, %150, %cst_110 {dimension_numbers = #tpu.dot_dimension_numbers<[1], [0], [0], [1], [0, 0, 1, 1], [], []>} : vector<8x32xf32>, vector<32x8xf32>, vector<8x8xf32> -> vector<8x8xf32>
    %c3_111 = arith.constant 3 : index
    %c0_112 = arith.constant 0 : index
    %c0_113 = arith.constant 0 : index
    %152 = vector.load %arg7[%c3_111, %c0_112, %c0_113] : memref<4x1x8xf32, #tpu.memory_space<vmem>>, vector<1x1x8xf32>
    %153 = vector.shape_cast %152 : vector<1x1x8xf32> to vector<1x8xf32>
    %154 = vector.broadcast %153 : vector<1x8xf32> to vector<8x8xf32>
    %155 = arith.addf %151, %154 : vector<8x8xf32>
    %c3_114 = arith.constant 3 : index
    %c0_115 = arith.constant 0 : index
    %c0_116 = arith.constant 0 : index
    %156 = vector.load %arg8[%c3_114, %c0_115, %c0_116] : memref<4x32x8xf32, #tpu.memory_space<vmem>>, vector<1x32x8xf32>
    %157 = vector.shape_cast %156 : vector<1x32x8xf32> to vector<32x8xf32>
    %cst_117 = arith.constant dense<0.000000e+00> : vector<8x8xf32>
    %158 = tpu.matmul %1, %157, %cst_117 {dimension_numbers = #tpu.dot_dimension_numbers<[1], [0], [0], [1], [0, 0, 1, 1], [], []>} : vector<8x32xf32>, vector<32x8xf32>, vector<8x8xf32> -> vector<8x8xf32>
    %c3_118 = arith.constant 3 : index
    %c0_119 = arith.constant 0 : index
    %c0_120 = arith.constant 0 : index
    %159 = vector.load %arg9[%c3_118, %c0_119, %c0_120] : memref<4x1x8xf32, #tpu.memory_space<vmem>>, vector<1x1x8xf32>
    %160 = vector.shape_cast %159 : vector<1x1x8xf32> to vector<1x8xf32>
    %161 = vector.broadcast %160 : vector<1x8xf32> to vector<8x8xf32>
    %162 = arith.addf %158, %161 : vector<8x8xf32>
    %cst_121 = arith.constant dense<0.000000e+00> : vector<8x8xf32>
    %163 = tpu.matmul %148, %155, %cst_121 {dimension_numbers = #tpu.dot_dimension_numbers<[1], [1], [0], [0], [0, 0, 1, 0], [], []>} : vector<8x8xf32>, vector<8x8xf32>, vector<8x8xf32> -> vector<8x8xf32>
    %164 = arith.addf %163, %15 : vector<8x8xf32>
    %cst_122 = arith.constant dense<0xFF800000> : vector<8xf32>
    %165 = vector.multi_reduction <maximumf>, %164, %cst_122 [1] : vector<8x8xf32> to vector<8xf32>
    %166 = vector.shape_cast %165 : vector<8xf32> to vector<8x1xf32>
    %167 = vector.broadcast %166 : vector<8x1xf32> to vector<8x8xf32>
    %168 = arith.subf %164, %167 : vector<8x8xf32>
    %169 = math.exp %168 : vector<8x8xf32>
    %cst_123 = arith.constant dense<0.000000e+00> : vector<8xf32>
    %170 = vector.multi_reduction <add>, %169, %cst_123 [1] : vector<8x8xf32> to vector<8xf32>
    %171 = vector.shape_cast %170 : vector<8xf32> to vector<8x1xf32>
    %172 = tpu.reciprocal %171 {approx = true} : vector<8x1xf32> -> vector<8x1xf32>
    %173 = vector.broadcast %172 : vector<8x1xf32> to vector<8x8xf32>
    %174 = arith.mulf %169, %173 : vector<8x8xf32>
    %cst_124 = arith.constant dense<0.000000e+00> : vector<8x8xf32>
    %175 = tpu.matmul %174, %162, %cst_124 {dimension_numbers = #tpu.dot_dimension_numbers<[1], [0], [0], [1], [0, 0, 1, 1], [], []>} : vector<8x8xf32>, vector<8x8xf32>, vector<8x8xf32> -> vector<8x8xf32>
    %c3_125 = arith.constant 3 : index
    %c0_126 = arith.constant 0 : index
    %c0_127 = arith.constant 0 : index
    %176 = vector.load %arg10[%c3_125, %c0_126, %c0_127] : memref<4x8x32xf32, #tpu.memory_space<vmem>>, vector<1x8x32xf32>
    %177 = vector.shape_cast %176 : vector<1x8x32xf32> to vector<8x32xf32>
    %cst_128 = arith.constant dense<0.000000e+00> : vector<8x32xf32>
    %178 = tpu.matmul %175, %177, %cst_128 {dimension_numbers = #tpu.dot_dimension_numbers<[1], [0], [0], [1], [0, 0, 1, 1], [], []>} : vector<8x8xf32>, vector<8x32xf32>, vector<8x32xf32> -> vector<8x32xf32>
    %179 = arith.addf %139, %178 : vector<8x32xf32>
    %180 = arith.addf %179, %1 : vector<8x32xf32>
    %c0_129 = arith.constant 0 : index
    %c0_130 = arith.constant 0 : index
    %181 = vector.load %arg12[%c0_129, %c0_130] : memref<1x32xf32, #tpu.memory_space<vmem>>, vector<1x32xf32>
    %c0_131 = arith.constant 0 : index
    %c0_132 = arith.constant 0 : index
    %182 = vector.load %arg13[%c0_131, %c0_132] : memref<1x32xf32, #tpu.memory_space<vmem>>, vector<1x32xf32>
    %cst_133 = arith.constant dense<0.000000e+00> : vector<8xf32>
    %183 = vector.multi_reduction <add>, %180, %cst_133 [1] : vector<8x32xf32> to vector<8xf32>
    %184 = vector.shape_cast %183 : vector<8xf32> to vector<8x1xf32>
    %cst_134 = arith.constant 3.200000e+01 : f32
    %185 = vector.broadcast %cst_134 : f32 to vector<8x1xf32>
    %186 = arith.divf %184, %185 : vector<8x1xf32>
    %187 = vector.broadcast %186 : vector<8x1xf32> to vector<8x32xf32>
    %188 = arith.subf %180, %187 : vector<8x32xf32>
    %189 = arith.mulf %188, %188 : vector<8x32xf32>
    %cst_135 = arith.constant dense<0.000000e+00> : vector<8xf32>
    %190 = vector.multi_reduction <add>, %189, %cst_135 [1] : vector<8x32xf32> to vector<8xf32>
    %191 = vector.shape_cast %190 : vector<8xf32> to vector<8x1xf32>
    %cst_136 = arith.constant 3.200000e+01 : f32
    %192 = vector.broadcast %cst_136 : f32 to vector<8x1xf32>
    %193 = arith.divf %191, %192 : vector<8x1xf32>
    %194 = vector.broadcast %186 : vector<8x1xf32> to vector<8x32xf32>
    %195 = arith.subf %180, %194 : vector<8x32xf32>
    %cst_137 = arith.constant 9.99999974E-6 : f32
    %196 = vector.broadcast %cst_137 : f32 to vector<8x1xf32>
    %197 = arith.addf %193, %196 : vector<8x1xf32>
    %198 = math.rsqrt %197 : vector<8x1xf32>
    %199 = vector.broadcast %198 : vector<8x1xf32> to vector<8x32xf32>
    %200 = arith.mulf %195, %199 : vector<8x32xf32>
    %201 = vector.broadcast %181 : vector<1x32xf32> to vector<8x32xf32>
    %202 = arith.mulf %200, %201 : vector<8x32xf32>
    %203 = vector.broadcast %182 : vector<1x32xf32> to vector<8x32xf32>
    %204 = arith.addf %202, %203 : vector<8x32xf32>
    %c0_138 = arith.constant 0 : index
    %c0_139 = arith.constant 0 : index
    %205 = vector.load %arg14[%c0_138, %c0_139] : memref<32x64xf32, #tpu.memory_space<vmem>>, vector<32x64xf32>
    %cst_140 = arith.constant dense<0.000000e+00> : vector<8x64xf32>
    %206 = tpu.matmul %204, %205, %cst_140 {dimension_numbers = #tpu.dot_dimension_numbers<[1], [0], [0], [1], [0, 0, 1, 1], [], []>} : vector<8x32xf32>, vector<32x64xf32>, vector<8x64xf32> -> vector<8x64xf32>
    %c0_141 = arith.constant 0 : index
    %c0_142 = arith.constant 0 : index
    %207 = vector.load %arg15[%c0_141, %c0_142] : memref<1x64xf32, #tpu.memory_space<vmem>>, vector<1x64xf32>
    %208 = vector.broadcast %207 : vector<1x64xf32> to vector<8x64xf32>
    %209 = arith.addf %206, %208 : vector<8x64xf32>
    %cst_143 = arith.constant 0.000000e+00 : f32
    %210 = vector.broadcast %cst_143 : f32 to vector<8x64xf32>
    %211 = arith.maximumf %209, %210 : vector<8x64xf32>
    %c0_144 = arith.constant 0 : index
    %c0_145 = arith.constant 0 : index
    %212 = vector.load %arg16[%c0_144, %c0_145] : memref<64x32xf32, #tpu.memory_space<vmem>>, vector<64x32xf32>
    %cst_146 = arith.constant dense<0.000000e+00> : vector<8x32xf32>
    %213 = tpu.matmul %211, %212, %cst_146 {dimension_numbers = #tpu.dot_dimension_numbers<[1], [0], [0], [1], [0, 0, 1, 1], [], []>} : vector<8x64xf32>, vector<64x32xf32>, vector<8x32xf32> -> vector<8x32xf32>
    %c0_147 = arith.constant 0 : index
    %c0_148 = arith.constant 0 : index
    %214 = vector.load %arg17[%c0_147, %c0_148] : memref<1x32xf32, #tpu.memory_space<vmem>>, vector<1x32xf32>
    %215 = vector.broadcast %214 : vector<1x32xf32> to vector<8x32xf32>
    %216 = arith.addf %213, %215 : vector<8x32xf32>
    %217 = arith.addf %216, %204 : vector<8x32xf32>
    %c0_149 = arith.constant 0 : index
    %c0_150 = arith.constant 0 : index
    %218 = vector.load %arg18[%c0_149, %c0_150] : memref<1x32xf32, #tpu.memory_space<vmem>>, vector<1x32xf32>
    %c0_151 = arith.constant 0 : index
    %c0_152 = arith.constant 0 : index
    %219 = vector.load %arg19[%c0_151, %c0_152] : memref<1x32xf32, #tpu.memory_space<vmem>>, vector<1x32xf32>
    %cst_153 = arith.constant dense<0.000000e+00> : vector<8xf32>
    %220 = vector.multi_reduction <add>, %217, %cst_153 [1] : vector<8x32xf32> to vector<8xf32>
    %221 = vector.shape_cast %220 : vector<8xf32> to vector<8x1xf32>
    %cst_154 = arith.constant 3.200000e+01 : f32
    %222 = vector.broadcast %cst_154 : f32 to vector<8x1xf32>
    %223 = arith.divf %221, %222 : vector<8x1xf32>
    %224 = vector.broadcast %223 : vector<8x1xf32> to vector<8x32xf32>
    %225 = arith.subf %217, %224 : vector<8x32xf32>
    %226 = arith.mulf %225, %225 : vector<8x32xf32>
    %cst_155 = arith.constant dense<0.000000e+00> : vector<8xf32>
    %227 = vector.multi_reduction <add>, %226, %cst_155 [1] : vector<8x32xf32> to vector<8xf32>
    %228 = vector.shape_cast %227 : vector<8xf32> to vector<8x1xf32>
    %cst_156 = arith.constant 3.200000e+01 : f32
    %229 = vector.broadcast %cst_156 : f32 to vector<8x1xf32>
    %230 = arith.divf %228, %229 : vector<8x1xf32>
    %231 = vector.broadcast %223 : vector<8x1xf32> to vector<8x32xf32>
    %232 = arith.subf %217, %231 : vector<8x32xf32>
    %cst_157 = arith.constant 9.99999974E-6 : f32
    %233 = vector.broadcast %cst_157 : f32 to vector<8x1xf32>
    %234 = arith.addf %230, %233 : vector<8x1xf32>
    %235 = math.rsqrt %234 : vector<8x1xf32>
    %236 = vector.broadcast %235 : vector<8x1xf32> to vector<8x32xf32>
    %237 = arith.mulf %232, %236 : vector<8x32xf32>
    %238 = vector.broadcast %218 : vector<1x32xf32> to vector<8x32xf32>
    %239 = arith.mulf %237, %238 : vector<8x32xf32>
    %240 = vector.broadcast %219 : vector<1x32xf32> to vector<8x32xf32>
    %241 = arith.addf %239, %240 : vector<8x32xf32>
    %c0_158 = arith.constant 0 : index
    %c0_159 = arith.constant 0 : index
    %c0_160 = arith.constant 0 : index
    %242 = vector.load %arg20[%c0_158, %c0_159, %c0_160] : memref<1x8x32xf32, #tpu.memory_space<vmem>>, vector<1x8x32xf32>
    %243 = vector.shape_cast %242 : vector<1x8x32xf32> to vector<8x32xf32>
    %244 = vector.shape_cast %241 : vector<8x32xf32> to vector<1x8x32xf32>
    tpu.vector_store %arg20[%c0_158, %c0_159, %c0_160], %244 {strides = array<i32>} : memref<1x8x32xf32, #tpu.memory_space<vmem>>, vector<1x8x32xf32>,
    return
  }
  func.func @transform_0(%arg0: i32) -> (i32, i32, i32) {
    %c0_i32 = arith.constant 0 : i32
    %c0_i32_0 = arith.constant 0 : i32
    %c0_i32_1 = arith.constant 0 : i32
    return %arg0, %c0_i32, %c0_i32_0 : i32, i32, i32
  }
  func.func @transform_1(%arg0: i32) -> (i32, i32, i32) {
    %c0_i32 = arith.constant 0 : i32
    %c0_i32_0 = arith.constant 0 : i32
    %c0_i32_1 = arith.constant 0 : i32
    return %arg0, %c0_i32, %c0_i32_0 : i32, i32, i32
  }
  func.func @transform_2(%arg0: i32) -> (i32, i32, i32) {
    %c0_i32 = arith.constant 0 : i32
    %c0_i32_0 = arith.constant 0 : i32
    %c0_i32_1 = arith.constant 0 : i32
    return %arg0, %c0_i32, %c0_i32_0 : i32, i32, i32
  }
  func.func @transform_3(%arg0: i32) -> (i32, i32, i32) {
    %c0_i32 = arith.constant 0 : i32
    %c0_i32_0 = arith.constant 0 : i32
    %c0_i32_1 = arith.constant 0 : i32
    %c0_i32_2 = arith.constant 0 : i32
    return %c0_i32, %c0_i32_0, %c0_i32_1 : i32, i32, i32
  }
  func.func @transform_4(%arg0: i32) -> (i32, i32, i32) {
    %c0_i32 = arith.constant 0 : i32
    %c0_i32_0 = arith.constant 0 : i32
    %c0_i32_1 = arith.constant 0 : i32
    %c0_i32_2 = arith.constant 0 : i32
    return %c0_i32, %c0_i32_0, %c0_i32_1 : i32, i32, i32
  }
  func.func @transform_5(%arg0: i32) -> (i32, i32, i32) {
    %c0_i32 = arith.constant 0 : i32
    %c0_i32_0 = arith.constant 0 : i32
    %c0_i32_1 = arith.constant 0 : i32
    %c0_i32_2 = arith.constant 0 : i32
    return %c0_i32, %c0_i32_0, %c0_i32_1 : i32, i32, i32
  }
  func.func @transform_6(%arg0: i32) -> (i32, i32, i32) {
    %c0_i32 = arith.constant 0 : i32
    %c0_i32_0 = arith.constant 0 : i32
    %c0_i32_1 = arith.constant 0 : i32
    %c0_i32_2 = arith.constant 0 : i32
    return %c0_i32, %c0_i32_0, %c0_i32_1 : i32, i32, i32
  }
  func.func @transform_7(%arg0: i32) -> (i32, i32, i32) {
    %c0_i32 = arith.constant 0 : i32
    %c0_i32_0 = arith.constant 0 : i32
    %c0_i32_1 = arith.constant 0 : i32
    %c0_i32_2 = arith.constant 0 : i32
    return %c0_i32, %c0_i32_0, %c0_i32_1 : i32, i32, i32
  }
  func.func @transform_8(%arg0: i32) -> (i32, i32, i32) {
    %c0_i32 = arith.constant 0 : i32
    %c0_i32_0 = arith.constant 0 : i32
    %c0_i32_1 = arith.constant 0 : i32
    %c0_i32_2 = arith.constant 0 : i32
    return %c0_i32, %c0_i32_0, %c0_i32_1 : i32, i32, i32
  }
  func.func @transform_9(%arg0: i32) -> (i32, i32, i32) {
    %c0_i32 = arith.constant 0 : i32
    %c0_i32_0 = arith.constant 0 : i32
    %c0_i32_1 = arith.constant 0 : i32
    %c0_i32_2 = arith.constant 0 : i32
    return %c0_i32, %c0_i32_0, %c0_i32_1 : i32, i32, i32
  }
  func.func @transform_10(%arg0: i32) -> (i32, i32) {
    %c0_i32 = arith.constant 0 : i32
    %c0_i32_0 = arith.constant 0 : i32
    %c0_i32_1 = arith.constant 0 : i32
    return %c0_i32, %c0_i32_0 : i32, i32
  }
  func.func @transform_11(%arg0: i32) -> (i32, i32) {
    %c0_i32 = arith.constant 0 : i32
    %c0_i32_0 = arith.constant 0 : i32
    %c0_i32_1 = arith.constant 0 : i32
    return %c0_i32, %c0_i32_0 : i32, i32
  }
  func.func @transform_12(%arg0: i32) -> (i32, i32) {
    %c0_i32 = arith.constant 0 : i32
    %c0_i32_0 = arith.constant 0 : i32
    %c0_i32_1 = arith.constant 0 : i32
    return %c0_i32, %c0_i32_0 : i32, i32
  }
  func.func @transform_13(%arg0: i32) -> (i32, i32) {
    %c0_i32 = arith.constant 0 : i32
    %c0_i32_0 = arith.constant 0 : i32
    %c0_i32_1 = arith.constant 0 : i32
    return %c0_i32, %c0_i32_0 : i32, i32
  }
  func.func @transform_14(%arg0: i32) -> (i32, i32) {
    %c0_i32 = arith.constant 0 : i32
    %c0_i32_0 = arith.constant 0 : i32
    %c0_i32_1 = arith.constant 0 : i32
    return %c0_i32, %c0_i32_0 : i32, i32
  }
  func.func @transform_15(%arg0: i32) -> (i32, i32) {
    %c0_i32 = arith.constant 0 : i32
    %c0_i32_0 = arith.constant 0 : i32
    %c0_i32_1 = arith.constant 0 : i32
    return %c0_i32, %c0_i32_0 : i32, i32
  }
  func.func @transform_16(%arg0: i32) -> (i32, i32) {
    %c0_i32 = arith.constant 0 : i32
    %c0_i32_0 = arith.constant 0 : i32
    %c0_i32_1 = arith.constant 0 : i32
    return %c0_i32, %c0_i32_0 : i32, i32
  }
  func.func @transform_17(%arg0: i32) -> (i32, i32) {
    %c0_i32 = arith.constant 0 : i32
    %c0_i32_0 = arith.constant 0 : i32
    %c0_i32_1 = arith.constant 0 : i32
    return %c0_i32, %c0_i32_0 : i32, i32
  }
  func.func @transform_18(%arg0: i32) -> (i32, i32) {
    %c0_i32 = arith.constant 0 : i32
    %c0_i32_0 = arith.constant 0 : i32
    %c0_i32_1 = arith.constant 0 : i32
    return %c0_i32, %c0_i32_0 : i32, i32
  }
  func.func @transform_19(%arg0: i32) -> (i32, i32, i32) {
    %c0_i32 = arith.constant 0 : i32
    %c0_i32_0 = arith.constant 0 : i32
    %c0_i32_1 = arith.constant 0 : i32
    return %arg0, %c0_i32, %c0_i32_0 : i32, i32, i32
  }
}

</mosaic_0001>

<llo_original>
// kernel: language_model_forward.7
$region0: #{language_model_forward.7}
  #allocation0 [shape = 'u32[]', space=smem, size = 0x4, offset = 0x4, fixed_abs, tag = 'smem constant byte address 0x4 - core index']
  #allocation1 [shape = 'u32[144,128]{1,0:T(1,128)}', space=vmem, size = 0x12000, scoped, tag = 'internal scratch']
  %s0 = inlined_call_operand.vmem [shape: f32[16,32], index: 0, kind: input, shape index: {}]
  %s1 = inlined_call_operand.vmem [shape: f32[32,64], index: 1, kind: input, shape index: {}]
  %s2 = inlined_call_operand.vmem [shape: f32[1,64], index: 2, kind: input, shape index: {}]
  %s3 = inlined_call_operand.hbm [shape: f32[16,64], index: 3, kind: output, shape index: {}]
  %s4 = sld [smem:[#allocation0]]
  $region22: #{language_model_forward.7} parent=0
    _
  %s6 = ssub.s32 1, %s4
  %s7 = scalar_select 0, %s6, %s4
  $region1: #{language_model_forward.7} parent=0
    #allocation2 [shape = 'u8[8192]{0}', space=vmem, size = 0x2000, scoped, tag = 'output window, operand 0, single buffered']
    #allocation3 [shape = 's32[1]{0}', space=sflag, size = 0x4, scoped, tag = 'scoped memory for language_model_forward.7']
    %8 = vsyncpa [#allocation3], 0
    // Predicated region
    $region2: #{language_model_forward.7} parent=1 // pred_check
      _
    $region3: #{language_model_forward.7} parent=1 // pred_check_branch
      %10 = sbr.rel (0) target = $region5
    $region4: #{language_model_forward.7} parent=1 // pred_region
      _
    $region5: #{language_model_forward.7} parent=1 // pred_fallthru
      _
    // Predicated region
    $region6: #{language_model_forward.7} parent=1 // pred_check
      _
    $region7: #{language_model_forward.7} parent=1 // pred_check_branch
      %12 = sbr.rel (0) target = $region9
    $region8: #{language_model_forward.7} parent=1 // pred_region
      _
    $region9: #{language_model_forward.7} parent=1 // pred_fallthru
      _
    // Predicated region
    $region10: #{language_model_forward.7} parent=1 // pred_check
      _
    $region11: #{language_model_forward.7} parent=1 // pred_check_branch
      %14 = sbr.rel (0) target = $region13
    $region12: #{language_model_forward.7} parent=1 // pred_region
      _
    $region13: #{language_model_forward.7} parent=1 // pred_fallthru
      _
    %v15 = vld [vmem:[%s0] sm:$0xff]
    %v16 = vld [vmem:[%s0 + $0x8] sm:$0xff]
    %v17 = vld [vmem:[%s1] sm:$0xff]
    %v18 = vld [vmem:[%s1 + $0x8] sm:$0xff]
    %v19 = vld [vmem:[%s1 + $0x10] sm:$0xff]
    %v20 = vld [vmem:[%s1 + $0x18] sm:$0xff]
    %v21 = vld [vmem:[%s2] sm:$0x1]
    %v23 = vlaneseq
    %v24 = vshrl.u32 %v23, 7
    %v25 = vsub.s32 0, %v24
    %v26 = vrot.slane %v21, %v25
    %vm28 = vcmask 261120
    %v30 = vsel %vm28, %v15, 0
    %v33 = vsel %vm28, %v16, 0
    %35 = vmatprep.subr.mxu0 0.0
    %36 = vmatpush1.msra.mxu0 %v17
    %37 = vmatprep.subr.mxu0 0.0
    %38 = vmatpush1.msra.mxu0 %v18
    %39 = vmatprep.subr.mxu0 0.0
    %40 = vmatpush1.msra.mxu0 %v19
    %41 = vmatprep.subr.mxu0 0.0
    %42 = vmatpush1.msra.mxu0 %v20
    %43 = vmatprep.subr.mxu0 0.0
    %44 = vmatpush1.msra.mxu0 0.0
    %45 = vmatprep.subr.mxu0 0.0
    %46 = vmatpush1.msra.mxu0 0.0
    %47 = vmatprep.subr.mxu0 0.0
    %48 = vmatpush1.msra.mxu0 0.0
    %49 = vmatprep.subr.mxu0 0.0
    %50 = vmatpush1.msra.mxu0 0.0
    %51 = vmatprep.subr.mxu0 0.0
    %52 = vmatpush1.msra.mxu0 0.0
    %53 = vmatprep.subr.mxu0 0.0
    %54 = vmatpush1.msra.mxu0 0.0
    %55 = vmatprep.subr.mxu0 0.0
    %56 = vmatpush1.msra.mxu0 0.0
    %57 = vmatprep.subr.mxu0 0.0
    %58 = vmatpush1.msra.mxu0 0.0
    %59 = vmatprep.subr.mxu0 0.0
    %60 = vmatpush1.msra.mxu0 0.0
    %61 = vmatprep.subr.mxu0 0.0
    %62 = vmatpush1.msra.mxu0 0.0
    %63 = vmatprep.subr.mxu0 0.0
    %64 = vmatpush1.msra.mxu0 0.0
    %65 = vmatprep.subr.mxu0 0.0
    %66 = vmatpush1.msra.mxu0 0.0
    %67 = vmatprep.subr.mxu0 0.0
    %68 = vmatpush1.msra.mxu0 0.0
    %69 = vmatprep.subr.mxu0 0.0
    %70 = vmatpush1.msra.mxu0 0.0
    %71 = vmatprep.subr.mxu0 0.0
    %72 = vmatpush1.msra.mxu0 0.0
    %73 = vmatprep.subr.mxu0 0.0
    %74 = vmatpush1.msra.mxu0 0.0
    %75 = vmatprep.subr.mxu0 0.0
    %76 = vmatpush1.msra.mxu0 0.0
    %77 = vmatprep.subr.mxu0 0.0
    %78 = vmatpush1.msra.mxu0 0.0
    %79 = vmatprep.subr.mxu0 0.0
    %80 = vmatpush1.msra.mxu0 0.0
    %81 = vmatprep.subr.mxu0 0.0
    %82 = vmatpush1.msra.mxu0 0.0
    %83 = vmatprep.subr.mxu0 0.0
    %84 = vmatpush1.msra.mxu0 0.0
    %85 = vmatprep.subr.mxu0 0.0
    %86 = vmatpush1.msra.mxu0 0.0
    %87 = vmatprep.subr.mxu0 0.0
    %88 = vmatpush1.msra.mxu0 0.0
    %89 = vmatprep.subr.mxu0 0.0
    %90 = vmatpush1.msra.mxu0 0.0
    %91 = vmatprep.subr.mxu0 0.0
    %92 = vmatpush1.msra.mxu0 0.0
    %93 = vmatprep.subr.mxu0 0.0
    %94 = vmatpush1.msra.mxu0 0.0
    %95 = vmatprep.subr.mxu0 0.0
    %96 = vmatpush1.msra.mxu0 0.0
    %97 = vmatprep.subr.mxu0 0.0
    %98 = vmatpush1.msra.mxu0 0.0
    %99 = vmatprep.mubr.f32.mxu0 0.0
    %100 = vmatmul.mubr.f32.gmra.mrb[0].mxu0 %v30
    %v101 = vpop.f32.mrb[0].mxu0
    %v102 = vadd.f32 %v26, %v101
    %v103 = vpop.f32.mrb[0].mxu0
    %104 = vmatprep.mubr.f32.mxu0 0.0
    %105 = vmatmul.mubr.f32.gmra.mrb[0].mxu0 %v33
    %v106 = vpop.f32.mrb[0].mxu0
    %v107 = vadd.f32 %v26, %v106
    %v108 = vpop.f32.mrb[0].mxu0
    %109 = vdwg.mxu0
    %vm110 = vcmask 523264
    %111 = vst.msk [vmem:[#allocation2] sm:$0xff] %vm110, %v102
    %112 = vst.msk [vmem:[#allocation2 + $0x8] sm:$0xff] %vm110, %v107
    // Predicated region
    $region14: #{language_model_forward.7} parent=1 // pred_check
      _
    $region15: #{language_model_forward.7} parent=1 // pred_check_branch
      %114 = sbr.rel (0) target = $region17
    $region16: #{language_model_forward.7} parent=1 // pred_region
      %s116 = ssub.s32 256, 256
      %117 = vsyncadd [#allocation3], %s116
      %s118 = sshll.u32 [#allocation2], 4
      %s119 = int_to_ptr.vmem [resolvable:$true] %s118
      %124 = dma.vmem_to_hbm [thread:$0]  %s119, 256, %s3, [#allocation3], 128, 128, 8
    $region17: #{language_model_forward.7} parent=1 // pred_fallthru
      _
    // Predicated region
    $region18: #{language_model_forward.7} parent=1 // pred_check
      _
    $region19: #{language_model_forward.7} parent=1 // pred_check_branch
      %126 = sbr.rel (0) target = $region21
    $region20: #{language_model_forward.7} parent=1 // pred_region
      %127 = dma.done [#allocation3], 256
    $region21: #{language_model_forward.7} parent=1 // pred_fallthru
      _
    %128 = vsyncpa [#allocation3], 1

// kernel: language_model_forward.4
$region0: #{language_model_forward.4}
  #allocation0 [shape = 'u32[]', space=smem, size = 0x4, offset = 0x4, fixed_abs, tag = 'smem constant byte address 0x4 - core index']
  #allocation1 [shape = 'u32[144,128]{1,0:T(1,128)}', space=vmem, size = 0x12000, scoped, tag = 'internal scratch']
  %s0 = inlined_call_operand.vmem [shape: f32[2,8,32], index: 0, kind: input, shape index: {}]
  %s1 = inlined_call_operand.vmem [shape: f32[1,8,32], index: 1, kind: input, shape index: {}]
  %s2 = inlined_call_operand.vmem [shape: f32[2,8,32], index: 2, kind: output, shape index: {}]
  %s3 = sld [smem:[#allocation0]]
  $region41: #{language_model_forward.4} parent=0
    _
  %s5 = ssub.s32 1, %s3
  %s6 = scalar_select 0, %s5, %s3
  loop: start=0, step=1, limit=4
  $region2: #{language_model_forward.4} parent=0 // loop_pre_header
    _
  $region3: #{language_model_forward.4} parent=0 // loop_header
    %s8 = sphi 0, %s12
    %p9 = scmp.ge.s32.totalorder %s8, 4
    %s18 = sphi 0, %s20
    %s21 = sphi 0, %s18
    %s22 = sphi 0, %s21
    %s38 = sphi 0, %s22
    %s42 = sphi 0, %s42
    %s44 = sphi 0, %s42
    %s45 = sphi 0, %s44
    %s59 = sphi 0, %s45
    %s65 = sphi 0, %s67
    %s68 = sphi 0, %s65
    %s69 = sphi 0, %s68
    %s85 = sphi 0, %s69
  $region4: #{language_model_forward.4} parent=0 // loop_header_branch
    %11 = sbr.rel (%p9) target = $region8
  $region5: #{language_model_forward.4} parent=0 // loop_body
    %s13 = ssub.s32 %s8, 1
    %s14 = ssub.s32 %s8, 2
    %s15 = sadd.s32 %s8, 1
    %s16 = ssub.s32 %s8, %s15
    %p17 = scmp.eq.s32.totalorder %s16, 0
    %s19 = sadd.s32 %s18, 1
    %s20 = scalar_select %p17, %s18, %s19
    %p23 = pneg %p17
    %p24 = scmp.eq.s32.totalorder %s8, 1
    %p25 = por %p23, %p24
    %p26 = scmp.ne.s32.totalorder %s18, %s21
    %p27 = scmp.eq.s32.totalorder %s8, 0
    %p28 = por %p26, %p27
    %p29 = scmp.ne.s32.totalorder %s18, %s21
    %p30 = scmp.eq.s32.totalorder %s13, 1
    %p31 = por %p29, %p30
    %p32 = scmp.ne.s32.totalorder %s21, %s22
    %p33 = scmp.eq.s32.totalorder %s13, 0
    %p34 = por %p32, %p33
    %p35 = scmp.ne.s32.totalorder %s21, %s22
    %p36 = scmp.eq.s32.totalorder %s14, 1
    %p37 = por %p35, %p36
    %p39 = scmp.ne.s32.totalorder %s22, %s38
    %p40 = scmp.eq.s32.totalorder %s14, 0
    %p41 = por %p39, %p40
    %s43 = sadd.s32 %s42, 1
    %p46 = scmp.eq.s32.totalorder %s8, 1
    %p47 = scmp.ne.s32.totalorder %s42, %s44
    %p48 = scmp.eq.s32.totalorder %s8, 0
    %p49 = por %p47, %p48
    %p50 = scmp.ne.s32.totalorder %s42, %s44
    %p51 = scmp.eq.s32.totalorder %s13, 1
    %p52 = por %p50, %p51
    %p53 = scmp.ne.s32.totalorder %s44, %s45
    %p54 = scmp.eq.s32.totalorder %s13, 0
    %p55 = por %p53, %p54
    %p56 = scmp.ne.s32.totalorder %s44, %s45
    %p57 = scmp.eq.s32.totalorder %s14, 1
    %p58 = por %p56, %p57
    %p60 = scmp.ne.s32.totalorder %s45, %s59
    %p61 = scmp.eq.s32.totalorder %s14, 0
    %p62 = por %p60, %p61
    %s63 = ssub.s32 %s8, %s15
    %p64 = scmp.eq.s32.totalorder %s63, 0
    %s66 = sadd.s32 %s65, 1
    %s67 = scalar_select %p64, %s65, %s66
    %p70 = pneg %p64
    %p71 = scmp.eq.s32.totalorder %s8, 1
    %p72 = por %p70, %p71
    %p73 = scmp.ne.s32.totalorder %s65, %s68
    %p74 = scmp.eq.s32.totalorder %s8, 0
    %p75 = por %p73, %p74
    %p76 = scmp.ne.s32.totalorder %s65, %s68
    %p77 = scmp.eq.s32.totalorder %s13, 1
    %p78 = por %p76, %p77
    %p79 = scmp.ne.s32.totalorder %s68, %s69
    %p80 = scmp.eq.s32.totalorder %s13, 0
    %p81 = por %p79, %p80
    %p82 = scmp.ne.s32.totalorder %s68, %s69
    %p83 = scmp.eq.s32.totalorder %s14, 1
    %p84 = por %p82, %p83
    %p86 = scmp.ne.s32.totalorder %s69, %s85
    %p87 = scmp.eq.s32.totalorder %s14, 0
    %p88 = por %p86, %p87
    %p89 = scmp.le.s32.totalorder 1, %s8
    %p90 = scmp.lt.s32.totalorder %s8, 3
    %p91 = pnand %p89, %p90
    %p92 = pneg %p91
    // Predicated region
    $region9: #{language_model_forward.4} parent=5 // pred_check
      _
    $region10: #{language_model_forward.4} parent=5 // pred_check_branch
      %94 = sbr.rel (%p91) target = $region12
    $region11: #{language_model_forward.4} parent=5 // pred_region
      %s95 = ssub.s32 %s8, 1
      // Predicated region
      $region13: #{language_model_forward.4} parent=11 // pred_check
        %p96 = pneg %p55
      $region14: #{language_model_forward.4} parent=11 // pred_check_branch
        %98 = sbr.rel (%p96) target = $region16
      $region15: #{language_model_forward.4} parent=11 // pred_region
        _
      $region16: #{language_model_forward.4} parent=11 // pred_fallthru
        _
    $region12: #{language_model_forward.4} parent=5 // pred_fallthru
      _
    %p99 = scmp.lt.s32.totalorder %s8, 2
    // Predicated region
    $region17: #{language_model_forward.4} parent=5 // pred_check
      %p100 = pneg %p99
    $region18: #{language_model_forward.4} parent=5 // pred_check_branch
      %102 = sbr.rel (%p100) target = $region20
    $region19: #{language_model_forward.4} parent=5 // pred_region
      // Predicated region
      $region21: #{language_model_forward.4} parent=19 // pred_check
        %p103 = pneg %p28
      $region22: #{language_model_forward.4} parent=19 // pred_check_branch
        %105 = sbr.rel (%p103) target = $region24
      $region23: #{language_model_forward.4} parent=19 // pred_region
        %p106 = scmp.lt.s32.totalorder %s8, 1
        %s107 = scalar_select %p106, %s8, 1
        %s108 = smul.addr %s107, 8
        %s109 = scalar_lea.vmem %s0, %s108
      $region24: #{language_model_forward.4} parent=19 // pred_fallthru
        _
    $region20: #{language_model_forward.4} parent=5 // pred_fallthru
      _
    %p110 = scmp.le.s32.totalorder 1, %s8
    %p111 = scmp.lt.s32.totalorder %s8, 3
    %p112 = pnand %p110, %p111
    %p113 = pneg %p112
    // Predicated region
    $region25: #{language_model_forward.4} parent=5 // pred_check
      _
    $region26: #{language_model_forward.4} parent=5 // pred_check_branch
      %115 = sbr.rel (%p112) target = $region28
    $region27: #{language_model_forward.4} parent=5 // pred_region
      %s116 = ssub.s32 %s8, 1
      %p117 = scmp.lt.s32.totalorder %s13, 1
      %s118 = scalar_select %p117, %s13, 1
      %s119 = smul.addr %s118, 8
      %s120 = scalar_lea.vmem %s0, %s119
      %p121 = pneg %p34
      %p122 = pneg %p31
      %p123 = pneg %p55
      %p124 = pneg %p52
      %p125 = pneg %p81
      %p126 = pneg %p78
      %p127 = scmp.lt.s32.totalorder %s13, 1
      %s128 = scalar_select %p127, %s13, 1
      %s129 = smul.addr %s128, 8
      %s130 = scalar_lea.vmem %s2, %s129
      %p131 = scmp.lt.s32.totalorder %s13, 1
      %s132 = scalar_select %p131, %s13, 1
      %s133 = smul.addr %s132, 8
      %s134 = scalar_lea.vmem %s0, %s133
      %p135 = scmp.lt.s32.totalorder %s13, 1
      %s136 = scalar_select %p135, %s13, 1
      %s137 = smul.addr %s136, 8
      %s138 = scalar_lea.vmem %s2, %s137
      %v139 = vld [vmem:[%s134] sm:$0xff]
      %v140 = vmul.f32 %v139, 5.656854
      %v141 = vld [vmem:[%s1] sm:$0xff]
      %v142 = vadd.f32 %v140, %v141
      %vm143 = vcmask 261120
      %144 = vst.msk [vmem:[%s138] sm:$0xff] %vm143, %v142
      %p145 = scmp.lt.s32.totalorder %s13, 1
      %s146 = scalar_select %p145, %s13, 1
      %s147 = smul.addr %s146, 8
      %s148 = scalar_lea.vmem %s2, %s147
      // Predicated region
      $region29: #{language_model_forward.4} parent=27 // pred_check
        %p149 = pneg %p78
      $region30: #{language_model_forward.4} parent=27 // pred_check_branch
        %151 = sbr.rel (%p149) target = $region32
      $region31: #{language_model_forward.4} parent=27 // pred_region
        _
      $region32: #{language_model_forward.4} parent=27 // pred_fallthru
        _
    $region28: #{language_model_forward.4} parent=5 // pred_fallthru
      _
    %p152 = scmp.le.s32.totalorder 2, %s8
    // Predicated region
    $region33: #{language_model_forward.4} parent=5 // pred_check
      %p153 = pneg %p152
    $region34: #{language_model_forward.4} parent=5 // pred_check_branch
      %155 = sbr.rel (%p153) target = $region36
    $region35: #{language_model_forward.4} parent=5 // pred_region
      %s156 = ssub.s32 %s8, 2
      // Predicated region
      $region37: #{language_model_forward.4} parent=35 // pred_check
        %p157 = pneg %p84
      $region38: #{language_model_forward.4} parent=35 // pred_check_branch
        %159 = sbr.rel (%p157) target = $region40
      $region39: #{language_model_forward.4} parent=35 // pred_region
        %p160 = scmp.lt.s32.totalorder %s14, 1
        %s161 = scalar_select %p160, %s14, 1
        %s162 = smul.addr %s161, 8
        %s163 = scalar_lea.vmem %s2, %s162
      $region40: #{language_model_forward.4} parent=35 // pred_fallthru
        _
    $region36: #{language_model_forward.4} parent=5 // pred_fallthru
      _
  $region6: #{language_model_forward.4} parent=0 // loop_footer
    %s12 = sadd.s32 1, %s8
  $region7: #{language_model_forward.4} parent=0 // loop_footer_branch
    %7 = sbr.rel target = $region3
  $region8: #{language_model_forward.4} parent=0 // loop_exit
    _

// kernel: language_model_forward.5
$region0: #{language_model_forward.5}
  #allocation0 [shape = 'u32[]', space=smem, size = 0x4, offset = 0x4, fixed_abs, tag = 'smem constant byte address 0x4 - core index']
  #allocation1 [shape = 'u32[144,128]{1,0:T(1,128)}', space=vmem, size = 0x12000, scoped, tag = 'internal scratch']
  %s0 = inlined_call_operand.vmem [shape: f32[2,8,32], index: 0, kind: input, shape index: {}]
  %s1 = inlined_call_operand.vmem [shape: f32[2,1,8], index: 1, kind: input, shape index: {}]
  %s2 = inlined_call_operand.vmem [shape: f32[2,8,1], index: 2, kind: input, shape index: {}]
  %s3 = inlined_call_operand.vmem [shape: f32[4,32,8], index: 3, kind: input, shape index: {}]
  %s4 = inlined_call_operand.vmem [shape: f32[4,1,8], index: 4, kind: input, shape index: {}]
  %s5 = inlined_call_operand.vmem [shape: f32[4,32,8], index: 5, kind: input, shape index: {}]
  %s6 = inlined_call_operand.vmem [shape: f32[4,1,8], index: 6, kind: input, shape index: {}]
  %s7 = inlined_call_operand.vmem [shape: f32[4,32,8], index: 7, kind: input, shape index: {}]
  %s8 = inlined_call_operand.vmem [shape: f32[4,1,8], index: 8, kind: input, shape index: {}]
  %s9 = inlined_call_operand.vmem [shape: f32[4,8,32], index: 9, kind: input, shape index: {}]
  %s10 = inlined_call_operand.vmem [shape: f32[1,32], index: 10, kind: input, shape index: {}]
  %s11 = inlined_call_operand.vmem [shape: f32[1,32], index: 11, kind: input, shape index: {}]
  %s12 = inlined_call_operand.vmem [shape: f32[1,32], index: 12, kind: input, shape index: {}]
  %s13 = inlined_call_operand.vmem [shape: f32[32,64], index: 13, kind: input, shape index: {}]
  %s14 = inlined_call_operand.vmem [shape: f32[1,64], index: 14, kind: input, shape index: {}]
  %s15 = inlined_call_operand.vmem [shape: f32[64,32], index: 15, kind: input, shape index: {}]
  %s16 = inlined_call_operand.vmem [shape: f32[1,32], index: 16, kind: input, shape index: {}]
  %s17 = inlined_call_operand.vmem [shape: f32[1,32], index: 17, kind: input, shape index: {}]
  %s18 = inlined_call_operand.vmem [shape: f32[1,32], index: 18, kind: input, shape index: {}]
  %s19 = inlined_call_operand.vmem [shape: f32[2,8,32], index: 19, kind: output, shape index: {}]
  %s20 = sld [smem:[#allocation0]]
  $region109: #{language_model_forward.5} parent=0
    _
  %s22 = ssub.s32 1, %s20
  %s23 = scalar_select 0, %s22, %s20
  loop: start=0, step=1, limit=4
  $region2: #{language_model_forward.5} parent=0 // loop_pre_header
    _
  $region3: #{language_model_forward.5} parent=0 // loop_header
    %s25 = sphi 0, %s29
    %p26 = scmp.ge.s32.totalorder %s25, 4
    %s35 = sphi 0, %s37
    %s38 = sphi 0, %s35
    %s39 = sphi 0, %s38
    %s55 = sphi 0, %s39
    %s61 = sphi 0, %s63
    %s64 = sphi 0, %s61
    %s65 = sphi 0, %s64
    %s81 = sphi 0, %s65
    %s87 = sphi 0, %s89
    %s90 = sphi 0, %s87
    %s91 = sphi 0, %s90
    %s107 = sphi 0, %s91
    %s111 = sphi 0, %s111
    %s113 = sphi 0, %s111
    %s114 = sphi 0, %s113
    %s128 = sphi 0, %s114
    %s132 = sphi 0, %s132
    %s134 = sphi 0, %s132
    %s135 = sphi 0, %s134
    %s149 = sphi 0, %s135
    %s153 = sphi 0, %s153
    %s155 = sphi 0, %s153
    %s156 = sphi 0, %s155
    %s170 = sphi 0, %s156
    %s174 = sphi 0, %s174
    %s176 = sphi 0, %s174
    %s177 = sphi 0, %s176
    %s191 = sphi 0, %s177
    %s195 = sphi 0, %s195
    %s197 = sphi 0, %s195
    %s198 = sphi 0, %s197
    %s212 = sphi 0, %s198
    %s216 = sphi 0, %s216
    %s218 = sphi 0, %s216
    %s219 = sphi 0, %s218
    %s233 = sphi 0, %s219
    %s237 = sphi 0, %s237
    %s239 = sphi 0, %s237
    %s240 = sphi 0, %s239
    %s254 = sphi 0, %s240
    %s258 = sphi 0, %s258
    %s260 = sphi 0, %s258
    %s261 = sphi 0, %s260
    %s275 = sphi 0, %s261
    %s279 = sphi 0, %s279
    %s281 = sphi 0, %s279
    %s282 = sphi 0, %s281
    %s296 = sphi 0, %s282
    %s300 = sphi 0, %s300
    %s302 = sphi 0, %s300
    %s303 = sphi 0, %s302
    %s317 = sphi 0, %s303
    %s321 = sphi 0, %s321
    %s323 = sphi 0, %s321
    %s324 = sphi 0, %s323
    %s338 = sphi 0, %s324
    %s342 = sphi 0, %s342
    %s344 = sphi 0, %s342
    %s345 = sphi 0, %s344
    %s359 = sphi 0, %s345
    %s363 = sphi 0, %s363
    %s365 = sphi 0, %s363
    %s366 = sphi 0, %s365
    %s380 = sphi 0, %s366
    %s384 = sphi 0, %s384
    %s386 = sphi 0, %s384
    %s387 = sphi 0, %s386
    %s401 = sphi 0, %s387
    %s405 = sphi 0, %s405
    %s407 = sphi 0, %s405
    %s408 = sphi 0, %s407
    %s422 = sphi 0, %s408
    %s426 = sphi 0, %s426
    %s428 = sphi 0, %s426
    %s429 = sphi 0, %s428
    %s443 = sphi 0, %s429
    %s449 = sphi 0, %s451
    %s452 = sphi 0, %s449
    %s453 = sphi 0, %s452
    %s469 = sphi 0, %s453
  $region4: #{language_model_forward.5} parent=0 // loop_header_branch
    %28 = sbr.rel (%p26) target = $region8
  $region5: #{language_model_forward.5} parent=0 // loop_body
    %s30 = ssub.s32 %s25, 1
    %s31 = ssub.s32 %s25, 2
    %s32 = sadd.s32 %s25, 1
    %s33 = ssub.s32 %s25, %s32
    %p34 = scmp.eq.s32.totalorder %s33, 0
    %s36 = sadd.s32 %s35, 1
    %s37 = scalar_select %p34, %s35, %s36
    %p40 = pneg %p34
    %p41 = scmp.eq.s32.totalorder %s25, 1
    %p42 = por %p40, %p41
    %p43 = scmp.ne.s32.totalorder %s35, %s38
    %p44 = scmp.eq.s32.totalorder %s25, 0
    %p45 = por %p43, %p44
    %p46 = scmp.ne.s32.totalorder %s35, %s38
    %p47 = scmp.eq.s32.totalorder %s30, 1
    %p48 = por %p46, %p47
    %p49 = scmp.ne.s32.totalorder %s38, %s39
    %p50 = scmp.eq.s32.totalorder %s30, 0
    %p51 = por %p49, %p50
    %p52 = scmp.ne.s32.totalorder %s38, %s39
    %p53 = scmp.eq.s32.totalorder %s31, 1
    %p54 = por %p52, %p53
    %p56 = scmp.ne.s32.totalorder %s39, %s55
    %p57 = scmp.eq.s32.totalorder %s31, 0
    %p58 = por %p56, %p57
    %s59 = ssub.s32 %s25, %s32
    %p60 = scmp.eq.s32.totalorder %s59, 0
    %s62 = sadd.s32 %s61, 1
    %s63 = scalar_select %p60, %s61, %s62
    %p66 = pneg %p60
    %p67 = scmp.eq.s32.totalorder %s25, 1
    %p68 = por %p66, %p67
    %p69 = scmp.ne.s32.totalorder %s61, %s64
    %p70 = scmp.eq.s32.totalorder %s25, 0
    %p71 = por %p69, %p70
    %p72 = scmp.ne.s32.totalorder %s61, %s64
    %p73 = scmp.eq.s32.totalorder %s30, 1
    %p74 = por %p72, %p73
    %p75 = scmp.ne.s32.totalorder %s64, %s65
    %p76 = scmp.eq.s32.totalorder %s30, 0
    %p77 = por %p75, %p76
    %p78 = scmp.ne.s32.totalorder %s64, %s65
    %p79 = scmp.eq.s32.totalorder %s31, 1
    %p80 = por %p78, %p79
    %p82 = scmp.ne.s32.totalorder %s65, %s81
    %p83 = scmp.eq.s32.totalorder %s31, 0
    %p84 = por %p82, %p83
    %s85 = ssub.s32 %s25, %s32
    %p86 = scmp.eq.s32.totalorder %s85, 0
    %s88 = sadd.s32 %s87, 1
    %s89 = scalar_select %p86, %s87, %s88
    %p92 = pneg %p86
    %p93 = scmp.eq.s32.totalorder %s25, 1
    %p94 = por %p92, %p93
    %p95 = scmp.ne.s32.totalorder %s87, %s90
    %p96 = scmp.eq.s32.totalorder %s25, 0
    %p97 = por %p95, %p96
    %p98 = scmp.ne.s32.totalorder %s87, %s90
    %p99 = scmp.eq.s32.totalorder %s30, 1
    %p100 = por %p98, %p99
    %p101 = scmp.ne.s32.totalorder %s90, %s91
    %p102 = scmp.eq.s32.totalorder %s30, 0
    %p103 = por %p101, %p102
    %p104 = scmp.ne.s32.totalorder %s90, %s91
    %p105 = scmp.eq.s32.totalorder %s31, 1
    %p106 = por %p104, %p105
    %p108 = scmp.ne.s32.totalorder %s91, %s107
    %p109 = scmp.eq.s32.totalorder %s31, 0
    %p110 = por %p108, %p109
    %s112 = sadd.s32 %s111, 1
    %p115 = scmp.eq.s32.totalorder %s25, 1
    %p116 = scmp.ne.s32.totalorder %s111, %s113
    %p117 = scmp.eq.s32.totalorder %s25, 0
    %p118 = por %p116, %p117
    %p119 = scmp.ne.s32.totalorder %s111, %s113
    %p120 = scmp.eq.s32.totalorder %s30, 1
    %p121 = por %p119, %p120
    %p122 = scmp.ne.s32.totalorder %s113, %s114
    %p123 = scmp.eq.s32.totalorder %s30, 0
    %p124 = por %p122, %p123
    %p125 = scmp.ne.s32.totalorder %s113, %s114
    %p126 = scmp.eq.s32.totalorder %s31, 1
    %p127 = por %p125, %p126
    %p129 = scmp.ne.s32.totalorder %s114, %s128
    %p130 = scmp.eq.s32.totalorder %s31, 0
    %p131 = por %p129, %p130
    %s133 = sadd.s32 %s132, 1
    %p136 = scmp.eq.s32.totalorder %s25, 1
    %p137 = scmp.ne.s32.totalorder %s132, %s134
    %p138 = scmp.eq.s32.totalorder %s25, 0
    %p139 = por %p137, %p138
    %p140 = scmp.ne.s32.totalorder %s132, %s134
    %p141 = scmp.eq.s32.totalorder %s30, 1
    %p142 = por %p140, %p141
    %p143 = scmp.ne.s32.totalorder %s134, %s135
    %p144 = scmp.eq.s32.totalorder %s30, 0
    %p145 = por %p143, %p144
    %p146 = scmp.ne.s32.totalorder %s134, %s135
    %p147 = scmp.eq.s32.totalorder %s31, 1
    %p148 = por %p146, %p147
    %p150 = scmp.ne.s32.totalorder %s135, %s149
    %p151 = scmp.eq.s32.totalorder %s31, 0
    %p152 = por %p150, %p151
    %s154 = sadd.s32 %s153, 1
    %p157 = scmp.eq.s32.totalorder %s25, 1
    %p158 = scmp.ne.s32.totalorder %s153, %s155
    %p159 = scmp.eq.s32.totalorder %s25, 0
    %p160 = por %p158, %p159
    %p161 = scmp.ne.s32.totalorder %s153, %s155
    %p162 = scmp.eq.s32.totalorder %s30, 1
    %p163 = por %p161, %p162
    %p164 = scmp.ne.s32.totalorder %s155, %s156
    %p165 = scmp.eq.s32.totalorder %s30, 0
    %p166 = por %p164, %p165
    %p167 = scmp.ne.s32.totalorder %s155, %s156
    %p168 = scmp.eq.s32.totalorder %s31, 1
    %p169 = por %p167, %p168
    %p171 = scmp.ne.s32.totalorder %s156, %s170
    %p172 = scmp.eq.s32.totalorder %s31, 0
    %p173 = por %p171, %p172
    %s175 = sadd.s32 %s174, 1
    %p178 = scmp.eq.s32.totalorder %s25, 1
    %p179 = scmp.ne.s32.totalorder %s174, %s176
    %p180 = scmp.eq.s32.totalorder %s25, 0
    %p181 = por %p179, %p180
    %p182 = scmp.ne.s32.totalorder %s174, %s176
    %p183 = scmp.eq.s32.totalorder %s30, 1
    %p184 = por %p182, %p183
    %p185 = scmp.ne.s32.totalorder %s176, %s177
    %p186 = scmp.eq.s32.totalorder %s30, 0
    %p187 = por %p185, %p186
    %p188 = scmp.ne.s32.totalorder %s176, %s177
    %p189 = scmp.eq.s32.totalorder %s31, 1
    %p190 = por %p188, %p189
    %p192 = scmp.ne.s32.totalorder %s177, %s191
    %p193 = scmp.eq.s32.totalorder %s31, 0
    %p194 = por %p192, %p193
    %s196 = sadd.s32 %s195, 1
    %p199 = scmp.eq.s32.totalorder %s25, 1
    %p200 = scmp.ne.s32.totalorder %s195, %s197
    %p201 = scmp.eq.s32.totalorder %s25, 0
    %p202 = por %p200, %p201
    %p203 = scmp.ne.s32.totalorder %s195, %s197
    %p204 = scmp.eq.s32.totalorder %s30, 1
    %p205 = por %p203, %p204
    %p206 = scmp.ne.s32.totalorder %s197, %s198
    %p207 = scmp.eq.s32.totalorder %s30, 0
    %p208 = por %p206, %p207
    %p209 = scmp.ne.s32.totalorder %s197, %s198
    %p210 = scmp.eq.s32.totalorder %s31, 1
    %p211 = por %p209, %p210
    %p213 = scmp.ne.s32.totalorder %s198, %s212
    %p214 = scmp.eq.s32.totalorder %s31, 0
    %p215 = por %p213, %p214
    %s217 = sadd.s32 %s216, 1
    %p220 = scmp.eq.s32.totalorder %s25, 1
    %p221 = scmp.ne.s32.totalorder %s216, %s218
    %p222 = scmp.eq.s32.totalorder %s25, 0
    %p223 = por %p221, %p222
    %p224 = scmp.ne.s32.totalorder %s216, %s218
    %p225 = scmp.eq.s32.totalorder %s30, 1
    %p226 = por %p224, %p225
    %p227 = scmp.ne.s32.totalorder %s218, %s219
    %p228 = scmp.eq.s32.totalorder %s30, 0
    %p229 = por %p227, %p228
    %p230 = scmp.ne.s32.totalorder %s218, %s219
    %p231 = scmp.eq.s32.totalorder %s31, 1
    %p232 = por %p230, %p231
    %p234 = scmp.ne.s32.totalorder %s219, %s233
    %p235 = scmp.eq.s32.totalorder %s31, 0
    %p236 = por %p234, %p235
    %s238 = sadd.s32 %s237, 1
    %p241 = scmp.eq.s32.totalorder %s25, 1
    %p242 = scmp.ne.s32.totalorder %s237, %s239
    %p243 = scmp.eq.s32.totalorder %s25, 0
    %p244 = por %p242, %p243
    %p245 = scmp.ne.s32.totalorder %s237, %s239
    %p246 = scmp.eq.s32.totalorder %s30, 1
    %p247 = por %p245, %p246
    %p248 = scmp.ne.s32.totalorder %s239, %s240
    %p249 = scmp.eq.s32.totalorder %s30, 0
    %p250 = por %p248, %p249
    %p251 = scmp.ne.s32.totalorder %s239, %s240
    %p252 = scmp.eq.s32.totalorder %s31, 1
    %p253 = por %p251, %p252
    %p255 = scmp.ne.s32.totalorder %s240, %s254
    %p256 = scmp.eq.s32.totalorder %s31, 0
    %p257 = por %p255, %p256
    %s259 = sadd.s32 %s258, 1
    %p262 = scmp.eq.s32.totalorder %s25, 1
    %p263 = scmp.ne.s32.totalorder %s258, %s260
    %p264 = scmp.eq.s32.totalorder %s25, 0
    %p265 = por %p263, %p264
    %p266 = scmp.ne.s32.totalorder %s258, %s260
    %p267 = scmp.eq.s32.totalorder %s30, 1
    %p268 = por %p266, %p267
    %p269 = scmp.ne.s32.totalorder %s260, %s261
    %p270 = scmp.eq.s32.totalorder %s30, 0
    %p271 = por %p269, %p270
    %p272 = scmp.ne.s32.totalorder %s260, %s261
    %p273 = scmp.eq.s32.totalorder %s31, 1
    %p274 = por %p272, %p273
    %p276 = scmp.ne.s32.totalorder %s261, %s275
    %p277 = scmp.eq.s32.totalorder %s31, 0
    %p278 = por %p276, %p277
    %s280 = sadd.s32 %s279, 1
    %p283 = scmp.eq.s32.totalorder %s25, 1
    %p284 = scmp.ne.s32.totalorder %s279, %s281
    %p285 = scmp.eq.s32.totalorder %s25, 0
    %p286 = por %p284, %p285
    %p287 = scmp.ne.s32.totalorder %s279, %s281
    %p288 = scmp.eq.s32.totalorder %s30, 1
    %p289 = por %p287, %p288
    %p290 = scmp.ne.s32.totalorder %s281, %s282
    %p291 = scmp.eq.s32.totalorder %s30, 0
    %p292 = por %p290, %p291
    %p293 = scmp.ne.s32.totalorder %s281, %s282
    %p294 = scmp.eq.s32.totalorder %s31, 1
    %p295 = por %p293, %p294
    %p297 = scmp.ne.s32.totalorder %s282, %s296
    %p298 = scmp.eq.s32.totalorder %s31, 0
    %p299 = por %p297, %p298
    %s301 = sadd.s32 %s300, 1
    %p304 = scmp.eq.s32.totalorder %s25, 1
    %p305 = scmp.ne.s32.totalorder %s300, %s302
    %p306 = scmp.eq.s32.totalorder %s25, 0
    %p307 = por %p305, %p306
    %p308 = scmp.ne.s32.totalorder %s300, %s302
    %p309 = scmp.eq.s32.totalorder %s30, 1
    %p310 = por %p308, %p309
    %p311 = scmp.ne.s32.totalorder %s302, %s303
    %p312 = scmp.eq.s32.totalorder %s30, 0
    %p313 = por %p311, %p312
    %p314 = scmp.ne.s32.totalorder %s302, %s303
    %p315 = scmp.eq.s32.totalorder %s31, 1
    %p316 = por %p314, %p315
    %p318 = scmp.ne.s32.totalorder %s303, %s317
    %p319 = scmp.eq.s32.totalorder %s31, 0
    %p320 = por %p318, %p319
    %s322 = sadd.s32 %s321, 1
    %p325 = scmp.eq.s32.totalorder %s25, 1
    %p326 = scmp.ne.s32.totalorder %s321, %s323
    %p327 = scmp.eq.s32.totalorder %s25, 0
    %p328 = por %p326, %p327
    %p329 = scmp.ne.s32.totalorder %s321, %s323
    %p330 = scmp.eq.s32.totalorder %s30, 1
    %p331 = por %p329, %p330
    %p332 = scmp.ne.s32.totalorder %s323, %s324
    %p333 = scmp.eq.s32.totalorder %s30, 0
    %p334 = por %p332, %p333
    %p335 = scmp.ne.s32.totalorder %s323, %s324
    %p336 = scmp.eq.s32.totalorder %s31, 1
    %p337 = por %p335, %p336
    %p339 = scmp.ne.s32.totalorder %s324, %s338
    %p340 = scmp.eq.s32.totalorder %s31, 0
    %p341 = por %p339, %p340
    %s343 = sadd.s32 %s342, 1
    %p346 = scmp.eq.s32.totalorder %s25, 1
    %p347 = scmp.ne.s32.totalorder %s342, %s344
    %p348 = scmp.eq.s32.totalorder %s25, 0
    %p349 = por %p347, %p348
    %p350 = scmp.ne.s32.totalorder %s342, %s344
    %p351 = scmp.eq.s32.totalorder %s30, 1
    %p352 = por %p350, %p351
    %p353 = scmp.ne.s32.totalorder %s344, %s345
    %p354 = scmp.eq.s32.totalorder %s30, 0
    %p355 = por %p353, %p354
    %p356 = scmp.ne.s32.totalorder %s344, %s345
    %p357 = scmp.eq.s32.totalorder %s31, 1
    %p358 = por %p356, %p357
    %p360 = scmp.ne.s32.totalorder %s345, %s359
    %p361 = scmp.eq.s32.totalorder %s31, 0
    %p362 = por %p360, %p361
    %s364 = sadd.s32 %s363, 1
    %p367 = scmp.eq.s32.totalorder %s25, 1
    %p368 = scmp.ne.s32.totalorder %s363, %s365
    %p369 = scmp.eq.s32.totalorder %s25, 0
    %p370 = por %p368, %p369
    %p371 = scmp.ne.s32.totalorder %s363, %s365
    %p372 = scmp.eq.s32.totalorder %s30, 1
    %p373 = por %p371, %p372
    %p374 = scmp.ne.s32.totalorder %s365, %s366
    %p375 = scmp.eq.s32.totalorder %s30, 0
    %p376 = por %p374, %p375
    %p377 = scmp.ne.s32.totalorder %s365, %s366
    %p378 = scmp.eq.s32.totalorder %s31, 1
    %p379 = por %p377, %p378
    %p381 = scmp.ne.s32.totalorder %s366, %s380
    %p382 = scmp.eq.s32.totalorder %s31, 0
    %p383 = por %p381, %p382
    %s385 = sadd.s32 %s384, 1
    %p388 = scmp.eq.s32.totalorder %s25, 1
    %p389 = scmp.ne.s32.totalorder %s384, %s386
    %p390 = scmp.eq.s32.totalorder %s25, 0
    %p391 = por %p389, %p390
    %p392 = scmp.ne.s32.totalorder %s384, %s386
    %p393 = scmp.eq.s32.totalorder %s30, 1
    %p394 = por %p392, %p393
    %p395 = scmp.ne.s32.totalorder %s386, %s387
    %p396 = scmp.eq.s32.totalorder %s30, 0
    %p397 = por %p395, %p396
    %p398 = scmp.ne.s32.totalorder %s386, %s387
    %p399 = scmp.eq.s32.totalorder %s31, 1
    %p400 = por %p398, %p399
    %p402 = scmp.ne.s32.totalorder %s387, %s401
    %p403 = scmp.eq.s32.totalorder %s31, 0
    %p404 = por %p402, %p403
    %s406 = sadd.s32 %s405, 1
    %p409 = scmp.eq.s32.totalorder %s25, 1
    %p410 = scmp.ne.s32.totalorder %s405, %s407
    %p411 = scmp.eq.s32.totalorder %s25, 0
    %p412 = por %p410, %p411
    %p413 = scmp.ne.s32.totalorder %s405, %s407
    %p414 = scmp.eq.s32.totalorder %s30, 1
    %p415 = por %p413, %p414
    %p416 = scmp.ne.s32.totalorder %s407, %s408
    %p417 = scmp.eq.s32.totalorder %s30, 0
    %p418 = por %p416, %p417
    %p419 = scmp.ne.s32.totalorder %s407, %s408
    %p420 = scmp.eq.s32.totalorder %s31, 1
    %p421 = por %p419, %p420
    %p423 = scmp.ne.s32.totalorder %s408, %s422
    %p424 = scmp.eq.s32.totalorder %s31, 0
    %p425 = por %p423, %p424
    %s427 = sadd.s32 %s426, 1
    %p430 = scmp.eq.s32.totalorder %s25, 1
    %p431 = scmp.ne.s32.totalorder %s426, %s428
    %p432 = scmp.eq.s32.totalorder %s25, 0
    %p433 = por %p431, %p432
    %p434 = scmp.ne.s32.totalorder %s426, %s428
    %p435 = scmp.eq.s32.totalorder %s30, 1
    %p436 = por %p434, %p435
    %p437 = scmp.ne.s32.totalorder %s428, %s429
    %p438 = scmp.eq.s32.totalorder %s30, 0
    %p439 = por %p437, %p438
    %p440 = scmp.ne.s32.totalorder %s428, %s429
    %p441 = scmp.eq.s32.totalorder %s31, 1
    %p442 = por %p440, %p441
    %p444 = scmp.ne.s32.totalorder %s429, %s443
    %p445 = scmp.eq.s32.totalorder %s31, 0
    %p446 = por %p444, %p445
    %s447 = ssub.s32 %s25, %s32
    %p448 = scmp.eq.s32.totalorder %s447, 0
    %s450 = sadd.s32 %s449, 1
    %s451 = scalar_select %p448, %s449, %s450
    %p454 = pneg %p448
    %p455 = scmp.eq.s32.totalorder %s25, 1
    %p456 = por %p454, %p455
    %p457 = scmp.ne.s32.totalorder %s449, %s452
    %p458 = scmp.eq.s32.totalorder %s25, 0
    %p459 = por %p457, %p458
    %p460 = scmp.ne.s32.totalorder %s449, %s452
    %p461 = scmp.eq.s32.totalorder %s30, 1
    %p462 = por %p460, %p461
    %p463 = scmp.ne.s32.totalorder %s452, %s453
    %p464 = scmp.eq.s32.totalorder %s30, 0
    %p465 = por %p463, %p464
    %p466 = scmp.ne.s32.totalorder %s452, %s453
    %p467 = scmp.eq.s32.totalorder %s31, 1
    %p468 = por %p466, %p467
    %p470 = scmp.ne.s32.totalorder %s453, %s469
    %p471 = scmp.eq.s32.totalorder %s31, 0
    %p472 = por %p470, %p471
    %p473 = scmp.le.s32.totalorder 1, %s25
    %p474 = scmp.lt.s32.totalorder %s25, 3
    %p475 = pnand %p473, %p474
    %p476 = pneg %p475
    // Predicated region
    $region9: #{language_model_forward.5} parent=5 // pred_check
      _
    $region10: #{language_model_forward.5} parent=5 // pred_check_branch
      %478 = sbr.rel (%p475) target = $region12
    $region11: #{language_model_forward.5} parent=5 // pred_region
      %s479 = ssub.s32 %s25, 1
      // Predicated region
      $region13: #{language_model_forward.5} parent=11 // pred_check
        %p480 = pneg %p124
      $region14: #{language_model_forward.5} parent=11 // pred_check_branch
        %482 = sbr.rel (%p480) target = $region16
      $region15: #{language_model_forward.5} parent=11 // pred_region
        _
      $region16: #{language_model_forward.5} parent=11 // pred_fallthru
        _
      // Predicated region
      $region17: #{language_model_forward.5} parent=11 // pred_check
        %p483 = pneg %p145
      $region18: #{language_model_forward.5} parent=11 // pred_check_branch
        %485 = sbr.rel (%p483) target = $region20
      $region19: #{language_model_forward.5} parent=11 // pred_region
        _
      $region20: #{language_model_forward.5} parent=11 // pred_fallthru
        _
      // Predicated region
      $region21: #{language_model_forward.5} parent=11 // pred_check
        %p486 = pneg %p166
      $region22: #{language_model_forward.5} parent=11 // pred_check_branch
        %488 = sbr.rel (%p486) target = $region24
      $region23: #{language_model_forward.5} parent=11 // pred_region
        _
      $region24: #{language_model_forward.5} parent=11 // pred_fallthru
        _
      // Predicated region
      $region25: #{language_model_forward.5} parent=11 // pred_check
        %p489 = pneg %p187
      $region26: #{language_model_forward.5} parent=11 // pred_check_branch
        %491 = sbr.rel (%p489) target = $region28
      $region27: #{language_model_forward.5} parent=11 // pred_region
        _
      $region28: #{language_model_forward.5} parent=11 // pred_fallthru
        _
      // Predicated region
      $region29: #{language_model_forward.5} parent=11 // pred_check
        %p492 = pneg %p208
      $region30: #{language_model_forward.5} parent=11 // pred_check_branch
        %494 = sbr.rel (%p492) target = $region32
      $region31: #{language_model_forward.5} parent=11 // pred_region
        _
      $region32: #{language_model_forward.5} parent=11 // pred_fallthru
        _
      // Predicated region
      $region33: #{language_model_forward.5} parent=11 // pred_check
        %p495 = pneg %p229
      $region34: #{language_model_forward.5} parent=11 // pred_check_branch
        %497 = sbr.rel (%p495) target = $region36
      $region35: #{language_model_forward.5} parent=11 // pred_region
        _
      $region36: #{language_model_forward.5} parent=11 // pred_fallthru
        _
      // Predicated region
      $region37: #{language_model_forward.5} parent=11 // pred_check
        %p498 = pneg %p250
      $region38: #{language_model_forward.5} parent=11 // pred_check_branch
        %500 = sbr.rel (%p498) target = $region40
      $region39: #{language_model_forward.5} parent=11 // pred_region
        _
      $region40: #{language_model_forward.5} parent=11 // pred_fallthru
        _
      // Predicated region
      $region41: #{language_model_forward.5} parent=11 // pred_check
        %p501 = pneg %p271
      $region42: #{language_model_forward.5} parent=11 // pred_check_branch
        %503 = sbr.rel (%p501) target = $region44
      $region43: #{language_model_forward.5} parent=11 // pred_region
        _
      $region44: #{language_model_forward.5} parent=11 // pred_fallthru
        _
      // Predicated region
      $region45: #{language_model_forward.5} parent=11 // pred_check
        %p504 = pneg %p292
      $region46: #{language_model_forward.5} parent=11 // pred_check_branch
        %506 = sbr.rel (%p504) target = $region48
      $region47: #{language_model_forward.5} parent=11 // pred_region
        _
      $region48: #{language_model_forward.5} parent=11 // pred_fallthru
        _
      // Predicated region
      $region49: #{language_model_forward.5} parent=11 // pred_check
        %p507 = pneg %p313
      $region50: #{language_model_forward.5} parent=11 // pred_check_branch
        %509 = sbr.rel (%p507) target = $region52
      $region51: #{language_model_forward.5} parent=11 // pred_region
        _
      $region52: #{language_model_forward.5} parent=11 // pred_fallthru
        _
      // Predicated region
      $region53: #{language_model_forward.5} parent=11 // pred_check
        %p510 = pneg %p334
      $region54: #{language_model_forward.5} parent=11 // pred_check_branch
        %512 = sbr.rel (%p510) target = $region56
      $region55: #{language_model_forward.5} parent=11 // pred_region
        _
      $region56: #{language_model_forward.5} parent=11 // pred_fallthru
        _
      // Predicated region
      $region57: #{language_model_forward.5} parent=11 // pred_check
        %p513 = pneg %p355
      $region58: #{language_model_forward.5} parent=11 // pred_check_branch
        %515 = sbr.rel (%p513) target = $region60
      $region59: #{language_model_forward.5} parent=11 // pred_region
        _
      $region60: #{language_model_forward.5} parent=11 // pred_fallthru
        _
      // Predicated region
      $region61: #{language_model_forward.5} parent=11 // pred_check
        %p516 = pneg %p376
      $region62: #{language_model_forward.5} parent=11 // pred_check_branch
        %518 = sbr.rel (%p516) target = $region64
      $region63: #{language_model_forward.5} parent=11 // pred_region
        _
      $region64: #{language_model_forward.5} parent=11 // pred_fallthru
        _
      // Predicated region
      $region65: #{language_model_forward.5} parent=11 // pred_check
        %p519 = pneg %p397
      $region66: #{language_model_forward.5} parent=11 // pred_check_branch
        %521 = sbr.rel (%p519) target = $region68
      $region67: #{language_model_forward.5} parent=11 // pred_region
        _
      $region68: #{language_model_forward.5} parent=11 // pred_fallthru
        _
      // Predicated region
      $region69: #{language_model_forward.5} parent=11 // pred_check
        %p522 = pneg %p418
      $region70: #{language_model_forward.5} parent=11 // pred_check_branch
        %524 = sbr.rel (%p522) target = $region72
      $region71: #{language_model_forward.5} parent=11 // pred_region
        _
      $region72: #{language_model_forward.5} parent=11 // pred_fallthru
        _
      // Predicated region
      $region73: #{language_model_forward.5} parent=11 // pred_check
        %p525 = pneg %p439
      $region74: #{language_model_forward.5} parent=11 // pred_check_branch
        %527 = sbr.rel (%p525) target = $region76
      $region75: #{language_model_forward.5} parent=11 // pred_region
        _
      $region76: #{language_model_forward.5} parent=11 // pred_fallthru
        _
    $region12: #{language_model_forward.5} parent=5 // pred_fallthru
      _
    %p528 = scmp.lt.s32.totalorder %s25, 2
    // Predicated region
    $region77: #{language_model_forward.5} parent=5 // pred_check
      %p529 = pneg %p528
    $region78: #{language_model_forward.5} parent=5 // pred_check_branch
      %531 = sbr.rel (%p529) target = $region80
    $region79: #{language_model_forward.5} parent=5 // pred_region
      // Predicated region
      $region81: #{language_model_forward.5} parent=79 // pred_check
        %p532 = pneg %p45
      $region82: #{language_model_forward.5} parent=79 // pred_check_branch
        %534 = sbr.rel (%p532) target = $region84
      $region83: #{language_model_forward.5} parent=79 // pred_region
        %p535 = scmp.lt.s32.totalorder %s25, 1
        %s536 = scalar_select %p535, %s25, 1
        %s537 = smul.addr %s536, 8
        %s538 = scalar_lea.vmem %s0, %s537
      $region84: #{language_model_forward.5} parent=79 // pred_fallthru
        _
      // Predicated region
      $region85: #{language_model_forward.5} parent=79 // pred_check
        %p539 = pneg %p71
      $region86: #{language_model_forward.5} parent=79 // pred_check_branch
        %541 = sbr.rel (%p539) target = $region88
      $region87: #{language_model_forward.5} parent=79 // pred_region
        %p542 = scmp.lt.s32.totalorder %s25, 1
        %s543 = scalar_select %p542, %s25, 1
        %s544 = scalar_lea.vmem %s1, %s543
      $region88: #{language_model_forward.5} parent=79 // pred_fallthru
        _
      // Predicated region
      $region89: #{language_model_forward.5} parent=79 // pred_check
        %p545 = pneg %p97
      $region90: #{language_model_forward.5} parent=79 // pred_check_branch
        %547 = sbr.rel (%p545) target = $region92
      $region91: #{language_model_forward.5} parent=79 // pred_region
        %p548 = scmp.lt.s32.totalorder %s25, 1
        %s549 = scalar_select %p548, %s25, 1
        %s550 = smul.addr %s549, 8
        %s551 = scalar_lea.vmem %s2, %s550
      $region92: #{language_model_forward.5} parent=79 // pred_fallthru
        _
    $region80: #{language_model_forward.5} parent=5 // pred_fallthru
      _
    %p552 = scmp.le.s32.totalorder 1, %s25
    %p553 = scmp.lt.s32.totalorder %s25, 3
    %p554 = pnand %p552, %p553
    %p555 = pneg %p554
    // Predicated region
    $region93: #{language_model_forward.5} parent=5 // pred_check
      _
    $region94: #{language_model_forward.5} parent=5 // pred_check_branch
      %557 = sbr.rel (%p554) target = $region96
    $region95: #{language_model_forward.5} parent=5 // pred_region
      %s558 = ssub.s32 %s25, 1
      %p559 = scmp.lt.s32.totalorder %s30, 1
      %s560 = scalar_select %p559, %s30, 1
      %s561 = smul.addr %s560, 8
      %s562 = scalar_lea.vmem %s0, %s561
      %p563 = pneg %p51
      %p564 = pneg %p48
      %p565 = scmp.lt.s32.totalorder %s30, 1
      %s566 = scalar_select %p565, %s30, 1
      %s567 = scalar_lea.vmem %s1, %s566
      %p568 = pneg %p77
      %p569 = pneg %p74
      %p570 = scmp.lt.s32.totalorder %s30, 1
      %s571 = scalar_select %p570, %s30, 1
      %s572 = smul.addr %s571, 8
      %s573 = scalar_lea.vmem %s2, %s572
      %p574 = pneg %p103
      %p575 = pneg %p100
      %p576 = pneg %p124
      %p577 = pneg %p121
      %p578 = pneg %p145
      %p579 = pneg %p142
      %p580 = pneg %p166
      %p581 = pneg %p163
      %p582 = pneg %p187
      %p583 = pneg %p184
      %p584 = pneg %p208
      %p585 = pneg %p205
      %p586 = pneg %p229
      %p587 = pneg %p226
      %p588 = pneg %p250
      %p589 = pneg %p247
      %p590 = pneg %p271
      %p591 = pneg %p268
      %p592 = pneg %p292
      %p593 = pneg %p289
      %p594 = pneg %p313
      %p595 = pneg %p310
      %p596 = pneg %p334
      %p597 = pneg %p331
      %p598 = pneg %p355
      %p599 = pneg %p352
      %p600 = pneg %p376
      %p601 = pneg %p373
      %p602 = pneg %p397
      %p603 = pneg %p394
      %p604 = pneg %p418
      %p605 = pneg %p415
      %p606 = pneg %p439
      %p607 = pneg %p436
      %p608 = pneg %p465
      %p609 = pneg %p462
      %p610 = scmp.lt.s32.totalorder %s30, 1
      %s611 = scalar_select %p610, %s30, 1
      %s612 = smul.addr %s611, 8
      %s613 = scalar_lea.vmem %s19, %s612
      %p614 = scmp.lt.s32.totalorder %s30, 1
      %s615 = scalar_select %p614, %s30, 1
      %s616 = smul.addr %s615, 8
      %s617 = scalar_lea.vmem %s0, %s616
      %p618 = scmp.lt.s32.totalorder %s30, 1
      %s619 = scalar_select %p618, %s30, 1
      %s620 = scalar_lea.vmem %s1, %s619
      %p621 = scmp.lt.s32.totalorder %s30, 1
      %s622 = scalar_select %p621, %s30, 1
      %s623 = smul.addr %s622, 8
      %s624 = scalar_lea.vmem %s2, %s623
      %p625 = scmp.lt.s32.totalorder %s30, 1
      %s626 = scalar_select %p625, %s30, 1
      %s627 = smul.addr %s626, 8
      %s628 = scalar_lea.vmem %s19, %s627
      %v629 = vld [vmem:[%s617] sm:$0xff]
      %v630 = vlaneseq
      %v631 = vshrl.u32 %v630, 7
      %v632 = vlaneseq
      %v633 = vand.u32 %v632, 127
      %vm634 = vcmp.gt.s32.totalorder %v633, %v631
      %v635 = vsel %vm634, -1e+25, 0.0
      %v636 = vld [vmem:[%s620] sm:$0x1]
      %v638 = vlaneseq
      %v639 = vshrl.u32 %v638, 7
      %v640 = vsub.s32 0, %v639
      %v641 = vrot.slane %v636, %v640
      %v643 = vadd.f32 %v635, %v641
      %v644 = vld [vmem:[%s624] sm:$0xff]
      %646 = vset.pattern.permute.xlu0 0
      %647 = vperm.xlu0 %646, %v644
      %v648 = vpop.permute.xlu0 %647
      %v650 = vadd.f32 %v643, %v648
      %v651 = vld [vmem:[%s10] sm:$0x1]
      %v653 = vlaneseq
      %v654 = vshrl.u32 %v653, 7
      %v655 = vsub.s32 0, %v654
      %v656 = vrot.slane %v651, %v655
      %v658 = vadd.f32 %v656, 0.0
      %v659 = vld [vmem:[%s3] sm:$0xff]
      %v660 = vld [vmem:[%s3 + $0x8] sm:$0xff]
      %v661 = vld [vmem:[%s3 + $0x10] sm:$0xff]
      %v662 = vld [vmem:[%s3 + $0x18] sm:$0xff]
      %v663 = vld [vmem:[%s4] sm:$0x1]
      %v665 = vlaneseq
      %v666 = vshrl.u32 %v665, 7
      %v667 = vsub.s32 0, %v666
      %v668 = vrot.slane %v663, %v667
      %vm670 = vcmask 261120
      %v672 = vsel %vm670, %v629, 0
      %674 = vmatprep.subr.mxu0 0.0
      %675 = vmatpush1.msra.mxu0 %v659
      %676 = vmatprep.subr.mxu0 0.0
      %677 = vmatpush1.msra.mxu0 %v660
      %678 = vmatprep.subr.mxu0 0.0
      %679 = vmatpush1.msra.mxu0 %v661
      %680 = vmatprep.subr.mxu0 0.0
      %681 = vmatpush1.msra.mxu0 %v662
      %682 = vmatprep.subr.mxu0 0.0
      %683 = vmatpush1.msra.mxu0 0.0
      %684 = vmatprep.subr.mxu0 0.0
      %685 = vmatpush1.msra.mxu0 0.0
      %686 = vmatprep.subr.mxu0 0.0
      %687 = vmatpush1.msra.mxu0 0.0
      %688 = vmatprep.subr.mxu0 0.0
      %689 = vmatpush1.msra.mxu0 0.0
      %690 = vmatprep.subr.mxu0 0.0
      %691 = vmatpush1.msra.mxu0 0.0
      %692 = vmatprep.subr.mxu0 0.0
      %693 = vmatpush1.msra.mxu0 0.0
      %694 = vmatprep.subr.mxu0 0.0
      %695 = vmatpush1.msra.mxu0 0.0
      %696 = vmatprep.subr.mxu0 0.0
      %697 = vmatpush1.msra.mxu0 0.0
      %698 = vmatprep.subr.mxu0 0.0
      %699 = vmatpush1.msra.mxu0 0.0
      %700 = vmatprep.subr.mxu0 0.0
      %701 = vmatpush1.msra.mxu0 0.0
      %702 = vmatprep.subr.mxu0 0.0
      %703 = vmatpush1.msra.mxu0 0.0
      %704 = vmatprep.subr.mxu0 0.0
      %705 = vmatpush1.msra.mxu0 0.0
      %706 = vmatprep.subr.mxu0 0.0
      %707 = vmatpush1.msra.mxu0 0.0
      %708 = vmatprep.subr.mxu0 0.0
      %709 = vmatpush1.msra.mxu0 0.0
      %710 = vmatprep.subr.mxu0 0.0
      %711 = vmatpush1.msra.mxu0 0.0
      %712 = vmatprep.subr.mxu0 0.0
      %713 = vmatpush1.msra.mxu0 0.0
      %714 = vmatprep.subr.mxu0 0.0
      %715 = vmatpush1.msra.mxu0 0.0
      %716 = vmatprep.subr.mxu0 0.0
      %717 = vmatpush1.msra.mxu0 0.0
      %718 = vmatprep.subr.mxu0 0.0
      %719 = vmatpush1.msra.mxu0 0.0
      %720 = vmatprep.subr.mxu0 0.0
      %721 = vmatpush1.msra.mxu0 0.0
      %722 = vmatprep.subr.mxu0 0.0
      %723 = vmatpush1.msra.mxu0 0.0
      %724 = vmatprep.subr.mxu0 0.0
      %725 = vmatpush1.msra.mxu0 0.0
      %726 = vmatprep.subr.mxu0 0.0
      %727 = vmatpush1.msra.mxu0 0.0
      %728 = vmatprep.subr.mxu0 0.0
      %729 = vmatpush1.msra.mxu0 0.0
      %730 = vmatprep.subr.mxu0 0.0
      %731 = vmatpush1.msra.mxu0 0.0
      %732 = vmatprep.subr.mxu0 0.0
      %733 = vmatpush1.msra.mxu0 0.0
      %734 = vmatprep.subr.mxu0 0.0
      %735 = vmatpush1.msra.mxu0 0.0
      %736 = vmatprep.subr.mxu0 0.0
      %737 = vmatpush1.msra.mxu0 0.0
      %738 = vmatprep.mubr.f32.mxu0 0.0
      %739 = vmatmul.mubr.f32.gmra.mrb[0].mxu0 %v672
      %v740 = vpop.f32.mrb[0].mxu0
      %v741 = vadd.f32 %v668, %v740
      %v742 = vpop.f32.mrb[0].mxu0
      %743 = vdwg.mxu0
      %v744 = vmul.f32 %v741, 0.35355338
      %v745 = vld [vmem:[%s5] sm:$0xff]
      %v746 = vld [vmem:[%s5 + $0x8] sm:$0xff]
      %v747 = vld [vmem:[%s5 + $0x10] sm:$0xff]
      %v748 = vld [vmem:[%s5 + $0x18] sm:$0xff]
      %v749 = vld [vmem:[%s6] sm:$0x1]
      %v751 = vlaneseq
      %v752 = vshrl.u32 %v751, 7
      %v753 = vsub.s32 0, %v752
      %v754 = vrot.slane %v749, %v753
      %756 = vmatprep.subr.mxu0 0.0
      %757 = vmatpush1.msra.mxu0 %v745
      %758 = vmatprep.subr.mxu0 0.0
      %759 = vmatpush1.msra.mxu0 %v746
      %760 = vmatprep.subr.mxu0 0.0
      %761 = vmatpush1.msra.mxu0 %v747
      %762 = vmatprep.subr.mxu0 0.0
      %763 = vmatpush1.msra.mxu0 %v748
      %764 = vmatprep.subr.mxu0 0.0
      %765 = vmatpush1.msra.mxu0 0.0
      %766 = vmatprep.subr.mxu0 0.0
      %767 = vmatpush1.msra.mxu0 0.0
      %768 = vmatprep.subr.mxu0 0.0
      %769 = vmatpush1.msra.mxu0 0.0
      %770 = vmatprep.subr.mxu0 0.0
      %771 = vmatpush1.msra.mxu0 0.0
      %772 = vmatprep.subr.mxu0 0.0
      %773 = vmatpush1.msra.mxu0 0.0
      %774 = vmatprep.subr.mxu0 0.0
      %775 = vmatpush1.msra.mxu0 0.0
      %776 = vmatprep.subr.mxu0 0.0
      %777 = vmatpush1.msra.mxu0 0.0
      %778 = vmatprep.subr.mxu0 0.0
      %779 = vmatpush1.msra.mxu0 0.0
      %780 = vmatprep.subr.mxu0 0.0
      %781 = vmatpush1.msra.mxu0 0.0
      %782 = vmatprep.subr.mxu0 0.0
      %783 = vmatpush1.msra.mxu0 0.0
      %784 = vmatprep.subr.mxu0 0.0
      %785 = vmatpush1.msra.mxu0 0.0
      %786 = vmatprep.subr.mxu0 0.0
      %787 = vmatpush1.msra.mxu0 0.0
      %788 = vmatprep.subr.mxu0 0.0
      %789 = vmatpush1.msra.mxu0 0.0
      %790 = vmatprep.subr.mxu0 0.0
      %791 = vmatpush1.msra.mxu0 0.0
      %792 = vmatprep.subr.mxu0 0.0
      %793 = vmatpush1.msra.mxu0 0.0
      %794 = vmatprep.subr.mxu0 0.0
      %795 = vmatpush1.msra.mxu0 0.0
      %796 = vmatprep.subr.mxu0 0.0
      %797 = vmatpush1.msra.mxu0 0.0
      %798 = vmatprep.subr.mxu0 0.0
      %799 = vmatpush1.msra.mxu0 0.0
      %800 = vmatprep.subr.mxu0 0.0
      %801 = vmatpush1.msra.mxu0 0.0
      %802 = vmatprep.subr.mxu0 0.0
      %803 = vmatpush1.msra.mxu0 0.0
      %804 = vmatprep.subr.mxu0 0.0
      %805 = vmatpush1.msra.mxu0 0.0
      %806 = vmatprep.subr.mxu0 0.0
      %807 = vmatpush1.msra.mxu0 0.0
      %808 = vmatprep.subr.mxu0 0.0
      %809 = vmatpush1.msra.mxu0 0.0
      %810 = vmatprep.subr.mxu0 0.0
      %811 = vmatpush1.msra.mxu0 0.0
      %812 = vmatprep.subr.mxu0 0.0
      %813 = vmatpush1.msra.mxu0 0.0
      %814 = vmatprep.subr.mxu0 0.0
      %815 = vmatpush1.msra.mxu0 0.0
      %816 = vmatprep.subr.mxu0 0.0
      %817 = vmatpush1.msra.mxu0 0.0
      %818 = vmatprep.subr.mxu0 0.0
      %819 = vmatpush1.msra.mxu0 0.0
      %820 = vmatprep.mubr.f32.mxu0 0.0
      %821 = vmatmul.mubr.f32.gmra.mrb[0].mxu0 %v672
      %v822 = vpop.f32.mrb[0].mxu0
      %v823 = vadd.f32 %v754, %v822
      %v824 = vpop.f32.mrb[0].mxu0
      %825 = vdwg.mxu0
      %v826 = vld [vmem:[%s7] sm:$0xff]
      %v827 = vld [vmem:[%s7 + $0x8] sm:$0xff]
      %v828 = vld [vmem:[%s7 + $0x10] sm:$0xff]
      %v829 = vld [vmem:[%s7 + $0x18] sm:$0xff]
      %v830 = vld [vmem:[%s8] sm:$0x1]
      %v832 = vlaneseq
      %v833 = vshrl.u32 %v832, 7
      %v834 = vsub.s32 0, %v833
      %v835 = vrot.slane %v830, %v834
      %837 = vmatprep.subr.mxu0 0.0
      %838 = vmatpush1.msra.mxu0 %v826
      %839 = vmatprep.subr.mxu0 0.0
      %840 = vmatpush1.msra.mxu0 %v827
      %841 = vmatprep.subr.mxu0 0.0
      %842 = vmatpush1.msra.mxu0 %v828
      %843 = vmatprep.subr.mxu0 0.0
      %844 = vmatpush1.msra.mxu0 %v829
      %845 = vmatprep.subr.mxu0 0.0
      %846 = vmatpush1.msra.mxu0 0.0
      %847 = vmatprep.subr.mxu0 0.0
      %848 = vmatpush1.msra.mxu0 0.0
      %849 = vmatprep.subr.mxu0 0.0
      %850 = vmatpush1.msra.mxu0 0.0
      %851 = vmatprep.subr.mxu0 0.0
      %852 = vmatpush1.msra.mxu0 0.0
      %853 = vmatprep.subr.mxu0 0.0
      %854 = vmatpush1.msra.mxu0 0.0
      %855 = vmatprep.subr.mxu0 0.0
      %856 = vmatpush1.msra.mxu0 0.0
      %857 = vmatprep.subr.mxu0 0.0
      %858 = vmatpush1.msra.mxu0 0.0
      %859 = vmatprep.subr.mxu0 0.0
      %860 = vmatpush1.msra.mxu0 0.0
      %861 = vmatprep.subr.mxu0 0.0
      %862 = vmatpush1.msra.mxu0 0.0
      %863 = vmatprep.subr.mxu0 0.0
      %864 = vmatpush1.msra.mxu0 0.0
      %865 = vmatprep.subr.mxu0 0.0
      %866 = vmatpush1.msra.mxu0 0.0
      %867 = vmatprep.subr.mxu0 0.0
      %868 = vmatpush1.msra.mxu0 0.0
      %869 = vmatprep.subr.mxu0 0.0
      %870 = vmatpush1.msra.mxu0 0.0
      %871 = vmatprep.subr.mxu0 0.0
      %872 = vmatpush1.msra.mxu0 0.0
      %873 = vmatprep.subr.mxu0 0.0
      %874 = vmatpush1.msra.mxu0 0.0
      %875 = vmatprep.subr.mxu0 0.0
      %876 = vmatpush1.msra.mxu0 0.0
      %877 = vmatprep.subr.mxu0 0.0
      %878 = vmatpush1.msra.mxu0 0.0
      %879 = vmatprep.subr.mxu0 0.0
      %880 = vmatpush1.msra.mxu0 0.0
      %881 = vmatprep.subr.mxu0 0.0
      %882 = vmatpush1.msra.mxu0 0.0
      %883 = vmatprep.subr.mxu0 0.0
      %884 = vmatpush1.msra.mxu0 0.0
      %885 = vmatprep.subr.mxu0 0.0
      %886 = vmatpush1.msra.mxu0 0.0
      %887 = vmatprep.subr.mxu0 0.0
      %888 = vmatpush1.msra.mxu0 0.0
      %889 = vmatprep.subr.mxu0 0.0
      %890 = vmatpush1.msra.mxu0 0.0
      %891 = vmatprep.subr.mxu0 0.0
      %892 = vmatpush1.msra.mxu0 0.0
      %893 = vmatprep.subr.mxu0 0.0
      %894 = vmatpush1.msra.mxu0 0.0
      %895 = vmatprep.subr.mxu0 0.0
      %896 = vmatpush1.msra.mxu0 0.0
      %897 = vmatprep.subr.mxu0 0.0
      %898 = vmatpush1.msra.mxu0 0.0
      %899 = vmatprep.subr.mxu0 0.0
      %900 = vmatpush1.msra.mxu0 0.0
      %901 = vmatprep.mubr.f32.mxu0 0.0
      %902 = vmatmul.mubr.f32.gmra.mrb[0].mxu0 %v672
      %v903 = vpop.f32.mrb[0].mxu0
      %v904 = vadd.f32 %v835, %v903
      %v905 = vpop.f32.mrb[0].mxu0
      %906 = vdwg.mxu0
      %vm907 = vcmask 64512
      %v909 = vsel %vm907, %v744, 0
      %v912 = vsel %vm907, %v823, 0
      %914 = vmatprep.subr.mxu0 0.0
      %915 = vmatpush1.xpose.msra.mxu0 %v912
      %916 = vmatprep.subr.mxu0 0.0
      %917 = vmatpush1.xpose.msra.mxu0 0.0
      %918 = vmatprep.subr.mxu0 0.0
      %919 = vmatpush1.xpose.msra.mxu0 0.0
      %920 = vmatprep.subr.mxu0 0.0
      %921 = vmatpush1.xpose.msra.mxu0 0.0
      %922 = vmatprep.subr.mxu0 0.0
      %923 = vmatpush1.xpose.msra.mxu0 0.0
      %924 = vmatprep.subr.mxu0 0.0
      %925 = vmatpush1.xpose.msra.mxu0 0.0
      %926 = vmatprep.subr.mxu0 0.0
      %927 = vmatpush1.xpose.msra.mxu0 0.0
      %928 = vmatprep.subr.mxu0 0.0
      %929 = vmatpush1.xpose.msra.mxu0 0.0
      %930 = vmatprep.subr.mxu0 0.0
      %931 = vmatpush1.xpose.msra.mxu0 0.0
      %932 = vmatprep.subr.mxu0 0.0
      %933 = vmatpush1.xpose.msra.mxu0 0.0
      %934 = vmatprep.subr.mxu0 0.0
      %935 = vmatpush1.xpose.msra.mxu0 0.0
      %936 = vmatprep.subr.mxu0 0.0
      %937 = vmatpush1.xpose.msra.mxu0 0.0
      %938 = vmatprep.subr.mxu0 0.0
      %939 = vmatpush1.xpose.msra.mxu0 0.0
      %940 = vmatprep.subr.mxu0 0.0
      %941 = vmatpush1.xpose.msra.mxu0 0.0
      %942 = vmatprep.subr.mxu0 0.0
      %943 = vmatpush1.xpose.msra.mxu0 0.0
      %944 = vmatprep.subr.mxu0 0.0
      %945 = vmatpush1.xpose.msra.mxu0 0.0
      %946 = vmatprep.subr.mxu0 0.0
      %947 = vmatpush1.xpose.msra.mxu0 0.0
      %948 = vmatprep.subr.mxu0 0.0
      %949 = vmatpush1.xpose.msra.mxu0 0.0
      %950 = vmatprep.subr.mxu0 0.0
      %951 = vmatpush1.xpose.msra.mxu0 0.0
      %952 = vmatprep.subr.mxu0 0.0
      %953 = vmatpush1.xpose.msra.mxu0 0.0
      %954 = vmatprep.subr.mxu0 0.0
      %955 = vmatpush1.xpose.msra.mxu0 0.0
      %956 = vmatprep.subr.mxu0 0.0
      %957 = vmatpush1.xpose.msra.mxu0 0.0
      %958 = vmatprep.subr.mxu0 0.0
      %959 = vmatpush1.xpose.msra.mxu0 0.0
      %960 = vmatprep.subr.mxu0 0.0
      %961 = vmatpush1.xpose.msra.mxu0 0.0
      %962 = vmatprep.subr.mxu0 0.0
      %963 = vmatpush1.xpose.msra.mxu0 0.0
      %964 = vmatprep.subr.mxu0 0.0
      %965 = vmatpush1.xpose.msra.mxu0 0.0
      %966 = vmatprep.subr.mxu0 0.0
      %967 = vmatpush1.xpose.msra.mxu0 0.0
      %968 = vmatprep.subr.mxu0 0.0
      %969 = vmatpush1.xpose.msra.mxu0 0.0
      %970 = vmatprep.subr.mxu0 0.0
      %971 = vmatpush1.xpose.msra.mxu0 0.0
      %972 = vmatprep.subr.mxu0 0.0
      %973 = vmatpush1.xpose.msra.mxu0 0.0
      %974 = vmatprep.subr.mxu0 0.0
      %975 = vmatpush1.xpose.msra.mxu0 0.0
      %976 = vmatprep.subr.mxu0 0.0
      %977 = vmatpush1.xpose.msra.mxu0 0.0
      %978 = vmatprep.mubr.f32.mxu0 0.0
      %979 = vmatmul.mubr.f32.gmra.mrb[0].mxu0 %v909
      %v980 = vpop.f32.mrb[0].mxu0
      %v981 = vadd.f32 %v650, %v980
      %v982 = vpop.f32.mrb[0].mxu0
      %983 = vdwg.mxu0
      %v984 = vsel %vm907, %v981, -inf
      %985 = vmax.xlane.f32.xlu0 %v984
      %v986 = vpop.xlane.xlu0 %985
      %v987 = vsub.f32 %v981, %v986
      %v988 = vmul.f32 %v987, 1.442695
      %v989 = vpow.pop %v988
      %v990 = vsel %vm907, %v989, 0.0
      %991 = vadd.xlane.f32.xlu0 %v990
      %v992 = vpop.xlane.xlu0 %991
      %v993 = vrcp.pop %v992
      %v994 = vmul.f32 %v989, %v993
      %v996 = vsel %vm907, %v994, 0
      %998 = vmatprep.subr.mxu0 0.0
      %999 = vmatpush1.msra.mxu0 %v904
      %1000 = vmatprep.subr.mxu0 0.0
      %1001 = vmatpush1.msra.mxu0 0.0
      %1002 = vmatprep.subr.mxu0 0.0
      %1003 = vmatpush1.msra.mxu0 0.0
      %1004 = vmatprep.subr.mxu0 0.0
      %1005 = vmatpush1.msra.mxu0 0.0
      %1006 = vmatprep.subr.mxu0 0.0
      %1007 = vmatpush1.msra.mxu0 0.0
      %1008 = vmatprep.subr.mxu0 0.0
      %1009 = vmatpush1.msra.mxu0 0.0
      %1010 = vmatprep.subr.mxu0 0.0
      %1011 = vmatpush1.msra.mxu0 0.0
      %1012 = vmatprep.subr.mxu0 0.0
      %1013 = vmatpush1.msra.mxu0 0.0
      %1014 = vmatprep.subr.mxu0 0.0
      %1015 = vmatpush1.msra.mxu0 0.0
      %1016 = vmatprep.subr.mxu0 0.0
      %1017 = vmatpush1.msra.mxu0 0.0
      %1018 = vmatprep.subr.mxu0 0.0
      %1019 = vmatpush1.msra.mxu0 0.0
      %1020 = vmatprep.subr.mxu0 0.0
      %1021 = vmatpush1.msra.mxu0 0.0
      %1022 = vmatprep.subr.mxu0 0.0
      %1023 = vmatpush1.msra.mxu0 0.0
      %1024 = vmatprep.subr.mxu0 0.0
      %1025 = vmatpush1.msra.mxu0 0.0
      %1026 = vmatprep.subr.mxu0 0.0
      %1027 = vmatpush1.msra.mxu0 0.0
      %1028 = vmatprep.subr.mxu0 0.0
      %1029 = vmatpush1.msra.mxu0 0.0
      %1030 = vmatprep.subr.mxu0 0.0
      %1031 = vmatpush1.msra.mxu0 0.0
      %1032 = vmatprep.subr.mxu0 0.0
      %1033 = vmatpush1.msra.mxu0 0.0
      %1034 = vmatprep.subr.mxu0 0.0
      %1035 = vmatpush1.msra.mxu0 0.0
      %1036 = vmatprep.subr.mxu0 0.0
      %1037 = vmatpush1.msra.mxu0 0.0
      %1038 = vmatprep.subr.mxu0 0.0
      %1039 = vmatpush1.msra.mxu0 0.0
      %1040 = vmatprep.subr.mxu0 0.0
      %1041 = vmatpush1.msra.mxu0 0.0
      %1042 = vmatprep.subr.mxu0 0.0
      %1043 = vmatpush1.msra.mxu0 0.0
      %1044 = vmatprep.subr.mxu0 0.0
      %1045 = vmatpush1.msra.mxu0 0.0
      %1046 = vmatprep.subr.mxu0 0.0
      %1047 = vmatpush1.msra.mxu0 0.0
      %1048 = vmatprep.subr.mxu0 0.0
      %1049 = vmatpush1.msra.mxu0 0.0
      %1050 = vmatprep.subr.mxu0 0.0
      %1051 = vmatpush1.msra.mxu0 0.0
      %1052 = vmatprep.subr.mxu0 0.0
      %1053 = vmatpush1.msra.mxu0 0.0
      %1054 = vmatprep.subr.mxu0 0.0
      %1055 = vmatpush1.msra.mxu0 0.0
      %1056 = vmatprep.subr.mxu0 0.0
      %1057 = vmatpush1.msra.mxu0 0.0
      %1058 = vmatprep.subr.mxu0 0.0
      %1059 = vmatpush1.msra.mxu0 0.0
      %1060 = vmatprep.subr.mxu0 0.0
      %1061 = vmatpush1.msra.mxu0 0.0
      %1062 = vmatprep.mubr.f32.mxu0 0.0
      %1063 = vmatmul.mubr.f32.gmra.mrb[0].mxu0 %v996
      %v1064 = vpop.f32.mrb[0].mxu0
      %v1065 = vadd.f32 0.0, %v1064
      %v1066 = vpop.f32.mrb[0].mxu0
      %1067 = vdwg.mxu0
      %v1068 = vld [vmem:[%s9] sm:$0xff]
      %v1070 = vsel %vm907, %v1065, 0
      %1072 = vmatprep.subr.mxu0 0.0
      %1073 = vmatpush1.msra.mxu0 %v1068
      %1074 = vmatprep.subr.mxu0 0.0
      %1075 = vmatpush1.msra.mxu0 0.0
      %1076 = vmatprep.subr.mxu0 0.0
      %1077 = vmatpush1.msra.mxu0 0.0
      %1078 = vmatprep.subr.mxu0 0.0
      %1079 = vmatpush1.msra.mxu0 0.0
      %1080 = vmatprep.subr.mxu0 0.0
      %1081 = vmatpush1.msra.mxu0 0.0
      %1082 = vmatprep.subr.mxu0 0.0
      %1083 = vmatpush1.msra.mxu0 0.0
      %1084 = vmatprep.subr.mxu0 0.0
      %1085 = vmatpush1.msra.mxu0 0.0
      %1086 = vmatprep.subr.mxu0 0.0
      %1087 = vmatpush1.msra.mxu0 0.0
      %1088 = vmatprep.subr.mxu0 0.0
      %1089 = vmatpush1.msra.mxu0 0.0
      %1090 = vmatprep.subr.mxu0 0.0
      %1091 = vmatpush1.msra.mxu0 0.0
      %1092 = vmatprep.subr.mxu0 0.0
      %1093 = vmatpush1.msra.mxu0 0.0
      %1094 = vmatprep.subr.mxu0 0.0
      %1095 = vmatpush1.msra.mxu0 0.0
      %1096 = vmatprep.subr.mxu0 0.0
      %1097 = vmatpush1.msra.mxu0 0.0
      %1098 = vmatprep.subr.mxu0 0.0
      %1099 = vmatpush1.msra.mxu0 0.0
      %1100 = vmatprep.subr.mxu0 0.0
      %1101 = vmatpush1.msra.mxu0 0.0
      %1102 = vmatprep.subr.mxu0 0.0
      %1103 = vmatpush1.msra.mxu0 0.0
      %1104 = vmatprep.subr.mxu0 0.0
      %1105 = vmatpush1.msra.mxu0 0.0
      %1106 = vmatprep.subr.mxu0 0.0
      %1107 = vmatpush1.msra.mxu0 0.0
      %1108 = vmatprep.subr.mxu0 0.0
      %1109 = vmatpush1.msra.mxu0 0.0
      %1110 = vmatprep.subr.mxu0 0.0
      %1111 = vmatpush1.msra.mxu0 0.0
      %1112 = vmatprep.subr.mxu0 0.0
      %1113 = vmatpush1.msra.mxu0 0.0
      %1114 = vmatprep.subr.mxu0 0.0
      %1115 = vmatpush1.msra.mxu0 0.0
      %1116 = vmatprep.subr.mxu0 0.0
      %1117 = vmatpush1.msra.mxu0 0.0
      %1118 = vmatprep.subr.mxu0 0.0
      %1119 = vmatpush1.msra.mxu0 0.0
      %1120 = vmatprep.subr.mxu0 0.0
      %1121 = vmatpush1.msra.mxu0 0.0
      %1122 = vmatprep.subr.mxu0 0.0
      %1123 = vmatpush1.msra.mxu0 0.0
      %1124 = vmatprep.subr.mxu0 0.0
      %1125 = vmatpush1.msra.mxu0 0.0
      %1126 = vmatprep.subr.mxu0 0.0
      %1127 = vmatpush1.msra.mxu0 0.0
      %1128 = vmatprep.subr.mxu0 0.0
      %1129 = vmatpush1.msra.mxu0 0.0
      %1130 = vmatprep.subr.mxu0 0.0
      %1131 = vmatpush1.msra.mxu0 0.0
      %1132 = vmatprep.subr.mxu0 0.0
      %1133 = vmatpush1.msra.mxu0 0.0
      %1134 = vmatprep.subr.mxu0 0.0
      %1135 = vmatpush1.msra.mxu0 0.0
      %1136 = vmatprep.mubr.f32.mxu0 0.0
      %1137 = vmatmul.mubr.f32.gmra.mrb[0].mxu0 %v1070
      %v1138 = vpop.f32.mrb[0].mxu0
      %v1139 = vadd.f32 0.0, %v1138
      %v1140 = vpop.f32.mrb[0].mxu0
      %1141 = vdwg.mxu0
      %v1142 = vadd.f32 %v658, %v1139
      %s1143 = scalar_lea.vmem %s3, 32
      %v1144 = vld [vmem:[%s1143] sm:$0xff]
      %v1145 = vld [vmem:[%s1143 + $0x8] sm:$0xff]
      %v1146 = vld [vmem:[%s1143 + $0x10] sm:$0xff]
      %v1147 = vld [vmem:[%s1143 + $0x18] sm:$0xff]
      %s1148 = scalar_lea.vmem %s4, 1
      %v1149 = vld [vmem:[%s1148] sm:$0x1]
      %v1151 = vlaneseq
      %v1152 = vshrl.u32 %v1151, 7
      %v1153 = vsub.s32 0, %v1152
      %v1154 = vrot.slane %v1149, %v1153
      %1156 = vmatprep.subr.mxu0 0.0
      %1157 = vmatpush1.msra.mxu0 %v1144
      %1158 = vmatprep.subr.mxu0 0.0
      %1159 = vmatpush1.msra.mxu0 %v1145
      %1160 = vmatprep.subr.mxu0 0.0
      %1161 = vmatpush1.msra.mxu0 %v1146
      %1162 = vmatprep.subr.mxu0 0.0
      %1163 = vmatpush1.msra.mxu0 %v1147
      %1164 = vmatprep.subr.mxu0 0.0
      %1165 = vmatpush1.msra.mxu0 0.0
      %1166 = vmatprep.subr.mxu0 0.0
      %1167 = vmatpush1.msra.mxu0 0.0
      %1168 = vmatprep.subr.mxu0 0.0
      %1169 = vmatpush1.msra.mxu0 0.0
      %1170 = vmatprep.subr.mxu0 0.0
      %1171 = vmatpush1.msra.mxu0 0.0
      %1172 = vmatprep.subr.mxu0 0.0
      %1173 = vmatpush1.msra.mxu0 0.0
      %1174 = vmatprep.subr.mxu0 0.0
      %1175 = vmatpush1.msra.mxu0 0.0
      %1176 = vmatprep.subr.mxu0 0.0
      %1177 = vmatpush1.msra.mxu0 0.0
      %1178 = vmatprep.subr.mxu0 0.0
      %1179 = vmatpush1.msra.mxu0 0.0
      %1180 = vmatprep.subr.mxu0 0.0
      %1181 = vmatpush1.msra.mxu0 0.0
      %1182 = vmatprep.subr.mxu0 0.0
      %1183 = vmatpush1.msra.mxu0 0.0
      %1184 = vmatprep.subr.mxu0 0.0
      %1185 = vmatpush1.msra.mxu0 0.0
      %1186 = vmatprep.subr.mxu0 0.0
      %1187 = vmatpush1.msra.mxu0 0.0
      %1188 = vmatprep.subr.mxu0 0.0
      %1189 = vmatpush1.msra.mxu0 0.0
      %1190 = vmatprep.subr.mxu0 0.0
      %1191 = vmatpush1.msra.mxu0 0.0
      %1192 = vmatprep.subr.mxu0 0.0
      %1193 = vmatpush1.msra.mxu0 0.0
      %1194 = vmatprep.subr.mxu0 0.0
      %1195 = vmatpush1.msra.mxu0 0.0
      %1196 = vmatprep.subr.mxu0 0.0
      %1197 = vmatpush1.msra.mxu0 0.0
      %1198 = vmatprep.subr.mxu0 0.0
      %1199 = vmatpush1.msra.mxu0 0.0
      %1200 = vmatprep.subr.mxu0 0.0
      %1201 = vmatpush1.msra.mxu0 0.0
      %1202 = vmatprep.subr.mxu0 0.0
      %1203 = vmatpush1.msra.mxu0 0.0
      %1204 = vmatprep.subr.mxu0 0.0
      %1205 = vmatpush1.msra.mxu0 0.0
      %1206 = vmatprep.subr.mxu0 0.0
      %1207 = vmatpush1.msra.mxu0 0.0
      %1208 = vmatprep.subr.mxu0 0.0
      %1209 = vmatpush1.msra.mxu0 0.0
      %1210 = vmatprep.subr.mxu0 0.0
      %1211 = vmatpush1.msra.mxu0 0.0
      %1212 = vmatprep.subr.mxu0 0.0
      %1213 = vmatpush1.msra.mxu0 0.0
      %1214 = vmatprep.subr.mxu0 0.0
      %1215 = vmatpush1.msra.mxu0 0.0
      %1216 = vmatprep.subr.mxu0 0.0
      %1217 = vmatpush1.msra.mxu0 0.0
      %1218 = vmatprep.subr.mxu0 0.0
      %1219 = vmatpush1.msra.mxu0 0.0
      %1220 = vmatprep.mubr.f32.mxu0 0.0
      %1221 = vmatmul.mubr.f32.gmra.mrb[0].mxu0 %v672
      %v1222 = vpop.f32.mrb[0].mxu0
      %v1223 = vadd.f32 %v1154, %v1222
      %v1224 = vpop.f32.mrb[0].mxu0
      %1225 = vdwg.mxu0
      %v1226 = vmul.f32 %v1223, 0.35355338
      %s1227 = scalar_lea.vmem %s5, 32
      %v1228 = vld [vmem:[%s1227] sm:$0xff]
      %v1229 = vld [vmem:[%s1227 + $0x8] sm:$0xff]
      %v1230 = vld [vmem:[%s1227 + $0x10] sm:$0xff]
      %v1231 = vld [vmem:[%s1227 + $0x18] sm:$0xff]
      %s1232 = scalar_lea.vmem %s6, 1
      %v1233 = vld [vmem:[%s1232] sm:$0x1]
      %v1235 = vlaneseq
      %v1236 = vshrl.u32 %v1235, 7
      %v1237 = vsub.s32 0, %v1236
      %v1238 = vrot.slane %v1233, %v1237
      %1240 = vmatprep.subr.mxu0 0.0
      %1241 = vmatpush1.msra.mxu0 %v1228
      %1242 = vmatprep.subr.mxu0 0.0
      %1243 = vmatpush1.msra.mxu0 %v1229
      %1244 = vmatprep.subr.mxu0 0.0
      %1245 = vmatpush1.msra.mxu0 %v1230
      %1246 = vmatprep.subr.mxu0 0.0
      %1247 = vmatpush1.msra.mxu0 %v1231
      %1248 = vmatprep.subr.mxu0 0.0
      %1249 = vmatpush1.msra.mxu0 0.0
      %1250 = vmatprep.subr.mxu0 0.0
      %1251 = vmatpush1.msra.mxu0 0.0
      %1252 = vmatprep.subr.mxu0 0.0
      %1253 = vmatpush1.msra.mxu0 0.0
      %1254 = vmatprep.subr.mxu0 0.0
      %1255 = vmatpush1.msra.mxu0 0.0
      %1256 = vmatprep.subr.mxu0 0.0
      %1257 = vmatpush1.msra.mxu0 0.0
      %1258 = vmatprep.subr.mxu0 0.0
      %1259 = vmatpush1.msra.mxu0 0.0
      %1260 = vmatprep.subr.mxu0 0.0
      %1261 = vmatpush1.msra.mxu0 0.0
      %1262 = vmatprep.subr.mxu0 0.0
      %1263 = vmatpush1.msra.mxu0 0.0
      %1264 = vmatprep.subr.mxu0 0.0
      %1265 = vmatpush1.msra.mxu0 0.0
      %1266 = vmatprep.subr.mxu0 0.0
      %1267 = vmatpush1.msra.mxu0 0.0
      %1268 = vmatprep.subr.mxu0 0.0
      %1269 = vmatpush1.msra.mxu0 0.0
      %1270 = vmatprep.subr.mxu0 0.0
      %1271 = vmatpush1.msra.mxu0 0.0
      %1272 = vmatprep.subr.mxu0 0.0
      %1273 = vmatpush1.msra.mxu0 0.0
      %1274 = vmatprep.subr.mxu0 0.0
      %1275 = vmatpush1.msra.mxu0 0.0
      %1276 = vmatprep.subr.mxu0 0.0
      %1277 = vmatpush1.msra.mxu0 0.0
      %1278 = vmatprep.subr.mxu0 0.0
      %1279 = vmatpush1.msra.mxu0 0.0
      %1280 = vmatprep.subr.mxu0 0.0
      %1281 = vmatpush1.msra.mxu0 0.0
      %1282 = vmatprep.subr.mxu0 0.0
      %1283 = vmatpush1.msra.mxu0 0.0
      %1284 = vmatprep.subr.mxu0 0.0
      %1285 = vmatpush1.msra.mxu0 0.0
      %1286 = vmatprep.subr.mxu0 0.0
      %1287 = vmatpush1.msra.mxu0 0.0
      %1288 = vmatprep.subr.mxu0 0.0
      %1289 = vmatpush1.msra.mxu0 0.0
      %1290 = vmatprep.subr.mxu0 0.0
      %1291 = vmatpush1.msra.mxu0 0.0
      %1292 = vmatprep.subr.mxu0 0.0
      %1293 = vmatpush1.msra.mxu0 0.0
      %1294 = vmatprep.subr.mxu0 0.0
      %1295 = vmatpush1.msra.mxu0 0.0
      %1296 = vmatprep.subr.mxu0 0.0
      %1297 = vmatpush1.msra.mxu0 0.0
      %1298 = vmatprep.subr.mxu0 0.0
      %1299 = vmatpush1.msra.mxu0 0.0
      %1300 = vmatprep.subr.mxu0 0.0
      %1301 = vmatpush1.msra.mxu0 0.0
      %1302 = vmatprep.subr.mxu0 0.0
      %1303 = vmatpush1.msra.mxu0 0.0
      %1304 = vmatprep.mubr.f32.mxu0 0.0
      %1305 = vmatmul.mubr.f32.gmra.mrb[0].mxu0 %v672
      %v1306 = vpop.f32.mrb[0].mxu0
      %v1307 = vadd.f32 %v1238, %v1306
      %v1308 = vpop.f32.mrb[0].mxu0
      %1309 = vdwg.mxu0
      %s1310 = scalar_lea.vmem %s7, 32
      %v1311 = vld [vmem:[%s1310] sm:$0xff]
      %v1312 = vld [vmem:[%s1310 + $0x8] sm:$0xff]
      %v1313 = vld [vmem:[%s1310 + $0x10] sm:$0xff]
      %v1314 = vld [vmem:[%s1310 + $0x18] sm:$0xff]
      %s1315 = scalar_lea.vmem %s8, 1
      %v1316 = vld [vmem:[%s1315] sm:$0x1]
      %v1318 = vlaneseq
      %v1319 = vshrl.u32 %v1318, 7
      %v1320 = vsub.s32 0, %v1319
      %v1321 = vrot.slane %v1316, %v1320
      %1323 = vmatprep.subr.mxu0 0.0
      %1324 = vmatpush1.msra.mxu0 %v1311
      %1325 = vmatprep.subr.mxu0 0.0
      %1326 = vmatpush1.msra.mxu0 %v1312
      %1327 = vmatprep.subr.mxu0 0.0
      %1328 = vmatpush1.msra.mxu0 %v1313
      %1329 = vmatprep.subr.mxu0 0.0
      %1330 = vmatpush1.msra.mxu0 %v1314
      %1331 = vmatprep.subr.mxu0 0.0
      %1332 = vmatpush1.msra.mxu0 0.0
      %1333 = vmatprep.subr.mxu0 0.0
      %1334 = vmatpush1.msra.mxu0 0.0
      %1335 = vmatprep.subr.mxu0 0.0
      %1336 = vmatpush1.msra.mxu0 0.0
      %1337 = vmatprep.subr.mxu0 0.0
      %1338 = vmatpush1.msra.mxu0 0.0
      %1339 = vmatprep.subr.mxu0 0.0
      %1340 = vmatpush1.msra.mxu0 0.0
      %1341 = vmatprep.subr.mxu0 0.0
      %1342 = vmatpush1.msra.mxu0 0.0
      %1343 = vmatprep.subr.mxu0 0.0
      %1344 = vmatpush1.msra.mxu0 0.0
      %1345 = vmatprep.subr.mxu0 0.0
      %1346 = vmatpush1.msra.mxu0 0.0
      %1347 = vmatprep.subr.mxu0 0.0
      %1348 = vmatpush1.msra.mxu0 0.0
      %1349 = vmatprep.subr.mxu0 0.0
      %1350 = vmatpush1.msra.mxu0 0.0
      %1351 = vmatprep.subr.mxu0 0.0
      %1352 = vmatpush1.msra.mxu0 0.0
      %1353 = vmatprep.subr.mxu0 0.0
      %1354 = vmatpush1.msra.mxu0 0.0
      %1355 = vmatprep.subr.mxu0 0.0
      %1356 = vmatpush1.msra.mxu0 0.0
      %1357 = vmatprep.subr.mxu0 0.0
      %1358 = vmatpush1.msra.mxu0 0.0
      %1359 = vmatprep.subr.mxu0 0.0
      %1360 = vmatpush1.msra.mxu0 0.0
      %1361 = vmatprep.subr.mxu0 0.0
      %1362 = vmatpush1.msra.mxu0 0.0
      %1363 = vmatprep.subr.mxu0 0.0
      %1364 = vmatpush1.msra.mxu0 0.0
      %1365 = vmatprep.subr.mxu0 0.0
      %1366 = vmatpush1.msra.mxu0 0.0
      %1367 = vmatprep.subr.mxu0 0.0
      %1368 = vmatpush1.msra.mxu0 0.0
      %1369 = vmatprep.subr.mxu0 0.0
      %1370 = vmatpush1.msra.mxu0 0.0
      %1371 = vmatprep.subr.mxu0 0.0
      %1372 = vmatpush1.msra.mxu0 0.0
      %1373 = vmatprep.subr.mxu0 0.0
      %1374 = vmatpush1.msra.mxu0 0.0
      %1375 = vmatprep.subr.mxu0 0.0
      %1376 = vmatpush1.msra.mxu0 0.0
      %1377 = vmatprep.subr.mxu0 0.0
      %1378 = vmatpush1.msra.mxu0 0.0
      %1379 = vmatprep.subr.mxu0 0.0
      %1380 = vmatpush1.msra.mxu0 0.0
      %1381 = vmatprep.subr.mxu0 0.0
      %1382 = vmatpush1.msra.mxu0 0.0
      %1383 = vmatprep.subr.mxu0 0.0
      %1384 = vmatpush1.msra.mxu0 0.0
      %1385 = vmatprep.subr.mxu0 0.0
      %1386 = vmatpush1.msra.mxu0 0.0
      %1387 = vmatprep.mubr.f32.mxu0 0.0
      %1388 = vmatmul.mubr.f32.gmra.mrb[0].mxu0 %v672
      %v1389 = vpop.f32.mrb[0].mxu0
      %v1390 = vadd.f32 %v1321, %v1389
      %v1391 = vpop.f32.mrb[0].mxu0
      %1392 = vdwg.mxu0
      %v1394 = vsel %vm907, %v1226, 0
      %v1397 = vsel %vm907, %v1307, 0
      %1399 = vmatprep.subr.mxu0 0.0
      %1400 = vmatpush1.xpose.msra.mxu0 %v1397
      %1401 = vmatprep.subr.mxu0 0.0
      %1402 = vmatpush1.xpose.msra.mxu0 0.0
      %1403 = vmatprep.subr.mxu0 0.0
      %1404 = vmatpush1.xpose.msra.mxu0 0.0
      %1405 = vmatprep.subr.mxu0 0.0
      %1406 = vmatpush1.xpose.msra.mxu0 0.0
      %1407 = vmatprep.subr.mxu0 0.0
      %1408 = vmatpush1.xpose.msra.mxu0 0.0
      %1409 = vmatprep.subr.mxu0 0.0
      %1410 = vmatpush1.xpose.msra.mxu0 0.0
      %1411 = vmatprep.subr.mxu0 0.0
      %1412 = vmatpush1.xpose.msra.mxu0 0.0
      %1413 = vmatprep.subr.mxu0 0.0
      %1414 = vmatpush1.xpose.msra.mxu0 0.0
      %1415 = vmatprep.subr.mxu0 0.0
      %1416 = vmatpush1.xpose.msra.mxu0 0.0
      %1417 = vmatprep.subr.mxu0 0.0
      %1418 = vmatpush1.xpose.msra.mxu0 0.0
      %1419 = vmatprep.subr.mxu0 0.0
      %1420 = vmatpush1.xpose.msra.mxu0 0.0
      %1421 = vmatprep.subr.mxu0 0.0
      %1422 = vmatpush1.xpose.msra.mxu0 0.0
      %1423 = vmatprep.subr.mxu0 0.0
      %1424 = vmatpush1.xpose.msra.mxu0 0.0
      %1425 = vmatprep.subr.mxu0 0.0
      %1426 = vmatpush1.xpose.msra.mxu0 0.0
      %1427 = vmatprep.subr.mxu0 0.0
      %1428 = vmatpush1.xpose.msra.mxu0 0.0
      %1429 = vmatprep.subr.mxu0 0.0
      %1430 = vmatpush1.xpose.msra.mxu0 0.0
      %1431 = vmatprep.subr.mxu0 0.0
      %1432 = vmatpush1.xpose.msra.mxu0 0.0
      %1433 = vmatprep.subr.mxu0 0.0
      %1434 = vmatpush1.xpose.msra.mxu0 0.0
      %1435 = vmatprep.subr.mxu0 0.0
      %1436 = vmatpush1.xpose.msra.mxu0 0.0
      %1437 = vmatprep.subr.mxu0 0.0
      %1438 = vmatpush1.xpose.msra.mxu0 0.0
      %1439 = vmatprep.subr.mxu0 0.0
      %1440 = vmatpush1.xpose.msra.mxu0 0.0
      %1441 = vmatprep.subr.mxu0 0.0
      %1442 = vmatpush1.xpose.msra.mxu0 0.0
      %1443 = vmatprep.subr.mxu0 0.0
      %1444 = vmatpush1.xpose.msra.mxu0 0.0
      %1445 = vmatprep.subr.mxu0 0.0
      %1446 = vmatpush1.xpose.msra.mxu0 0.0
      %1447 = vmatprep.subr.mxu0 0.0
      %1448 = vmatpush1.xpose.msra.mxu0 0.0
      %1449 = vmatprep.subr.mxu0 0.0
      %1450 = vmatpush1.xpose.msra.mxu0 0.0
      %1451 = vmatprep.subr.mxu0 0.0
      %1452 = vmatpush1.xpose.msra.mxu0 0.0
      %1453 = vmatprep.subr.mxu0 0.0
      %1454 = vmatpush1.xpose.msra.mxu0 0.0
      %1455 = vmatprep.subr.mxu0 0.0
      %1456 = vmatpush1.xpose.msra.mxu0 0.0
      %1457 = vmatprep.subr.mxu0 0.0
      %1458 = vmatpush1.xpose.msra.mxu0 0.0
      %1459 = vmatprep.subr.mxu0 0.0
      %1460 = vmatpush1.xpose.msra.mxu0 0.0
      %1461 = vmatprep.subr.mxu0 0.0
      %1462 = vmatpush1.xpose.msra.mxu0 0.0
      %1463 = vmatprep.mubr.f32.mxu0 0.0
      %1464 = vmatmul.mubr.f32.gmra.mrb[0].mxu0 %v1394
      %v1465 = vpop.f32.mrb[0].mxu0
      %v1466 = vadd.f32 %v650, %v1465
      %v1467 = vpop.f32.mrb[0].mxu0
      %1468 = vdwg.mxu0
      %v1469 = vsel %vm907, %v1466, -inf
      %1470 = vmax.xlane.f32.xlu0 %v1469
      %v1471 = vpop.xlane.xlu0 %1470
      %v1472 = vsub.f32 %v1466, %v1471
      %v1473 = vmul.f32 %v1472, 1.442695
      %v1474 = vpow.pop %v1473
      %v1475 = vsel %vm907, %v1474, 0.0
      %1476 = vadd.xlane.f32.xlu0 %v1475
      %v1477 = vpop.xlane.xlu0 %1476
      %v1478 = vrcp.pop %v1477
      %v1479 = vmul.f32 %v1474, %v1478
      %v1481 = vsel %vm907, %v1479, 0
      %1483 = vmatprep.subr.mxu0 0.0
      %1484 = vmatpush1.msra.mxu0 %v1390
      %1485 = vmatprep.subr.mxu0 0.0
      %1486 = vmatpush1.msra.mxu0 0.0
      %1487 = vmatprep.subr.mxu0 0.0
      %1488 = vmatpush1.msra.mxu0 0.0
      %1489 = vmatprep.subr.mxu0 0.0
      %1490 = vmatpush1.msra.mxu0 0.0
      %1491 = vmatprep.subr.mxu0 0.0
      %1492 = vmatpush1.msra.mxu0 0.0
      %1493 = vmatprep.subr.mxu0 0.0
      %1494 = vmatpush1.msra.mxu0 0.0
      %1495 = vmatprep.subr.mxu0 0.0
      %1496 = vmatpush1.msra.mxu0 0.0
      %1497 = vmatprep.subr.mxu0 0.0
      %1498 = vmatpush1.msra.mxu0 0.0
      %1499 = vmatprep.subr.mxu0 0.0
      %1500 = vmatpush1.msra.mxu0 0.0
      %1501 = vmatprep.subr.mxu0 0.0
      %1502 = vmatpush1.msra.mxu0 0.0
      %1503 = vmatprep.subr.mxu0 0.0
      %1504 = vmatpush1.msra.mxu0 0.0
      %1505 = vmatprep.subr.mxu0 0.0
      %1506 = vmatpush1.msra.mxu0 0.0
      %1507 = vmatprep.subr.mxu0 0.0
      %1508 = vmatpush1.msra.mxu0 0.0
      %1509 = vmatprep.subr.mxu0 0.0
      %1510 = vmatpush1.msra.mxu0 0.0
      %1511 = vmatprep.subr.mxu0 0.0
      %1512 = vmatpush1.msra.mxu0 0.0
      %1513 = vmatprep.subr.mxu0 0.0
      %1514 = vmatpush1.msra.mxu0 0.0
      %1515 = vmatprep.subr.mxu0 0.0
      %1516 = vmatpush1.msra.mxu0 0.0
      %1517 = vmatprep.subr.mxu0 0.0
      %1518 = vmatpush1.msra.mxu0 0.0
      %1519 = vmatprep.subr.mxu0 0.0
      %1520 = vmatpush1.msra.mxu0 0.0
      %1521 = vmatprep.subr.mxu0 0.0
      %1522 = vmatpush1.msra.mxu0 0.0
      %1523 = vmatprep.subr.mxu0 0.0
      %1524 = vmatpush1.msra.mxu0 0.0
      %1525 = vmatprep.subr.mxu0 0.0
      %1526 = vmatpush1.msra.mxu0 0.0
      %1527 = vmatprep.subr.mxu0 0.0
      %1528 = vmatpush1.msra.mxu0 0.0
      %1529 = vmatprep.subr.mxu0 0.0
      %1530 = vmatpush1.msra.mxu0 0.0
      %1531 = vmatprep.subr.mxu0 0.0
      %1532 = vmatpush1.msra.mxu0 0.0
      %1533 = vmatprep.subr.mxu0 0.0
      %1534 = vmatpush1.msra.mxu0 0.0
      %1535 = vmatprep.subr.mxu0 0.0
      %1536 = vmatpush1.msra.mxu0 0.0
      %1537 = vmatprep.subr.mxu0 0.0
      %1538 = vmatpush1.msra.mxu0 0.0
      %1539 = vmatprep.subr.mxu0 0.0
      %1540 = vmatpush1.msra.mxu0 0.0
      %1541 = vmatprep.subr.mxu0 0.0
      %1542 = vmatpush1.msra.mxu0 0.0
      %1543 = vmatprep.subr.mxu0 0.0
      %1544 = vmatpush1.msra.mxu0 0.0
      %1545 = vmatprep.subr.mxu0 0.0
      %1546 = vmatpush1.msra.mxu0 0.0
      %1547 = vmatprep.mubr.f32.mxu0 0.0
      %1548 = vmatmul.mubr.f32.gmra.mrb[0].mxu0 %v1481
      %v1549 = vpop.f32.mrb[0].mxu0
      %v1550 = vadd.f32 0.0, %v1549
      %v1551 = vpop.f32.mrb[0].mxu0
      %1552 = vdwg.mxu0
      %s1553 = scalar_lea.vmem %s9, 8
      %v1554 = vld [vmem:[%s1553] sm:$0xff]
      %v1556 = vsel %vm907, %v1550, 0
      %1558 = vmatprep.subr.mxu0 0.0
      %1559 = vmatpush1.msra.mxu0 %v1554
      %1560 = vmatprep.subr.mxu0 0.0
      %1561 = vmatpush1.msra.mxu0 0.0
      %1562 = vmatprep.subr.mxu0 0.0
      %1563 = vmatpush1.msra.mxu0 0.0
      %1564 = vmatprep.subr.mxu0 0.0
      %1565 = vmatpush1.msra.mxu0 0.0
      %1566 = vmatprep.subr.mxu0 0.0
      %1567 = vmatpush1.msra.mxu0 0.0
      %1568 = vmatprep.subr.mxu0 0.0
      %1569 = vmatpush1.msra.mxu0 0.0
      %1570 = vmatprep.subr.mxu0 0.0
      %1571 = vmatpush1.msra.mxu0 0.0
      %1572 = vmatprep.subr.mxu0 0.0
      %1573 = vmatpush1.msra.mxu0 0.0
      %1574 = vmatprep.subr.mxu0 0.0
      %1575 = vmatpush1.msra.mxu0 0.0
      %1576 = vmatprep.subr.mxu0 0.0
      %1577 = vmatpush1.msra.mxu0 0.0
      %1578 = vmatprep.subr.mxu0 0.0
      %1579 = vmatpush1.msra.mxu0 0.0
      %1580 = vmatprep.subr.mxu0 0.0
      %1581 = vmatpush1.msra.mxu0 0.0
      %1582 = vmatprep.subr.mxu0 0.0
      %1583 = vmatpush1.msra.mxu0 0.0
      %1584 = vmatprep.subr.mxu0 0.0
      %1585 = vmatpush1.msra.mxu0 0.0
      %1586 = vmatprep.subr.mxu0 0.0
      %1587 = vmatpush1.msra.mxu0 0.0
      %1588 = vmatprep.subr.mxu0 0.0
      %1589 = vmatpush1.msra.mxu0 0.0
      %1590 = vmatprep.subr.mxu0 0.0
      %1591 = vmatpush1.msra.mxu0 0.0
      %1592 = vmatprep.subr.mxu0 0.0
      %1593 = vmatpush1.msra.mxu0 0.0
      %1594 = vmatprep.subr.mxu0 0.0
      %1595 = vmatpush1.msra.mxu0 0.0
      %1596 = vmatprep.subr.mxu0 0.0
      %1597 = vmatpush1.msra.mxu0 0.0
      %1598 = vmatprep.subr.mxu0 0.0
      %1599 = vmatpush1.msra.mxu0 0.0
      %1600 = vmatprep.subr.mxu0 0.0
      %1601 = vmatpush1.msra.mxu0 0.0
      %1602 = vmatprep.subr.mxu0 0.0
      %1603 = vmatpush1.msra.mxu0 0.0
      %1604 = vmatprep.subr.mxu0 0.0
      %1605 = vmatpush1.msra.mxu0 0.0
      %1606 = vmatprep.subr.mxu0 0.0
      %1607 = vmatpush1.msra.mxu0 0.0
      %1608 = vmatprep.subr.mxu0 0.0
      %1609 = vmatpush1.msra.mxu0 0.0
      %1610 = vmatprep.subr.mxu0 0.0
      %1611 = vmatpush1.msra.mxu0 0.0
      %1612 = vmatprep.subr.mxu0 0.0
      %1613 = vmatpush1.msra.mxu0 0.0
      %1614 = vmatprep.subr.mxu0 0.0
      %1615 = vmatpush1.msra.mxu0 0.0
      %1616 = vmatprep.subr.mxu0 0.0
      %1617 = vmatpush1.msra.mxu0 0.0
      %1618 = vmatprep.subr.mxu0 0.0
      %1619 = vmatpush1.msra.mxu0 0.0
      %1620 = vmatprep.subr.mxu0 0.0
      %1621 = vmatpush1.msra.mxu0 0.0
      %1622 = vmatprep.mubr.f32.mxu0 0.0
      %1623 = vmatmul.mubr.f32.gmra.mrb[0].mxu0 %v1556
      %v1624 = vpop.f32.mrb[0].mxu0
      %v1625 = vadd.f32 0.0, %v1624
      %v1626 = vpop.f32.mrb[0].mxu0
      %1627 = vdwg.mxu0
      %v1628 = vadd.f32 %v1142, %v1625
      %s1629 = scalar_lea.vmem %s3, 64
      %v1630 = vld [vmem:[%s1629] sm:$0xff]
      %v1631 = vld [vmem:[%s1629 + $0x8] sm:$0xff]
      %v1632 = vld [vmem:[%s1629 + $0x10] sm:$0xff]
      %v1633 = vld [vmem:[%s1629 + $0x18] sm:$0xff]
      %s1634 = scalar_lea.vmem %s4, 2
      %v1635 = vld [vmem:[%s1634] sm:$0x1]
      %v1637 = vlaneseq
      %v1638 = vshrl.u32 %v1637, 7
      %v1639 = vsub.s32 0, %v1638
      %v1640 = vrot.slane %v1635, %v1639
      %1642 = vmatprep.subr.mxu0 0.0
      %1643 = vmatpush1.msra.mxu0 %v1630
      %1644 = vmatprep.subr.mxu0 0.0
      %1645 = vmatpush1.msra.mxu0 %v1631
      %1646 = vmatprep.subr.mxu0 0.0
      %1647 = vmatpush1.msra.mxu0 %v1632
      %1648 = vmatprep.subr.mxu0 0.0
      %1649 = vmatpush1.msra.mxu0 %v1633
      %1650 = vmatprep.subr.mxu0 0.0
      %1651 = vmatpush1.msra.mxu0 0.0
      %1652 = vmatprep.subr.mxu0 0.0
      %1653 = vmatpush1.msra.mxu0 0.0
      %1654 = vmatprep.subr.mxu0 0.0
      %1655 = vmatpush1.msra.mxu0 0.0
      %1656 = vmatprep.subr.mxu0 0.0
      %1657 = vmatpush1.msra.mxu0 0.0
      %1658 = vmatprep.subr.mxu0 0.0
      %1659 = vmatpush1.msra.mxu0 0.0
      %1660 = vmatprep.subr.mxu0 0.0
      %1661 = vmatpush1.msra.mxu0 0.0
      %1662 = vmatprep.subr.mxu0 0.0
      %1663 = vmatpush1.msra.mxu0 0.0
      %1664 = vmatprep.subr.mxu0 0.0
      %1665 = vmatpush1.msra.mxu0 0.0
      %1666 = vmatprep.subr.mxu0 0.0
      %1667 = vmatpush1.msra.mxu0 0.0
      %1668 = vmatprep.subr.mxu0 0.0
      %1669 = vmatpush1.msra.mxu0 0.0
      %1670 = vmatprep.subr.mxu0 0.0
      %1671 = vmatpush1.msra.mxu0 0.0
      %1672 = vmatprep.subr.mxu0 0.0
      %1673 = vmatpush1.msra.mxu0 0.0
      %1674 = vmatprep.subr.mxu0 0.0
      %1675 = vmatpush1.msra.mxu0 0.0
      %1676 = vmatprep.subr.mxu0 0.0
      %1677 = vmatpush1.msra.mxu0 0.0
      %1678 = vmatprep.subr.mxu0 0.0
      %1679 = vmatpush1.msra.mxu0 0.0
      %1680 = vmatprep.subr.mxu0 0.0
      %1681 = vmatpush1.msra.mxu0 0.0
      %1682 = vmatprep.subr.mxu0 0.0
      %1683 = vmatpush1.msra.mxu0 0.0
      %1684 = vmatprep.subr.mxu0 0.0
      %1685 = vmatpush1.msra.mxu0 0.0
      %1686 = vmatprep.subr.mxu0 0.0
      %1687 = vmatpush1.msra.mxu0 0.0
      %1688 = vmatprep.subr.mxu0 0.0
      %1689 = vmatpush1.msra.mxu0 0.0
      %1690 = vmatprep.subr.mxu0 0.0
      %1691 = vmatpush1.msra.mxu0 0.0
      %1692 = vmatprep.subr.mxu0 0.0
      %1693 = vmatpush1.msra.mxu0 0.0
      %1694 = vmatprep.subr.mxu0 0.0
      %1695 = vmatpush1.msra.mxu0 0.0
      %1696 = vmatprep.subr.mxu0 0.0
      %1697 = vmatpush1.msra.mxu0 0.0
      %1698 = vmatprep.subr.mxu0 0.0
      %1699 = vmatpush1.msra.mxu0 0.0
      %1700 = vmatprep.subr.mxu0 0.0
      %1701 = vmatpush1.msra.mxu0 0.0
      %1702 = vmatprep.subr.mxu0 0.0
      %1703 = vmatpush1.msra.mxu0 0.0
      %1704 = vmatprep.subr.mxu0 0.0
      %1705 = vmatpush1.msra.mxu0 0.0
      %1706 = vmatprep.mubr.f32.mxu0 0.0
      %1707 = vmatmul.mubr.f32.gmra.mrb[0].mxu0 %v672
      %v1708 = vpop.f32.mrb[0].mxu0
      %v1709 = vadd.f32 %v1640, %v1708
      %v1710 = vpop.f32.mrb[0].mxu0
      %1711 = vdwg.mxu0
      %v1712 = vmul.f32 %v1709, 0.35355338
      %s1713 = scalar_lea.vmem %s5, 64
      %v1714 = vld [vmem:[%s1713] sm:$0xff]
      %v1715 = vld [vmem:[%s1713 + $0x8] sm:$0xff]
      %v1716 = vld [vmem:[%s1713 + $0x10] sm:$0xff]
      %v1717 = vld [vmem:[%s1713 + $0x18] sm:$0xff]
      %s1718 = scalar_lea.vmem %s6, 2
      %v1719 = vld [vmem:[%s1718] sm:$0x1]
      %v1721 = vlaneseq
      %v1722 = vshrl.u32 %v1721, 7
      %v1723 = vsub.s32 0, %v1722
      %v1724 = vrot.slane %v1719, %v1723
      %1726 = vmatprep.subr.mxu0 0.0
      %1727 = vmatpush1.msra.mxu0 %v1714
      %1728 = vmatprep.subr.mxu0 0.0
      %1729 = vmatpush1.msra.mxu0 %v1715
      %1730 = vmatprep.subr.mxu0 0.0
      %1731 = vmatpush1.msra.mxu0 %v1716
      %1732 = vmatprep.subr.mxu0 0.0
      %1733 = vmatpush1.msra.mxu0 %v1717
      %1734 = vmatprep.subr.mxu0 0.0
      %1735 = vmatpush1.msra.mxu0 0.0
      %1736 = vmatprep.subr.mxu0 0.0
      %1737 = vmatpush1.msra.mxu0 0.0
      %1738 = vmatprep.subr.mxu0 0.0
      %1739 = vmatpush1.msra.mxu0 0.0
      %1740 = vmatprep.subr.mxu0 0.0
      %1741 = vmatpush1.msra.mxu0 0.0
      %1742 = vmatprep.subr.mxu0 0.0
      %1743 = vmatpush1.msra.mxu0 0.0
      %1744 = vmatprep.subr.mxu0 0.0
      %1745 = vmatpush1.msra.mxu0 0.0
      %1746 = vmatprep.subr.mxu0 0.0
      %1747 = vmatpush1.msra.mxu0 0.0
      %1748 = vmatprep.subr.mxu0 0.0
      %1749 = vmatpush1.msra.mxu0 0.0
      %1750 = vmatprep.subr.mxu0 0.0
      %1751 = vmatpush1.msra.mxu0 0.0
      %1752 = vmatprep.subr.mxu0 0.0
      %1753 = vmatpush1.msra.mxu0 0.0
      %1754 = vmatprep.subr.mxu0 0.0
      %1755 = vmatpush1.msra.mxu0 0.0
      %1756 = vmatprep.subr.mxu0 0.0
      %1757 = vmatpush1.msra.mxu0 0.0
      %1758 = vmatprep.subr.mxu0 0.0
      %1759 = vmatpush1.msra.mxu0 0.0
      %1760 = vmatprep.subr.mxu0 0.0
      %1761 = vmatpush1.msra.mxu0 0.0
      %1762 = vmatprep.subr.mxu0 0.0
      %1763 = vmatpush1.msra.mxu0 0.0
      %1764 = vmatprep.subr.mxu0 0.0
      %1765 = vmatpush1.msra.mxu0 0.0
      %1766 = vmatprep.subr.mxu0 0.0
      %1767 = vmatpush1.msra.mxu0 0.0
      %1768 = vmatprep.subr.mxu0 0.0
      %1769 = vmatpush1.msra.mxu0 0.0
      %1770 = vmatprep.subr.mxu0 0.0
      %1771 = vmatpush1.msra.mxu0 0.0
      %1772 = vmatprep.subr.mxu0 0.0
      %1773 = vmatpush1.msra.mxu0 0.0
      %1774 = vmatprep.subr.mxu0 0.0
      %1775 = vmatpush1.msra.mxu0 0.0
      %1776 = vmatprep.subr.mxu0 0.0
      %1777 = vmatpush1.msra.mxu0 0.0
      %1778 = vmatprep.subr.mxu0 0.0
      %1779 = vmatpush1.msra.mxu0 0.0
      %1780 = vmatprep.subr.mxu0 0.0
      %1781 = vmatpush1.msra.mxu0 0.0
      %1782 = vmatprep.subr.mxu0 0.0
      %1783 = vmatpush1.msra.mxu0 0.0
      %1784 = vmatprep.subr.mxu0 0.0
      %1785 = vmatpush1.msra.mxu0 0.0
      %1786 = vmatprep.subr.mxu0 0.0
      %1787 = vmatpush1.msra.mxu0 0.0
      %1788 = vmatprep.subr.mxu0 0.0
      %1789 = vmatpush1.msra.mxu0 0.0
      %1790 = vmatprep.mubr.f32.mxu0 0.0
      %1791 = vmatmul.mubr.f32.gmra.mrb[0].mxu0 %v672
      %v1792 = vpop.f32.mrb[0].mxu0
      %v1793 = vadd.f32 %v1724, %v1792
      %v1794 = vpop.f32.mrb[0].mxu0
      %1795 = vdwg.mxu0
      %s1796 = scalar_lea.vmem %s7, 64
      %v1797 = vld [vmem:[%s1796] sm:$0xff]
      %v1798 = vld [vmem:[%s1796 + $0x8] sm:$0xff]
      %v1799 = vld [vmem:[%s1796 + $0x10] sm:$0xff]
      %v1800 = vld [vmem:[%s1796 + $0x18] sm:$0xff]
      %s1801 = scalar_lea.vmem %s8, 2
      %v1802 = vld [vmem:[%s1801] sm:$0x1]
      %v1804 = vlaneseq
      %v1805 = vshrl.u32 %v1804, 7
      %v1806 = vsub.s32 0, %v1805
      %v1807 = vrot.slane %v1802, %v1806
      %1809 = vmatprep.subr.mxu0 0.0
      %1810 = vmatpush1.msra.mxu0 %v1797
      %1811 = vmatprep.subr.mxu0 0.0
      %1812 = vmatpush1.msra.mxu0 %v1798
      %1813 = vmatprep.subr.mxu0 0.0
      %1814 = vmatpush1.msra.mxu0 %v1799
      %1815 = vmatprep.subr.mxu0 0.0
      %1816 = vmatpush1.msra.mxu0 %v1800
      %1817 = vmatprep.subr.mxu0 0.0
      %1818 = vmatpush1.msra.mxu0 0.0
      %1819 = vmatprep.subr.mxu0 0.0
      %1820 = vmatpush1.msra.mxu0 0.0
      %1821 = vmatprep.subr.mxu0 0.0
      %1822 = vmatpush1.msra.mxu0 0.0
      %1823 = vmatprep.subr.mxu0 0.0
      %1824 = vmatpush1.msra.mxu0 0.0
      %1825 = vmatprep.subr.mxu0 0.0
      %1826 = vmatpush1.msra.mxu0 0.0
      %1827 = vmatprep.subr.mxu0 0.0
      %1828 = vmatpush1.msra.mxu0 0.0
      %1829 = vmatprep.subr.mxu0 0.0
      %1830 = vmatpush1.msra.mxu0 0.0
      %1831 = vmatprep.subr.mxu0 0.0
      %1832 = vmatpush1.msra.mxu0 0.0
      %1833 = vmatprep.subr.mxu0 0.0
      %1834 = vmatpush1.msra.mxu0 0.0
      %1835 = vmatprep.subr.mxu0 0.0
      %1836 = vmatpush1.msra.mxu0 0.0
      %1837 = vmatprep.subr.mxu0 0.0
      %1838 = vmatpush1.msra.mxu0 0.0
      %1839 = vmatprep.subr.mxu0 0.0
      %1840 = vmatpush1.msra.mxu0 0.0
      %1841 = vmatprep.subr.mxu0 0.0
      %1842 = vmatpush1.msra.mxu0 0.0
      %1843 = vmatprep.subr.mxu0 0.0
      %1844 = vmatpush1.msra.mxu0 0.0
      %1845 = vmatprep.subr.mxu0 0.0
      %1846 = vmatpush1.msra.mxu0 0.0
      %1847 = vmatprep.subr.mxu0 0.0
      %1848 = vmatpush1.msra.mxu0 0.0
      %1849 = vmatprep.subr.mxu0 0.0
      %1850 = vmatpush1.msra.mxu0 0.0
      %1851 = vmatprep.subr.mxu0 0.0
      %1852 = vmatpush1.msra.mxu0 0.0
      %1853 = vmatprep.subr.mxu0 0.0
      %1854 = vmatpush1.msra.mxu0 0.0
      %1855 = vmatprep.subr.mxu0 0.0
      %1856 = vmatpush1.msra.mxu0 0.0
      %1857 = vmatprep.subr.mxu0 0.0
      %1858 = vmatpush1.msra.mxu0 0.0
      %1859 = vmatprep.subr.mxu0 0.0
      %1860 = vmatpush1.msra.mxu0 0.0
      %1861 = vmatprep.subr.mxu0 0.0
      %1862 = vmatpush1.msra.mxu0 0.0
      %1863 = vmatprep.subr.mxu0 0.0
      %1864 = vmatpush1.msra.mxu0 0.0
      %1865 = vmatprep.subr.mxu0 0.0
      %1866 = vmatpush1.msra.mxu0 0.0
      %1867 = vmatprep.subr.mxu0 0.0
      %1868 = vmatpush1.msra.mxu0 0.0
      %1869 = vmatprep.subr.mxu0 0.0
      %1870 = vmatpush1.msra.mxu0 0.0
      %1871 = vmatprep.subr.mxu0 0.0
      %1872 = vmatpush1.msra.mxu0 0.0
      %1873 = vmatprep.mubr.f32.mxu0 0.0
      %1874 = vmatmul.mubr.f32.gmra.mrb[0].mxu0 %v672
      %v1875 = vpop.f32.mrb[0].mxu0
      %v1876 = vadd.f32 %v1807, %v1875
      %v1877 = vpop.f32.mrb[0].mxu0
      %1878 = vdwg.mxu0
      %v1880 = vsel %vm907, %v1712, 0
      %v1883 = vsel %vm907, %v1793, 0
      %1885 = vmatprep.subr.mxu0 0.0
      %1886 = vmatpush1.xpose.msra.mxu0 %v1883
      %1887 = vmatprep.subr.mxu0 0.0
      %1888 = vmatpush1.xpose.msra.mxu0 0.0
      %1889 = vmatprep.subr.mxu0 0.0
      %1890 = vmatpush1.xpose.msra.mxu0 0.0
      %1891 = vmatprep.subr.mxu0 0.0
      %1892 = vmatpush1.xpose.msra.mxu0 0.0
      %1893 = vmatprep.subr.mxu0 0.0
      %1894 = vmatpush1.xpose.msra.mxu0 0.0
      %1895 = vmatprep.subr.mxu0 0.0
      %1896 = vmatpush1.xpose.msra.mxu0 0.0
      %1897 = vmatprep.subr.mxu0 0.0
      %1898 = vmatpush1.xpose.msra.mxu0 0.0
      %1899 = vmatprep.subr.mxu0 0.0
      %1900 = vmatpush1.xpose.msra.mxu0 0.0
      %1901 = vmatprep.subr.mxu0 0.0
      %1902 = vmatpush1.xpose.msra.mxu0 0.0
      %1903 = vmatprep.subr.mxu0 0.0
      %1904 = vmatpush1.xpose.msra.mxu0 0.0
      %1905 = vmatprep.subr.mxu0 0.0
      %1906 = vmatpush1.xpose.msra.mxu0 0.0
      %1907 = vmatprep.subr.mxu0 0.0
      %1908 = vmatpush1.xpose.msra.mxu0 0.0
      %1909 = vmatprep.subr.mxu0 0.0
      %1910 = vmatpush1.xpose.msra.mxu0 0.0
      %1911 = vmatprep.subr.mxu0 0.0
      %1912 = vmatpush1.xpose.msra.mxu0 0.0
      %1913 = vmatprep.subr.mxu0 0.0
      %1914 = vmatpush1.xpose.msra.mxu0 0.0
      %1915 = vmatprep.subr.mxu0 0.0
      %1916 = vmatpush1.xpose.msra.mxu0 0.0
      %1917 = vmatprep.subr.mxu0 0.0
      %1918 = vmatpush1.xpose.msra.mxu0 0.0
      %1919 = vmatprep.subr.mxu0 0.0
      %1920 = vmatpush1.xpose.msra.mxu0 0.0
      %1921 = vmatprep.subr.mxu0 0.0
      %1922 = vmatpush1.xpose.msra.mxu0 0.0
      %1923 = vmatprep.subr.mxu0 0.0
      %1924 = vmatpush1.xpose.msra.mxu0 0.0
      %1925 = vmatprep.subr.mxu0 0.0
      %1926 = vmatpush1.xpose.msra.mxu0 0.0
      %1927 = vmatprep.subr.mxu0 0.0
      %1928 = vmatpush1.xpose.msra.mxu0 0.0
      %1929 = vmatprep.subr.mxu0 0.0
      %1930 = vmatpush1.xpose.msra.mxu0 0.0
      %1931 = vmatprep.subr.mxu0 0.0
      %1932 = vmatpush1.xpose.msra.mxu0 0.0
      %1933 = vmatprep.subr.mxu0 0.0
      %1934 = vmatpush1.xpose.msra.mxu0 0.0
      %1935 = vmatprep.subr.mxu0 0.0
      %1936 = vmatpush1.xpose.msra.mxu0 0.0
      %1937 = vmatprep.subr.mxu0 0.0
      %1938 = vmatpush1.xpose.msra.mxu0 0.0
      %1939 = vmatprep.subr.mxu0 0.0
      %1940 = vmatpush1.xpose.msra.mxu0 0.0
      %1941 = vmatprep.subr.mxu0 0.0
      %1942 = vmatpush1.xpose.msra.mxu0 0.0
      %1943 = vmatprep.subr.mxu0 0.0
      %1944 = vmatpush1.xpose.msra.mxu0 0.0
      %1945 = vmatprep.subr.mxu0 0.0
      %1946 = vmatpush1.xpose.msra.mxu0 0.0
      %1947 = vmatprep.subr.mxu0 0.0
      %1948 = vmatpush1.xpose.msra.mxu0 0.0
      %1949 = vmatprep.mubr.f32.mxu0 0.0
      %1950 = vmatmul.mubr.f32.gmra.mrb[0].mxu0 %v1880
      %v1951 = vpop.f32.mrb[0].mxu0
      %v1952 = vadd.f32 %v650, %v1951
      %v1953 = vpop.f32.mrb[0].mxu0
      %1954 = vdwg.mxu0
      %v1955 = vsel %vm907, %v1952, -inf
      %1956 = vmax.xlane.f32.xlu0 %v1955
      %v1957 = vpop.xlane.xlu0 %1956
      %v1958 = vsub.f32 %v1952, %v1957
      %v1959 = vmul.f32 %v1958, 1.442695
      %v1960 = vpow.pop %v1959
      %v1961 = vsel %vm907, %v1960, 0.0
      %1962 = vadd.xlane.f32.xlu0 %v1961
      %v1963 = vpop.xlane.xlu0 %1962
      %v1964 = vrcp.pop %v1963
      %v1965 = vmul.f32 %v1960, %v1964
      %v1967 = vsel %vm907, %v1965, 0
      %1969 = vmatprep.subr.mxu0 0.0
      %1970 = vmatpush1.msra.mxu0 %v1876
      %1971 = vmatprep.subr.mxu0 0.0
      %1972 = vmatpush1.msra.mxu0 0.0
      %1973 = vmatprep.subr.mxu0 0.0
      %1974 = vmatpush1.msra.mxu0 0.0
      %1975 = vmatprep.subr.mxu0 0.0
      %1976 = vmatpush1.msra.mxu0 0.0
      %1977 = vmatprep.subr.mxu0 0.0
      %1978 = vmatpush1.msra.mxu0 0.0
      %1979 = vmatprep.subr.mxu0 0.0
      %1980 = vmatpush1.msra.mxu0 0.0
      %1981 = vmatprep.subr.mxu0 0.0
      %1982 = vmatpush1.msra.mxu0 0.0
      %1983 = vmatprep.subr.mxu0 0.0
      %1984 = vmatpush1.msra.mxu0 0.0
      %1985 = vmatprep.subr.mxu0 0.0
      %1986 = vmatpush1.msra.mxu0 0.0
      %1987 = vmatprep.subr.mxu0 0.0
      %1988 = vmatpush1.msra.mxu0 0.0
      %1989 = vmatprep.subr.mxu0 0.0
      %1990 = vmatpush1.msra.mxu0 0.0
      %1991 = vmatprep.subr.mxu0 0.0
      %1992 = vmatpush1.msra.mxu0 0.0
      %1993 = vmatprep.subr.mxu0 0.0
      %1994 = vmatpush1.msra.mxu0 0.0
      %1995 = vmatprep.subr.mxu0 0.0
      %1996 = vmatpush1.msra.mxu0 0.0
      %1997 = vmatprep.subr.mxu0 0.0
      %1998 = vmatpush1.msra.mxu0 0.0
      %1999 = vmatprep.subr.mxu0 0.0
      %2000 = vmatpush1.msra.mxu0 0.0
      %2001 = vmatprep.subr.mxu0 0.0
      %2002 = vmatpush1.msra.mxu0 0.0
      %2003 = vmatprep.subr.mxu0 0.0
      %2004 = vmatpush1.msra.mxu0 0.0
      %2005 = vmatprep.subr.mxu0 0.0
      %2006 = vmatpush1.msra.mxu0 0.0
      %2007 = vmatprep.subr.mxu0 0.0
      %2008 = vmatpush1.msra.mxu0 0.0
      %2009 = vmatprep.subr.mxu0 0.0
      %2010 = vmatpush1.msra.mxu0 0.0
      %2011 = vmatprep.subr.mxu0 0.0
      %2012 = vmatpush1.msra.mxu0 0.0
      %2013 = vmatprep.subr.mxu0 0.0
      %2014 = vmatpush1.msra.mxu0 0.0
      %2015 = vmatprep.subr.mxu0 0.0
      %2016 = vmatpush1.msra.mxu0 0.0
      %2017 = vmatprep.subr.mxu0 0.0
      %2018 = vmatpush1.msra.mxu0 0.0
      %2019 = vmatprep.subr.mxu0 0.0
      %2020 = vmatpush1.msra.mxu0 0.0
      %2021 = vmatprep.subr.mxu0 0.0
      %2022 = vmatpush1.msra.mxu0 0.0
      %2023 = vmatprep.subr.mxu0 0.0
      %2024 = vmatpush1.msra.mxu0 0.0
      %2025 = vmatprep.subr.mxu0 0.0
      %2026 = vmatpush1.msra.mxu0 0.0
      %2027 = vmatprep.subr.mxu0 0.0
      %2028 = vmatpush1.msra.mxu0 0.0
      %2029 = vmatprep.subr.mxu0 0.0
      %2030 = vmatpush1.msra.mxu0 0.0
      %2031 = vmatprep.subr.mxu0 0.0
      %2032 = vmatpush1.msra.mxu0 0.0
      %2033 = vmatprep.mubr.f32.mxu0 0.0
      %2034 = vmatmul.mubr.f32.gmra.mrb[0].mxu0 %v1967
      %v2035 = vpop.f32.mrb[0].mxu0
      %v2036 = vadd.f32 0.0, %v2035
      %v2037 = vpop.f32.mrb[0].mxu0
      %2038 = vdwg.mxu0
      %s2039 = scalar_lea.vmem %s9, 16
      %v2040 = vld [vmem:[%s2039] sm:$0xff]
      %v2042 = vsel %vm907, %v2036, 0
      %2044 = vmatprep.subr.mxu0 0.0
      %2045 = vmatpush1.msra.mxu0 %v2040
      %2046 = vmatprep.subr.mxu0 0.0
      %2047 = vmatpush1.msra.mxu0 0.0
      %2048 = vmatprep.subr.mxu0 0.0
      %2049 = vmatpush1.msra.mxu0 0.0
      %2050 = vmatprep.subr.mxu0 0.0
      %2051 = vmatpush1.msra.mxu0 0.0
      %2052 = vmatprep.subr.mxu0 0.0
      %2053 = vmatpush1.msra.mxu0 0.0
      %2054 = vmatprep.subr.mxu0 0.0
      %2055 = vmatpush1.msra.mxu0 0.0
      %2056 = vmatprep.subr.mxu0 0.0
      %2057 = vmatpush1.msra.mxu0 0.0
      %2058 = vmatprep.subr.mxu0 0.0
      %2059 = vmatpush1.msra.mxu0 0.0
      %2060 = vmatprep.subr.mxu0 0.0
      %2061 = vmatpush1.msra.mxu0 0.0
      %2062 = vmatprep.subr.mxu0 0.0
      %2063 = vmatpush1.msra.mxu0 0.0
      %2064 = vmatprep.subr.mxu0 0.0
      %2065 = vmatpush1.msra.mxu0 0.0
      %2066 = vmatprep.subr.mxu0 0.0
      %2067 = vmatpush1.msra.mxu0 0.0
      %2068 = vmatprep.subr.mxu0 0.0
      %2069 = vmatpush1.msra.mxu0 0.0
      %2070 = vmatprep.subr.mxu0 0.0
      %2071 = vmatpush1.msra.mxu0 0.0
      %2072 = vmatprep.subr.mxu0 0.0
      %2073 = vmatpush1.msra.mxu0 0.0
      %2074 = vmatprep.subr.mxu0 0.0
      %2075 = vmatpush1.msra.mxu0 0.0
      %2076 = vmatprep.subr.mxu0 0.0
      %2077 = vmatpush1.msra.mxu0 0.0
      %2078 = vmatprep.subr.mxu0 0.0
      %2079 = vmatpush1.msra.mxu0 0.0
      %2080 = vmatprep.subr.mxu0 0.0
      %2081 = vmatpush1.msra.mxu0 0.0
      %2082 = vmatprep.subr.mxu0 0.0
      %2083 = vmatpush1.msra.mxu0 0.0
      %2084 = vmatprep.subr.mxu0 0.0
      %2085 = vmatpush1.msra.mxu0 0.0
      %2086 = vmatprep.subr.mxu0 0.0
      %2087 = vmatpush1.msra.mxu0 0.0
      %2088 = vmatprep.subr.mxu0 0.0
      %2089 = vmatpush1.msra.mxu0 0.0
      %2090 = vmatprep.subr.mxu0 0.0
      %2091 = vmatpush1.msra.mxu0 0.0
      %2092 = vmatprep.subr.mxu0 0.0
      %2093 = vmatpush1.msra.mxu0 0.0
      %2094 = vmatprep.subr.mxu0 0.0
      %2095 = vmatpush1.msra.mxu0 0.0
      %2096 = vmatprep.subr.mxu0 0.0
      %2097 = vmatpush1.msra.mxu0 0.0
      %2098 = vmatprep.subr.mxu0 0.0
      %2099 = vmatpush1.msra.mxu0 0.0
      %2100 = vmatprep.subr.mxu0 0.0
      %2101 = vmatpush1.msra.mxu0 0.0
      %2102 = vmatprep.subr.mxu0 0.0
      %2103 = vmatpush1.msra.mxu0 0.0
      %2104 = vmatprep.subr.mxu0 0.0
      %2105 = vmatpush1.msra.mxu0 0.0
      %2106 = vmatprep.subr.mxu0 0.0
      %2107 = vmatpush1.msra.mxu0 0.0
      %2108 = vmatprep.mubr.f32.mxu0 0.0
      %2109 = vmatmul.mubr.f32.gmra.mrb[0].mxu0 %v2042
      %v2110 = vpop.f32.mrb[0].mxu0
      %v2111 = vadd.f32 0.0, %v2110
      %v2112 = vpop.f32.mrb[0].mxu0
      %2113 = vdwg.mxu0
      %v2114 = vadd.f32 %v1628, %v2111
      %s2115 = scalar_lea.vmem %s3, 96
      %v2116 = vld [vmem:[%s2115] sm:$0xff]
      %v2117 = vld [vmem:[%s2115 + $0x8] sm:$0xff]
      %v2118 = vld [vmem:[%s2115 + $0x10] sm:$0xff]
      %v2119 = vld [vmem:[%s2115 + $0x18] sm:$0xff]
      %s2120 = scalar_lea.vmem %s4, 3
      %v2121 = vld [vmem:[%s2120] sm:$0x1]
      %v2123 = vlaneseq
      %v2124 = vshrl.u32 %v2123, 7
      %v2125 = vsub.s32 0, %v2124
      %v2126 = vrot.slane %v2121, %v2125
      %2128 = vmatprep.subr.mxu0 0.0
      %2129 = vmatpush1.msra.mxu0 %v2116
      %2130 = vmatprep.subr.mxu0 0.0
      %2131 = vmatpush1.msra.mxu0 %v2117
      %2132 = vmatprep.subr.mxu0 0.0
      %2133 = vmatpush1.msra.mxu0 %v2118
      %2134 = vmatprep.subr.mxu0 0.0
      %2135 = vmatpush1.msra.mxu0 %v2119
      %2136 = vmatprep.subr.mxu0 0.0
      %2137 = vmatpush1.msra.mxu0 0.0
      %2138 = vmatprep.subr.mxu0 0.0
      %2139 = vmatpush1.msra.mxu0 0.0
      %2140 = vmatprep.subr.mxu0 0.0
      %2141 = vmatpush1.msra.mxu0 0.0
      %2142 = vmatprep.subr.mxu0 0.0
      %2143 = vmatpush1.msra.mxu0 0.0
      %2144 = vmatprep.subr.mxu0 0.0
      %2145 = vmatpush1.msra.mxu0 0.0
      %2146 = vmatprep.subr.mxu0 0.0
      %2147 = vmatpush1.msra.mxu0 0.0
      %2148 = vmatprep.subr.mxu0 0.0
      %2149 = vmatpush1.msra.mxu0 0.0
      %2150 = vmatprep.subr.mxu0 0.0
      %2151 = vmatpush1.msra.mxu0 0.0
      %2152 = vmatprep.subr.mxu0 0.0
      %2153 = vmatpush1.msra.mxu0 0.0
      %2154 = vmatprep.subr.mxu0 0.0
      %2155 = vmatpush1.msra.mxu0 0.0
      %2156 = vmatprep.subr.mxu0 0.0
      %2157 = vmatpush1.msra.mxu0 0.0
      %2158 = vmatprep.subr.mxu0 0.0
      %2159 = vmatpush1.msra.mxu0 0.0
      %2160 = vmatprep.subr.mxu0 0.0
      %2161 = vmatpush1.msra.mxu0 0.0
      %2162 = vmatprep.subr.mxu0 0.0
      %2163 = vmatpush1.msra.mxu0 0.0
      %2164 = vmatprep.subr.mxu0 0.0
      %2165 = vmatpush1.msra.mxu0 0.0
      %2166 = vmatprep.subr.mxu0 0.0
      %2167 = vmatpush1.msra.mxu0 0.0
      %2168 = vmatprep.subr.mxu0 0.0
      %2169 = vmatpush1.msra.mxu0 0.0
      %2170 = vmatprep.subr.mxu0 0.0
      %2171 = vmatpush1.msra.mxu0 0.0
      %2172 = vmatprep.subr.mxu0 0.0
      %2173 = vmatpush1.msra.mxu0 0.0
      %2174 = vmatprep.subr.mxu0 0.0
      %2175 = vmatpush1.msra.mxu0 0.0
      %2176 = vmatprep.subr.mxu0 0.0
      %2177 = vmatpush1.msra.mxu0 0.0
      %2178 = vmatprep.subr.mxu0 0.0
      %2179 = vmatpush1.msra.mxu0 0.0
      %2180 = vmatprep.subr.mxu0 0.0
      %2181 = vmatpush1.msra.mxu0 0.0
      %2182 = vmatprep.subr.mxu0 0.0
      %2183 = vmatpush1.msra.mxu0 0.0
      %2184 = vmatprep.subr.mxu0 0.0
      %2185 = vmatpush1.msra.mxu0 0.0
      %2186 = vmatprep.subr.mxu0 0.0
      %2187 = vmatpush1.msra.mxu0 0.0
      %2188 = vmatprep.subr.mxu0 0.0
      %2189 = vmatpush1.msra.mxu0 0.0
      %2190 = vmatprep.subr.mxu0 0.0
      %2191 = vmatpush1.msra.mxu0 0.0
      %2192 = vmatprep.mubr.f32.mxu0 0.0
      %2193 = vmatmul.mubr.f32.gmra.mrb[0].mxu0 %v672
      %v2194 = vpop.f32.mrb[0].mxu0
      %v2195 = vadd.f32 %v2126, %v2194
      %v2196 = vpop.f32.mrb[0].mxu0
      %2197 = vdwg.mxu0
      %v2198 = vmul.f32 %v2195, 0.35355338
      %s2199 = scalar_lea.vmem %s5, 96
      %v2200 = vld [vmem:[%s2199] sm:$0xff]
      %v2201 = vld [vmem:[%s2199 + $0x8] sm:$0xff]
      %v2202 = vld [vmem:[%s2199 + $0x10] sm:$0xff]
      %v2203 = vld [vmem:[%s2199 + $0x18] sm:$0xff]
      %s2204 = scalar_lea.vmem %s6, 3
      %v2205 = vld [vmem:[%s2204] sm:$0x1]
      %v2207 = vlaneseq
      %v2208 = vshrl.u32 %v2207, 7
      %v2209 = vsub.s32 0, %v2208
      %v2210 = vrot.slane %v2205, %v2209
      %2212 = vmatprep.subr.mxu0 0.0
      %2213 = vmatpush1.msra.mxu0 %v2200
      %2214 = vmatprep.subr.mxu0 0.0
      %2215 = vmatpush1.msra.mxu0 %v2201
      %2216 = vmatprep.subr.mxu0 0.0
      %2217 = vmatpush1.msra.mxu0 %v2202
      %2218 = vmatprep.subr.mxu0 0.0
      %2219 = vmatpush1.msra.mxu0 %v2203
      %2220 = vmatprep.subr.mxu0 0.0
      %2221 = vmatpush1.msra.mxu0 0.0
      %2222 = vmatprep.subr.mxu0 0.0
      %2223 = vmatpush1.msra.mxu0 0.0
      %2224 = vmatprep.subr.mxu0 0.0
      %2225 = vmatpush1.msra.mxu0 0.0
      %2226 = vmatprep.subr.mxu0 0.0
      %2227 = vmatpush1.msra.mxu0 0.0
      %2228 = vmatprep.subr.mxu0 0.0
      %2229 = vmatpush1.msra.mxu0 0.0
      %2230 = vmatprep.subr.mxu0 0.0
      %2231 = vmatpush1.msra.mxu0 0.0
      %2232 = vmatprep.subr.mxu0 0.0
      %2233 = vmatpush1.msra.mxu0 0.0
      %2234 = vmatprep.subr.mxu0 0.0
      %2235 = vmatpush1.msra.mxu0 0.0
      %2236 = vmatprep.subr.mxu0 0.0
      %2237 = vmatpush1.msra.mxu0 0.0
      %2238 = vmatprep.subr.mxu0 0.0
      %2239 = vmatpush1.msra.mxu0 0.0
      %2240 = vmatprep.subr.mxu0 0.0
      %2241 = vmatpush1.msra.mxu0 0.0
      %2242 = vmatprep.subr.mxu0 0.0
      %2243 = vmatpush1.msra.mxu0 0.0
      %2244 = vmatprep.subr.mxu0 0.0
      %2245 = vmatpush1.msra.mxu0 0.0
      %2246 = vmatprep.subr.mxu0 0.0
      %2247 = vmatpush1.msra.mxu0 0.0
      %2248 = vmatprep.subr.mxu0 0.0
      %2249 = vmatpush1.msra.mxu0 0.0
      %2250 = vmatprep.subr.mxu0 0.0
      %2251 = vmatpush1.msra.mxu0 0.0
      %2252 = vmatprep.subr.mxu0 0.0
      %2253 = vmatpush1.msra.mxu0 0.0
      %2254 = vmatprep.subr.mxu0 0.0
      %2255 = vmatpush1.msra.mxu0 0.0
      %2256 = vmatprep.subr.mxu0 0.0
      %2257 = vmatpush1.msra.mxu0 0.0
      %2258 = vmatprep.subr.mxu0 0.0
      %2259 = vmatpush1.msra.mxu0 0.0
      %2260 = vmatprep.subr.mxu0 0.0
      %2261 = vmatpush1.msra.mxu0 0.0
      %2262 = vmatprep.subr.mxu0 0.0
      %2263 = vmatpush1.msra.mxu0 0.0
      %2264 = vmatprep.subr.mxu0 0.0
      %2265 = vmatpush1.msra.mxu0 0.0
      %2266 = vmatprep.subr.mxu0 0.0
      %2267 = vmatpush1.msra.mxu0 0.0
      %2268 = vmatprep.subr.mxu0 0.0
      %2269 = vmatpush1.msra.mxu0 0.0
      %2270 = vmatprep.subr.mxu0 0.0
      %2271 = vmatpush1.msra.mxu0 0.0
      %2272 = vmatprep.subr.mxu0 0.0
      %2273 = vmatpush1.msra.mxu0 0.0
      %2274 = vmatprep.subr.mxu0 0.0
      %2275 = vmatpush1.msra.mxu0 0.0
      %2276 = vmatprep.mubr.f32.mxu0 0.0
      %2277 = vmatmul.mubr.f32.gmra.mrb[0].mxu0 %v672
      %v2278 = vpop.f32.mrb[0].mxu0
      %v2279 = vadd.f32 %v2210, %v2278
      %v2280 = vpop.f32.mrb[0].mxu0
      %2281 = vdwg.mxu0
      %s2282 = scalar_lea.vmem %s7, 96
      %v2283 = vld [vmem:[%s2282] sm:$0xff]
      %v2284 = vld [vmem:[%s2282 + $0x8] sm:$0xff]
      %v2285 = vld [vmem:[%s2282 + $0x10] sm:$0xff]
      %v2286 = vld [vmem:[%s2282 + $0x18] sm:$0xff]
      %s2287 = scalar_lea.vmem %s8, 3
      %v2288 = vld [vmem:[%s2287] sm:$0x1]
      %v2290 = vlaneseq
      %v2291 = vshrl.u32 %v2290, 7
      %v2292 = vsub.s32 0, %v2291
      %v2293 = vrot.slane %v2288, %v2292
      %2295 = vmatprep.subr.mxu0 0.0
      %2296 = vmatpush1.msra.mxu0 %v2283
      %2297 = vmatprep.subr.mxu0 0.0
      %2298 = vmatpush1.msra.mxu0 %v2284
      %2299 = vmatprep.subr.mxu0 0.0
      %2300 = vmatpush1.msra.mxu0 %v2285
      %2301 = vmatprep.subr.mxu0 0.0
      %2302 = vmatpush1.msra.mxu0 %v2286
      %2303 = vmatprep.subr.mxu0 0.0
      %2304 = vmatpush1.msra.mxu0 0.0
      %2305 = vmatprep.subr.mxu0 0.0
      %2306 = vmatpush1.msra.mxu0 0.0
      %2307 = vmatprep.subr.mxu0 0.0
      %2308 = vmatpush1.msra.mxu0 0.0
      %2309 = vmatprep.subr.mxu0 0.0
      %2310 = vmatpush1.msra.mxu0 0.0
      %2311 = vmatprep.subr.mxu0 0.0
      %2312 = vmatpush1.msra.mxu0 0.0
      %2313 = vmatprep.subr.mxu0 0.0
      %2314 = vmatpush1.msra.mxu0 0.0
      %2315 = vmatprep.subr.mxu0 0.0
      %2316 = vmatpush1.msra.mxu0 0.0
      %2317 = vmatprep.subr.mxu0 0.0
      %2318 = vmatpush1.msra.mxu0 0.0
      %2319 = vmatprep.subr.mxu0 0.0
      %2320 = vmatpush1.msra.mxu0 0.0
      %2321 = vmatprep.subr.mxu0 0.0
      %2322 = vmatpush1.msra.mxu0 0.0
      %2323 = vmatprep.subr.mxu0 0.0
      %2324 = vmatpush1.msra.mxu0 0.0
      %2325 = vmatprep.subr.mxu0 0.0
      %2326 = vmatpush1.msra.mxu0 0.0
      %2327 = vmatprep.subr.mxu0 0.0
      %2328 = vmatpush1.msra.mxu0 0.0
      %2329 = vmatprep.subr.mxu0 0.0
      %2330 = vmatpush1.msra.mxu0 0.0
      %2331 = vmatprep.subr.mxu0 0.0
      %2332 = vmatpush1.msra.mxu0 0.0
      %2333 = vmatprep.subr.mxu0 0.0
      %2334 = vmatpush1.msra.mxu0 0.0
      %2335 = vmatprep.subr.mxu0 0.0
      %2336 = vmatpush1.msra.mxu0 0.0
      %2337 = vmatprep.subr.mxu0 0.0
      %2338 = vmatpush1.msra.mxu0 0.0
      %2339 = vmatprep.subr.mxu0 0.0
      %2340 = vmatpush1.msra.mxu0 0.0
      %2341 = vmatprep.subr.mxu0 0.0
      %2342 = vmatpush1.msra.mxu0 0.0
      %2343 = vmatprep.subr.mxu0 0.0
      %2344 = vmatpush1.msra.mxu0 0.0
      %2345 = vmatprep.subr.mxu0 0.0
      %2346 = vmatpush1.msra.mxu0 0.0
      %2347 = vmatprep.subr.mxu0 0.0
      %2348 = vmatpush1.msra.mxu0 0.0
      %2349 = vmatprep.subr.mxu0 0.0
      %2350 = vmatpush1.msra.mxu0 0.0
      %2351 = vmatprep.subr.mxu0 0.0
      %2352 = vmatpush1.msra.mxu0 0.0
      %2353 = vmatprep.subr.mxu0 0.0
      %2354 = vmatpush1.msra.mxu0 0.0
      %2355 = vmatprep.subr.mxu0 0.0
      %2356 = vmatpush1.msra.mxu0 0.0
      %2357 = vmatprep.subr.mxu0 0.0
      %2358 = vmatpush1.msra.mxu0 0.0
      %2359 = vmatprep.mubr.f32.mxu0 0.0
      %2360 = vmatmul.mubr.f32.gmra.mrb[0].mxu0 %v672
      %v2361 = vpop.f32.mrb[0].mxu0
      %v2362 = vadd.f32 %v2293, %v2361
      %v2363 = vpop.f32.mrb[0].mxu0
      %2364 = vdwg.mxu0
      %v2366 = vsel %vm907, %v2198, 0
      %v2369 = vsel %vm907, %v2279, 0
      %2371 = vmatprep.subr.mxu0 0.0
      %2372 = vmatpush1.xpose.msra.mxu0 %v2369
      %2373 = vmatprep.subr.mxu0 0.0
      %2374 = vmatpush1.xpose.msra.mxu0 0.0
      %2375 = vmatprep.subr.mxu0 0.0
      %2376 = vmatpush1.xpose.msra.mxu0 0.0
      %2377 = vmatprep.subr.mxu0 0.0
      %2378 = vmatpush1.xpose.msra.mxu0 0.0
      %2379 = vmatprep.subr.mxu0 0.0
      %2380 = vmatpush1.xpose.msra.mxu0 0.0
      %2381 = vmatprep.subr.mxu0 0.0
      %2382 = vmatpush1.xpose.msra.mxu0 0.0
      %2383 = vmatprep.subr.mxu0 0.0
      %2384 = vmatpush1.xpose.msra.mxu0 0.0
      %2385 = vmatprep.subr.mxu0 0.0
      %2386 = vmatpush1.xpose.msra.mxu0 0.0
      %2387 = vmatprep.subr.mxu0 0.0
      %2388 = vmatpush1.xpose.msra.mxu0 0.0
      %2389 = vmatprep.subr.mxu0 0.0
      %2390 = vmatpush1.xpose.msra.mxu0 0.0
      %2391 = vmatprep.subr.mxu0 0.0
      %2392 = vmatpush1.xpose.msra.mxu0 0.0
      %2393 = vmatprep.subr.mxu0 0.0
      %2394 = vmatpush1.xpose.msra.mxu0 0.0
      %2395 = vmatprep.subr.mxu0 0.0
      %2396 = vmatpush1.xpose.msra.mxu0 0.0
      %2397 = vmatprep.subr.mxu0 0.0
      %2398 = vmatpush1.xpose.msra.mxu0 0.0
      %2399 = vmatprep.subr.mxu0 0.0
      %2400 = vmatpush1.xpose.msra.mxu0 0.0
      %2401 = vmatprep.subr.mxu0 0.0
      %2402 = vmatpush1.xpose.msra.mxu0 0.0
      %2403 = vmatprep.subr.mxu0 0.0
      %2404 = vmatpush1.xpose.msra.mxu0 0.0
      %2405 = vmatprep.subr.mxu0 0.0
      %2406 = vmatpush1.xpose.msra.mxu0 0.0
      %2407 = vmatprep.subr.mxu0 0.0
      %2408 = vmatpush1.xpose.msra.mxu0 0.0
      %2409 = vmatprep.subr.mxu0 0.0
      %2410 = vmatpush1.xpose.msra.mxu0 0.0
      %2411 = vmatprep.subr.mxu0 0.0
      %2412 = vmatpush1.xpose.msra.mxu0 0.0
      %2413 = vmatprep.subr.mxu0 0.0
      %2414 = vmatpush1.xpose.msra.mxu0 0.0
      %2415 = vmatprep.subr.mxu0 0.0
      %2416 = vmatpush1.xpose.msra.mxu0 0.0
      %2417 = vmatprep.subr.mxu0 0.0
      %2418 = vmatpush1.xpose.msra.mxu0 0.0
      %2419 = vmatprep.subr.mxu0 0.0
      %2420 = vmatpush1.xpose.msra.mxu0 0.0
      %2421 = vmatprep.subr.mxu0 0.0
      %2422 = vmatpush1.xpose.msra.mxu0 0.0
      %2423 = vmatprep.subr.mxu0 0.0
      %2424 = vmatpush1.xpose.msra.mxu0 0.0
      %2425 = vmatprep.subr.mxu0 0.0
      %2426 = vmatpush1.xpose.msra.mxu0 0.0
      %2427 = vmatprep.subr.mxu0 0.0
      %2428 = vmatpush1.xpose.msra.mxu0 0.0
      %2429 = vmatprep.subr.mxu0 0.0
      %2430 = vmatpush1.xpose.msra.mxu0 0.0
      %2431 = vmatprep.subr.mxu0 0.0
      %2432 = vmatpush1.xpose.msra.mxu0 0.0
      %2433 = vmatprep.subr.mxu0 0.0
      %2434 = vmatpush1.xpose.msra.mxu0 0.0
      %2435 = vmatprep.mubr.f32.mxu0 0.0
      %2436 = vmatmul.mubr.f32.gmra.mrb[0].mxu0 %v2366
      %v2437 = vpop.f32.mrb[0].mxu0
      %v2438 = vadd.f32 %v650, %v2437
      %v2439 = vpop.f32.mrb[0].mxu0
      %2440 = vdwg.mxu0
      %v2441 = vsel %vm907, %v2438, -inf
      %2442 = vmax.xlane.f32.xlu0 %v2441
      %v2443 = vpop.xlane.xlu0 %2442
      %v2444 = vsub.f32 %v2438, %v2443
      %v2445 = vmul.f32 %v2444, 1.442695
      %v2446 = vpow.pop %v2445
      %v2447 = vsel %vm907, %v2446, 0.0
      %2448 = vadd.xlane.f32.xlu0 %v2447
      %v2449 = vpop.xlane.xlu0 %2448
      %v2450 = vrcp.pop %v2449
      %v2451 = vmul.f32 %v2446, %v2450
      %v2453 = vsel %vm907, %v2451, 0
      %2455 = vmatprep.subr.mxu0 0.0
      %2456 = vmatpush1.msra.mxu0 %v2362
      %2457 = vmatprep.subr.mxu0 0.0
      %2458 = vmatpush1.msra.mxu0 0.0
      %2459 = vmatprep.subr.mxu0 0.0
      %2460 = vmatpush1.msra.mxu0 0.0
      %2461 = vmatprep.subr.mxu0 0.0
      %2462 = vmatpush1.msra.mxu0 0.0
      %2463 = vmatprep.subr.mxu0 0.0
      %2464 = vmatpush1.msra.mxu0 0.0
      %2465 = vmatprep.subr.mxu0 0.0
      %2466 = vmatpush1.msra.mxu0 0.0
      %2467 = vmatprep.subr.mxu0 0.0
      %2468 = vmatpush1.msra.mxu0 0.0
      %2469 = vmatprep.subr.mxu0 0.0
      %2470 = vmatpush1.msra.mxu0 0.0
      %2471 = vmatprep.subr.mxu0 0.0
      %2472 = vmatpush1.msra.mxu0 0.0
      %2473 = vmatprep.subr.mxu0 0.0
      %2474 = vmatpush1.msra.mxu0 0.0
      %2475 = vmatprep.subr.mxu0 0.0
      %2476 = vmatpush1.msra.mxu0 0.0
      %2477 = vmatprep.subr.mxu0 0.0
      %2478 = vmatpush1.msra.mxu0 0.0
      %2479 = vmatprep.subr.mxu0 0.0
      %2480 = vmatpush1.msra.mxu0 0.0
      %2481 = vmatprep.subr.mxu0 0.0
      %2482 = vmatpush1.msra.mxu0 0.0
      %2483 = vmatprep.subr.mxu0 0.0
      %2484 = vmatpush1.msra.mxu0 0.0
      %2485 = vmatprep.subr.mxu0 0.0
      %2486 = vmatpush1.msra.mxu0 0.0
      %2487 = vmatprep.subr.mxu0 0.0
      %2488 = vmatpush1.msra.mxu0 0.0
      %2489 = vmatprep.subr.mxu0 0.0
      %2490 = vmatpush1.msra.mxu0 0.0
      %2491 = vmatprep.subr.mxu0 0.0
      %2492 = vmatpush1.msra.mxu0 0.0
      %2493 = vmatprep.subr.mxu0 0.0
      %2494 = vmatpush1.msra.mxu0 0.0
      %2495 = vmatprep.subr.mxu0 0.0
      %2496 = vmatpush1.msra.mxu0 0.0
      %2497 = vmatprep.subr.mxu0 0.0
      %2498 = vmatpush1.msra.mxu0 0.0
      %2499 = vmatprep.subr.mxu0 0.0
      %2500 = vmatpush1.msra.mxu0 0.0
      %2501 = vmatprep.subr.mxu0 0.0
      %2502 = vmatpush1.msra.mxu0 0.0
      %2503 = vmatprep.subr.mxu0 0.0
      %2504 = vmatpush1.msra.mxu0 0.0
      %2505 = vmatprep.subr.mxu0 0.0
      %2506 = vmatpush1.msra.mxu0 0.0
      %2507 = vmatprep.subr.mxu0 0.0
      %2508 = vmatpush1.msra.mxu0 0.0
      %2509 = vmatprep.subr.mxu0 0.0
      %2510 = vmatpush1.msra.mxu0 0.0
      %2511 = vmatprep.subr.mxu0 0.0
      %2512 = vmatpush1.msra.mxu0 0.0
      %2513 = vmatprep.subr.mxu0 0.0
      %2514 = vmatpush1.msra.mxu0 0.0
      %2515 = vmatprep.subr.mxu0 0.0
      %2516 = vmatpush1.msra.mxu0 0.0
      %2517 = vmatprep.subr.mxu0 0.0
      %2518 = vmatpush1.msra.mxu0 0.0
      %2519 = vmatprep.mubr.f32.mxu0 0.0
      %2520 = vmatmul.mubr.f32.gmra.mrb[0].mxu0 %v2453
      %v2521 = vpop.f32.mrb[0].mxu0
      %v2522 = vadd.f32 0.0, %v2521
      %v2523 = vpop.f32.mrb[0].mxu0
      %2524 = vdwg.mxu0
      %s2525 = scalar_lea.vmem %s9, 24
      %v2526 = vld [vmem:[%s2525] sm:$0xff]
      %v2528 = vsel %vm907, %v2522, 0
      %2530 = vmatprep.subr.mxu0 0.0
      %2531 = vmatpush1.msra.mxu0 %v2526
      %2532 = vmatprep.subr.mxu0 0.0
      %2533 = vmatpush1.msra.mxu0 0.0
      %2534 = vmatprep.subr.mxu0 0.0
      %2535 = vmatpush1.msra.mxu0 0.0
      %2536 = vmatprep.subr.mxu0 0.0
      %2537 = vmatpush1.msra.mxu0 0.0
      %2538 = vmatprep.subr.mxu0 0.0
      %2539 = vmatpush1.msra.mxu0 0.0
      %2540 = vmatprep.subr.mxu0 0.0
      %2541 = vmatpush1.msra.mxu0 0.0
      %2542 = vmatprep.subr.mxu0 0.0
      %2543 = vmatpush1.msra.mxu0 0.0
      %2544 = vmatprep.subr.mxu0 0.0
      %2545 = vmatpush1.msra.mxu0 0.0
      %2546 = vmatprep.subr.mxu0 0.0
      %2547 = vmatpush1.msra.mxu0 0.0
      %2548 = vmatprep.subr.mxu0 0.0
      %2549 = vmatpush1.msra.mxu0 0.0
      %2550 = vmatprep.subr.mxu0 0.0
      %2551 = vmatpush1.msra.mxu0 0.0
      %2552 = vmatprep.subr.mxu0 0.0
      %2553 = vmatpush1.msra.mxu0 0.0
      %2554 = vmatprep.subr.mxu0 0.0
      %2555 = vmatpush1.msra.mxu0 0.0
      %2556 = vmatprep.subr.mxu0 0.0
      %2557 = vmatpush1.msra.mxu0 0.0
      %2558 = vmatprep.subr.mxu0 0.0
      %2559 = vmatpush1.msra.mxu0 0.0
      %2560 = vmatprep.subr.mxu0 0.0
      %2561 = vmatpush1.msra.mxu0 0.0
      %2562 = vmatprep.subr.mxu0 0.0
      %2563 = vmatpush1.msra.mxu0 0.0
      %2564 = vmatprep.subr.mxu0 0.0
      %2565 = vmatpush1.msra.mxu0 0.0
      %2566 = vmatprep.subr.mxu0 0.0
      %2567 = vmatpush1.msra.mxu0 0.0
      %2568 = vmatprep.subr.mxu0 0.0
      %2569 = vmatpush1.msra.mxu0 0.0
      %2570 = vmatprep.subr.mxu0 0.0
      %2571 = vmatpush1.msra.mxu0 0.0
      %2572 = vmatprep.subr.mxu0 0.0
      %2573 = vmatpush1.msra.mxu0 0.0
      %2574 = vmatprep.subr.mxu0 0.0
      %2575 = vmatpush1.msra.mxu0 0.0
      %2576 = vmatprep.subr.mxu0 0.0
      %2577 = vmatpush1.msra.mxu0 0.0
      %2578 = vmatprep.subr.mxu0 0.0
      %2579 = vmatpush1.msra.mxu0 0.0
      %2580 = vmatprep.subr.mxu0 0.0
      %2581 = vmatpush1.msra.mxu0 0.0
      %2582 = vmatprep.subr.mxu0 0.0
      %2583 = vmatpush1.msra.mxu0 0.0
      %2584 = vmatprep.subr.mxu0 0.0
      %2585 = vmatpush1.msra.mxu0 0.0
      %2586 = vmatprep.subr.mxu0 0.0
      %2587 = vmatpush1.msra.mxu0 0.0
      %2588 = vmatprep.subr.mxu0 0.0
      %2589 = vmatpush1.msra.mxu0 0.0
      %2590 = vmatprep.subr.mxu0 0.0
      %2591 = vmatpush1.msra.mxu0 0.0
      %2592 = vmatprep.subr.mxu0 0.0
      %2593 = vmatpush1.msra.mxu0 0.0
      %2594 = vmatprep.mubr.f32.mxu0 0.0
      %2595 = vmatmul.mubr.f32.gmra.mrb[0].mxu0 %v2528
      %v2596 = vpop.f32.mrb[0].mxu0
      %v2597 = vadd.f32 0.0, %v2596
      %v2598 = vpop.f32.mrb[0].mxu0
      %2599 = vdwg.mxu0
      %v2600 = vadd.f32 %v2114, %v2597
      %v2601 = vadd.f32 %v2600, %v629
      %v2602 = vld [vmem:[%s11] sm:$0x1]
      %v2603 = vld [vmem:[%s12] sm:$0x1]
      %v2604 = vsel %vm670, %v2601, 0.0
      %2605 = vadd.xlane.f32.xlu0 %v2604
      %v2606 = vpop.xlane.xlu0 %2605
      %v2607 = vrcp.pop 32.0
      %v2608 = vmul.f32 %v2606, %v2607
      %v2609 = vsub.f32 %v2601, %v2608
      %v2610 = vmul.f32 %v2609, %v2609
      %v2611 = vsel %vm670, %v2610, 0.0
      %2612 = vadd.xlane.f32.xlu0 %v2611
      %v2613 = vpop.xlane.xlu0 %2612
      %v2614 = vmul.f32 %v2613, %v2607
      %v2615 = vadd.f32 %v2614, 1e-05
      %v2616 = vrsqrt.pop %v2615
      %v2617 = vmul.f32 %v2609, %v2616
      %v2619 = vlaneseq
      %v2620 = vshrl.u32 %v2619, 7
      %v2621 = vsub.s32 0, %v2620
      %v2622 = vrot.slane %v2602, %v2621
      %v2624 = vmul.f32 %v2617, %v2622
      %v2626 = vlaneseq
      %v2627 = vshrl.u32 %v2626, 7
      %v2628 = vsub.s32 0, %v2627
      %v2629 = vrot.slane %v2603, %v2628
      %v2631 = vadd.f32 %v2624, %v2629
      %v2632 = vld [vmem:[%s13] sm:$0xff]
      %v2633 = vld [vmem:[%s13 + $0x8] sm:$0xff]
      %v2634 = vld [vmem:[%s13 + $0x10] sm:$0xff]
      %v2635 = vld [vmem:[%s13 + $0x18] sm:$0xff]
      %v2636 = vld [vmem:[%s14] sm:$0x1]
      %v2638 = vlaneseq
      %v2639 = vshrl.u32 %v2638, 7
      %v2640 = vsub.s32 0, %v2639
      %v2641 = vrot.slane %v2636, %v2640
      %v2644 = vsel %vm670, %v2631, 0
      %2646 = vmatprep.subr.mxu0 0.0
      %2647 = vmatpush1.msra.mxu0 %v2632
      %2648 = vmatprep.subr.mxu0 0.0
      %2649 = vmatpush1.msra.mxu0 %v2633
      %2650 = vmatprep.subr.mxu0 0.0
      %2651 = vmatpush1.msra.mxu0 %v2634
      %2652 = vmatprep.subr.mxu0 0.0
      %2653 = vmatpush1.msra.mxu0 %v2635
      %2654 = vmatprep.subr.mxu0 0.0
      %2655 = vmatpush1.msra.mxu0 0.0
      %2656 = vmatprep.subr.mxu0 0.0
      %2657 = vmatpush1.msra.mxu0 0.0
      %2658 = vmatprep.subr.mxu0 0.0
      %2659 = vmatpush1.msra.mxu0 0.0
      %2660 = vmatprep.subr.mxu0 0.0
      %2661 = vmatpush1.msra.mxu0 0.0
      %2662 = vmatprep.subr.mxu0 0.0
      %2663 = vmatpush1.msra.mxu0 0.0
      %2664 = vmatprep.subr.mxu0 0.0
      %2665 = vmatpush1.msra.mxu0 0.0
      %2666 = vmatprep.subr.mxu0 0.0
      %2667 = vmatpush1.msra.mxu0 0.0
      %2668 = vmatprep.subr.mxu0 0.0
      %2669 = vmatpush1.msra.mxu0 0.0
      %2670 = vmatprep.subr.mxu0 0.0
      %2671 = vmatpush1.msra.mxu0 0.0
      %2672 = vmatprep.subr.mxu0 0.0
      %2673 = vmatpush1.msra.mxu0 0.0
      %2674 = vmatprep.subr.mxu0 0.0
      %2675 = vmatpush1.msra.mxu0 0.0
      %2676 = vmatprep.subr.mxu0 0.0
      %2677 = vmatpush1.msra.mxu0 0.0
      %2678 = vmatprep.subr.mxu0 0.0
      %2679 = vmatpush1.msra.mxu0 0.0
      %2680 = vmatprep.subr.mxu0 0.0
      %2681 = vmatpush1.msra.mxu0 0.0
      %2682 = vmatprep.subr.mxu0 0.0
      %2683 = vmatpush1.msra.mxu0 0.0
      %2684 = vmatprep.subr.mxu0 0.0
      %2685 = vmatpush1.msra.mxu0 0.0
      %2686 = vmatprep.subr.mxu0 0.0
      %2687 = vmatpush1.msra.mxu0 0.0
      %2688 = vmatprep.subr.mxu0 0.0
      %2689 = vmatpush1.msra.mxu0 0.0
      %2690 = vmatprep.subr.mxu0 0.0
      %2691 = vmatpush1.msra.mxu0 0.0
      %2692 = vmatprep.subr.mxu0 0.0
      %2693 = vmatpush1.msra.mxu0 0.0
      %2694 = vmatprep.subr.mxu0 0.0
      %2695 = vmatpush1.msra.mxu0 0.0
      %2696 = vmatprep.subr.mxu0 0.0
      %2697 = vmatpush1.msra.mxu0 0.0
      %2698 = vmatprep.subr.mxu0 0.0
      %2699 = vmatpush1.msra.mxu0 0.0
      %2700 = vmatprep.subr.mxu0 0.0
      %2701 = vmatpush1.msra.mxu0 0.0
      %2702 = vmatprep.subr.mxu0 0.0
      %2703 = vmatpush1.msra.mxu0 0.0
      %2704 = vmatprep.subr.mxu0 0.0
      %2705 = vmatpush1.msra.mxu0 0.0
      %2706 = vmatprep.subr.mxu0 0.0
      %2707 = vmatpush1.msra.mxu0 0.0
      %2708 = vmatprep.subr.mxu0 0.0
      %2709 = vmatpush1.msra.mxu0 0.0
      %2710 = vmatprep.mubr.f32.mxu0 0.0
      %2711 = vmatmul.mubr.f32.gmra.mrb[0].mxu0 %v2644
      %v2712 = vpop.f32.mrb[0].mxu0
      %v2713 = vadd.f32 %v2641, %v2712
      %v2714 = vpop.f32.mrb[0].mxu0
      %2715 = vdwg.mxu0
      %v2716 = vmax.f32 %v2713, 0.0
      %v2717 = vld [vmem:[%s15] sm:$0xff]
      %v2718 = vld [vmem:[%s15 + $0x8] sm:$0xff]
      %v2719 = vld [vmem:[%s15 + $0x10] sm:$0xff]
      %v2720 = vld [vmem:[%s15 + $0x18] sm:$0xff]
      %v2721 = vld [vmem:[%s15 + $0x20] sm:$0xff]
      %v2722 = vld [vmem:[%s15 + $0x28] sm:$0xff]
      %v2723 = vld [vmem:[%s15 + $0x30] sm:$0xff]
      %v2724 = vld [vmem:[%s15 + $0x38] sm:$0xff]
      %v2725 = vld [vmem:[%s16] sm:$0x1]
      %v2727 = vlaneseq
      %v2728 = vshrl.u32 %v2727, 7
      %v2729 = vsub.s32 0, %v2728
      %v2730 = vrot.slane %v2725, %v2729
      %vm2732 = vcmask 523264
      %v2734 = vsel %vm2732, %v2716, 0
      %2736 = vmatprep.subr.mxu0 0.0
      %2737 = vmatpush1.msra.mxu0 %v2717
      %2738 = vmatprep.subr.mxu0 0.0
      %2739 = vmatpush1.msra.mxu0 %v2718
      %2740 = vmatprep.subr.mxu0 0.0
      %2741 = vmatpush1.msra.mxu0 %v2719
      %2742 = vmatprep.subr.mxu0 0.0
      %2743 = vmatpush1.msra.mxu0 %v2720
      %2744 = vmatprep.subr.mxu0 0.0
      %2745 = vmatpush1.msra.mxu0 %v2721
      %2746 = vmatprep.subr.mxu0 0.0
      %2747 = vmatpush1.msra.mxu0 %v2722
      %2748 = vmatprep.subr.mxu0 0.0
      %2749 = vmatpush1.msra.mxu0 %v2723
      %2750 = vmatprep.subr.mxu0 0.0
      %2751 = vmatpush1.msra.mxu0 %v2724
      %2752 = vmatprep.subr.mxu0 0.0
      %2753 = vmatpush1.msra.mxu0 0.0
      %2754 = vmatprep.subr.mxu0 0.0
      %2755 = vmatpush1.msra.mxu0 0.0
      %2756 = vmatprep.subr.mxu0 0.0
      %2757 = vmatpush1.msra.mxu0 0.0
      %2758 = vmatprep.subr.mxu0 0.0
      %2759 = vmatpush1.msra.mxu0 0.0
      %2760 = vmatprep.subr.mxu0 0.0
      %2761 = vmatpush1.msra.mxu0 0.0
      %2762 = vmatprep.subr.mxu0 0.0
      %2763 = vmatpush1.msra.mxu0 0.0
      %2764 = vmatprep.subr.mxu0 0.0
      %2765 = vmatpush1.msra.mxu0 0.0
      %2766 = vmatprep.subr.mxu0 0.0
      %2767 = vmatpush1.msra.mxu0 0.0
      %2768 = vmatprep.subr.mxu0 0.0
      %2769 = vmatpush1.msra.mxu0 0.0
      %2770 = vmatprep.subr.mxu0 0.0
      %2771 = vmatpush1.msra.mxu0 0.0
      %2772 = vmatprep.subr.mxu0 0.0
      %2773 = vmatpush1.msra.mxu0 0.0
      %2774 = vmatprep.subr.mxu0 0.0
      %2775 = vmatpush1.msra.mxu0 0.0
      %2776 = vmatprep.subr.mxu0 0.0
      %2777 = vmatpush1.msra.mxu0 0.0
      %2778 = vmatprep.subr.mxu0 0.0
      %2779 = vmatpush1.msra.mxu0 0.0
      %2780 = vmatprep.subr.mxu0 0.0
      %2781 = vmatpush1.msra.mxu0 0.0
      %2782 = vmatprep.subr.mxu0 0.0
      %2783 = vmatpush1.msra.mxu0 0.0
      %2784 = vmatprep.subr.mxu0 0.0
      %2785 = vmatpush1.msra.mxu0 0.0
      %2786 = vmatprep.subr.mxu0 0.0
      %2787 = vmatpush1.msra.mxu0 0.0
      %2788 = vmatprep.subr.mxu0 0.0
      %2789 = vmatpush1.msra.mxu0 0.0
      %2790 = vmatprep.subr.mxu0 0.0
      %2791 = vmatpush1.msra.mxu0 0.0
      %2792 = vmatprep.subr.mxu0 0.0
      %2793 = vmatpush1.msra.mxu0 0.0
      %2794 = vmatprep.subr.mxu0 0.0
      %2795 = vmatpush1.msra.mxu0 0.0
      %2796 = vmatprep.subr.mxu0 0.0
      %2797 = vmatpush1.msra.mxu0 0.0
      %2798 = vmatprep.subr.mxu0 0.0
      %2799 = vmatpush1.msra.mxu0 0.0
      %2800 = vmatprep.mubr.f32.mxu0 0.0
      %2801 = vmatmul.mubr.f32.gmra.mrb[0].mxu0 %v2734
      %v2802 = vpop.f32.mrb[0].mxu0
      %v2803 = vadd.f32 %v2730, %v2802
      %v2804 = vpop.f32.mrb[0].mxu0
      %2805 = vdwg.mxu0
      %v2806 = vadd.f32 %v2803, %v2631
      %v2807 = vld [vmem:[%s17] sm:$0x1]
      %v2808 = vld [vmem:[%s18] sm:$0x1]
      %v2809 = vsel %vm670, %v2806, 0.0
      %2810 = vadd.xlane.f32.xlu0 %v2809
      %v2811 = vpop.xlane.xlu0 %2810
      %v2812 = vmul.f32 %v2811, %v2607
      %v2813 = vsub.f32 %v2806, %v2812
      %v2814 = vmul.f32 %v2813, %v2813
      %v2815 = vsel %vm670, %v2814, 0.0
      %2816 = vadd.xlane.f32.xlu0 %v2815
      %v2817 = vpop.xlane.xlu0 %2816
      %v2818 = vmul.f32 %v2817, %v2607
      %v2819 = vadd.f32 %v2818, 1e-05
      %v2820 = vrsqrt.pop %v2819
      %v2821 = vmul.f32 %v2813, %v2820
      %v2823 = vlaneseq
      %v2824 = vshrl.u32 %v2823, 7
      %v2825 = vsub.s32 0, %v2824
      %v2826 = vrot.slane %v2807, %v2825
      %v2828 = vmul.f32 %v2821, %v2826
      %v2830 = vlaneseq
      %v2831 = vshrl.u32 %v2830, 7
      %v2832 = vsub.s32 0, %v2831
      %v2833 = vrot.slane %v2808, %v2832
      %v2835 = vadd.f32 %v2828, %v2833
      %2836 = vst.msk [vmem:[%s628] sm:$0xff] %vm670, %v2835
      %p2837 = scmp.lt.s32.totalorder %s30, 1
      %s2838 = scalar_select %p2837, %s30, 1
      %s2839 = smul.addr %s2838, 8
      %s2840 = scalar_lea.vmem %s19, %s2839
      // Predicated region
      $region97: #{language_model_forward.5} parent=95 // pred_check
        %p2841 = pneg %p462
      $region98: #{language_model_forward.5} parent=95 // pred_check_branch
        %2843 = sbr.rel (%p2841) target = $region100
      $region99: #{language_model_forward.5} parent=95 // pred_region
        _
      $region100: #{language_model_forward.5} parent=95 // pred_fallthru
        _
    $region96: #{language_model_forward.5} parent=5 // pred_fallthru
      _
    %p2844 = scmp.le.s32.totalorder 2, %s25
    // Predicated region
    $region101: #{language_model_forward.5} parent=5 // pred_check
      %p2845 = pneg %p2844
    $region102: #{language_model_forward.5} parent=5 // pred_check_branch
      %2847 = sbr.rel (%p2845) target = $region104
    $region103: #{language_model_forward.5} parent=5 // pred_region
      %s2848 = ssub.s32 %s25, 2
      // Predicated region
      $region105: #{language_model_forward.5} parent=103 // pred_check
        %p2849 = pneg %p468
      $region106: #{language_model_forward.5} parent=103 // pred_check_branch
        %2851 = sbr.rel (%p2849) target = $region108
      $region107: #{language_model_forward.5} parent=103 // pred_region
        %p2852 = scmp.lt.s32.totalorder %s31, 1
        %s2853 = scalar_select %p2852, %s31, 1
        %s2854 = smul.addr %s2853, 8
        %s2855 = scalar_lea.vmem %s19, %s2854
      $region108: #{language_model_forward.5} parent=103 // pred_fallthru
        _
    $region104: #{language_model_forward.5} parent=5 // pred_fallthru
      _
  $region6: #{language_model_forward.5} parent=0 // loop_footer
    %s29 = sadd.s32 1, %s25
  $region7: #{language_model_forward.5} parent=0 // loop_footer_branch
    %24 = sbr.rel target = $region3
  $region8: #{language_model_forward.5} parent=0 // loop_exit
    _

</llo_original>
